<compile_context>
chip_gen: v5e
topology: v5e:2x2
jax: 0.10.0
libtpu: 0.0.40
codegen_flags: <defaults>
</compile_context>

<pallas_src>
import numpy as np
import jax
import jax.numpy as jnp
from jax.experimental import pallas as pl
from jax.experimental.pallas import tpu as pltpu


# ----------------------------------------------------------------------------
# Static layer configuration: (name, (KH, KW), (pad_h, pad_w), (dil_h, dil_w)).
# ----------------------------------------------------------------------------
LAYER_CFGS = [
    ('branch0',    (1, 1), (0, 0), (1, 1)),
    ('branch1_0',  (1, 1), (0, 0), (1, 1)),
    ('branch1_1a', (1, 3), (0, 1), (1, 1)),
    ('branch1_1b', (3, 1), (1, 0), (1, 1)),
    ('branch1_1c', (3, 3), (3, 3), (3, 3)),
    ('branch2_0',  (1, 1), (0, 0), (1, 1)),
    ('branch2_1a', (1, 5), (0, 2), (1, 1)),
    ('branch2_1b', (5, 1), (2, 0), (1, 1)),
    ('branch2_1c', (3, 3), (5, 5), (5, 5)),
    ('branch3_0',  (1, 1), (0, 0), (1, 1)),
    ('branch3_1a', (1, 7), (0, 3), (1, 1)),
    ('branch3_1b', (7, 1), (3, 0), (1, 1)),
    ('branch3_1c', (3, 3), (7, 7), (7, 7)),
    ('conv_cat',   (3, 3), (1, 1), (1, 1)),
    ('conv_res',   (1, 1), (0, 0), (1, 1)),
]
CFG = {name: (ks, pad, dil) for name, ks, pad, dil in LAYER_CFGS}

# The five 1x1 convs that read the module input (fused into one matmul).
INPUT_1X1 = ('branch0', 'branch1_0', 'branch2_0', 'branch3_0', 'conv_res')
# The nine chained branch convs (all have Cin = Cout = out_channel).
CHAINED = ('branch1_1a', 'branch1_1b', 'branch1_1c',
           'branch2_1a', 'branch2_1b', 'branch2_1c',
           'branch3_1a', 'branch3_1b', 'branch3_1c')

# Vertical halo rows on each side of the activation inside the VMEM scratch.
# Multiple of 16 so the bf16 interior store is sublane-tile aligned; must
# cover both the near reach (pad) and the far reach ((K-1)*dil - pad) of every
# layer (asserted per layer in pack_raspm).
PAD0 = 16


# ----------------------------------------------------------------------------
# Fused kernel body (one image per grid step).
# ----------------------------------------------------------------------------
def _make_kernel(H, W, Cin, Cout):
    WCin = W * Cin
    WC = W * Cout
    nch = len(CHAINED)

    def kernel(*refs):
        # ref order: x, w_in, b_in, (w, b) per chained layer, w_cat, b_cat,
        #            out, halo-scratch
        x_ref, w_in_ref, b_in_ref = refs[0], refs[1], refs[2]
        chain = {name: (refs[3 + 2 * i], refs[4 + 2 * i])
                 for i, name in enumerate(CHAINED)}
        wcat_ref, bcat_ref = refs[3 + 2 * nch], refs[4 + 2 * nch]
        out_ref = refs[5 + 2 * nch]
        halo = refs[6 + 2 * nch]         # (H + 2*PAD0, WC) bf16

        # Zero only the top/bottom halo borders, EVERY program (megacore-safe:
        # do NOT gate this behind program_id == 0).  The interior is fully
        # overwritten before each use; the zero borders supply the vertical
        # conv padding.  Horizontal padding is folded into the band weights.
        zrow = jnp.zeros((PAD0, WC), jnp.bfloat16)
        halo[0:PAD0, :] = zrow
        halo[PAD0 + H:2 * PAD0 + H, :] = zrow

        def set_halo(a_f32):             # (H, WC) f32 -> halo interior (bf16)
            halo[PAD0:PAD0 + H, :] = a_f32.astype(jnp.bfloat16)

        def band_accum(acc, w_ref, kh0, KH, ph, dh):
            # One (H, WC) @ (WC, WC) bf16 MXU dot per vertical tap, f32 accum.
            for kh in range(KH):
                h0 = PAD0 - ph + kh * dh          # static sublane offset
                acc = acc + jnp.dot(halo[h0:h0 + H, :], w_ref[kh0 + kh],
                                    preferred_element_type=jnp.float32)
            return acc

        def chained_layer(a_f32, name):           # conv + folded-BN bias
            (KH, _KW), (ph, _pw), (dh, _dw) = CFG[name]
            w_ref, b_ref = chain[name]
            set_halo(a_f32)
            acc = band_accum(jnp.zeros((H, WC), jnp.float32),
                             w_ref, 0, KH, ph, dh)
            return acc + b_ref[...]

        # ---- all five input-reading 1x1 convs fused into one MXU matmul ----
        xin = x_ref[...].reshape(H, WCin).astype(jnp.bfloat16)
        y5 = jnp.dot(xin, w_in_ref[...], preferred_element_type=jnp.float32)
        y5 = y5 + b_in_ref[...]
        x0   = y5[:, 0 * WC:1 * WC]
        x1_0 = y5[:, 1 * WC:2 * WC]
        x2_0 = y5[:, 2 * WC:3 * WC]
        x3_0 = y5[:, 3 * WC:4 * WC]
        res  = y5[:, 4 * WC:5 * WC]

        # ---- cascaded branches (each activation = one lane-dense tile) -----
        x1 = chained_layer(chained_layer(chained_layer(
            x1_0 + x0, 'branch1_1a'), 'branch1_1b'), 'branch1_1c')
        x2 = chained_layer(chained_layer(chained_layer(
            x2_0 + x1, 'branch2_1a'), 'branch2_1b'), 'branch2_1c')
        x3 = chained_layer(chained_layer(chained_layer(
            x3_0 + x2, 'branch3_1a'), 'branch3_1b'), 'branch3_1c')

        # ---- conv_cat over the virtual concat [x0|x1|x2|x3] ----------------
        (KHc, _), (phc, _), (dhc, _) = CFG['conv_cat']
        acc = jnp.zeros((H, WC), jnp.float32)
        for b, xb in enumerate((x0, x1, x2, x3)):
            set_halo(xb)
            acc = band_accum(acc, wcat_ref, b * KHc, KHc, phc, dhc)
        x_cat = acc + bcat_ref[...]

        # ---- residual + final ReLU; single lane-dense store -----------------
        y = jnp.maximum(x_cat + res, 0.0)
        out_ref[...] = y.reshape(1, H, WC).astype(out_ref.dtype)

    return kernel


# ----------------------------------------------------------------------------
# Raw parameter construction (matches the torch module; BN folded eval-mode).
# ----------------------------------------------------------------------------
def _fold_bn(key, cout):
    k1, k2, k3, k4 = jax.random.split(key, 4)
    gamma = 1.0 + 0.1 * jax.random.normal(k1, (cout,), jnp.float32)
    beta = 0.1 * jax.random.normal(k2, (cout,), jnp.float32)
    mean = 0.1 * jax.random.normal(k3, (cout,), jnp.float32)
    var = 1.0 + 0.5 * jax.random.uniform(k4, (cout,), jnp.float32)
    scale = gamma / jnp.sqrt(var + 1e-5)
    bias = beta - mean * scale
    return scale, bias


def init_raspm_raw(key, in_channel, out_channel):
    keys = jax.random.split(key, len(LAYER_CFGS))
    raw = {}
    for k, (name, (KH, KW), pad, dil) in zip(keys, LAYER_CFGS):
        if name in INPUT_1X1:
            cin = in_channel
        elif name == 'conv_cat':
            cin = 4 * out_channel
        else:
            cin = out_channel
        kw_, kbn = jax.random.split(k)
        w = 0.1 * jax.random.normal(kw_, (out_channel, cin, KH, KW), jnp.float32)
        scale, bias = _fold_bn(kbn, out_channel)
        raw[name] = {'w': w, 'scale': scale, 'bias': bias,
                     'pad': pad, 'dil': dil}
    return raw


# ----------------------------------------------------------------------------
# Band-matrix packing: fold BN scale into weights, fold horizontal taps and
# horizontal zero-padding into (W*Cin, W*Cout) banded matrices (one per
# vertical tap kh).  Packing depends on the image width W (repack if W changes).
# ----------------------------------------------------------------------------
def _band_matrices(weff, W_img, pad, dil):
    cout, cin, KH, KW = weff.shape
    _ph, pw = pad
    _dh, dw = dil
    B = np.zeros((KH, W_img * cin, W_img * cout), np.float32)
    for kh in range(KH):
        for kw in range(KW):
            blk = weff[:, :, kh, kw].T          # (Cin, Cout)
            for wo in range(W_img):
                ws = wo + kw * dw - pw
                if 0 <= ws < W_img:             # out-of-range => zero padding
                    B[kh, ws * cin:(ws + 1) * cin,
                      wo * cout:(wo + 1) * cout] = blk
    return B


def pack_raspm(raw, W_img):
    cout = raw['branch0']['w'].shape[0]

    def eff(name):
        p = raw[name]
        return np.asarray(p['w']) * np.asarray(p['scale'])[:, None, None, None]

    def bias_row(name):
        return np.tile(np.asarray(raw[name]['bias']), W_img)[None, :]

    packed = {}

    # 1) the five input-reading 1x1 convs, fused into one (W*Cin, 5*W*Cout) mat
    in_bands = [_band_matrices(eff(n), W_img, (0, 0), (1, 1))[0]
                for n in INPUT_1X1]
    in_bias = [bias_row(n) for n in INPUT_1X1]
    packed['w_in'] = jnp.asarray(np.concatenate(in_bands, axis=1), jnp.bfloat16)
    packed['b_in'] = jnp.asarray(np.concatenate(in_bias, axis=1), jnp.float32)

    # 2) the nine chained branch convs
    for name in CHAINED:
        (KH, _KW), pad, dil = CFG[name]
        # halo-reach guard: near side (pad) and far side ((K-1)*dil - pad)
        assert pad[0] <= PAD0 and (KH - 1) * dil[0] - pad[0] <= PAD0
        packed['w_' + name] = jnp.asarray(
            _band_matrices(eff(name), W_img, pad, dil), jnp.bfloat16)
        packed['b_' + name] = jnp.asarray(bias_row(name), jnp.float32)

    # 3) conv_cat: split per source branch (the channel concat never exists)
    (KHc, _), padc, dilc = CFG['conv_cat']
    assert padc[0] <= PAD0 and (KHc - 1) * dilc[0] - padc[0] <= PAD0
    wcat = eff('conv_cat')                                   # (C, 4C, 3, 3)
    cat_bands = [_band_matrices(wcat[:, b * cout:(b + 1) * cout],
                                W_img, padc, dilc) for b in range(4)]
    packed['w_cat'] = jnp.asarray(np.concatenate(cat_bands, axis=0),
                                  jnp.bfloat16)               # (4*3, WC, WC)
    packed['b_cat'] = jnp.asarray(bias_row('conv_cat'), jnp.float32)
    return packed


# ----------------------------------------------------------------------------
# Wrapper: one fused pallas_call, grid over batch, parallel across TCs.
# ----------------------------------------------------------------------------
def raspm_forward(packed, x):
    """x: (N, H, W, Cin) NHWC -> (N, H, W, Cout)."""
    N, H, W, Cin = x.shape
    WC = packed['b_cat'].shape[-1]
    Cout = WC // W
    WCin = W * Cin

    kernel = _make_kernel(H, W, Cin, Cout)

    def const_spec(arr):
        # Whole (small) parameter resident in VMEM; constant index map means it
        # is DMA'd once and not re-copied across grid steps.
        return pl.BlockSpec(arr.shape, lambda n, nd=arr.ndim: (0,) * nd)

    inputs = [x.reshape(N, H, WCin), packed['w_in'], packed['b_in']]
    in_specs = [pl.BlockSpec((1, H, WCin), lambda n: (n, 0, 0)),
                const_spec(packed['w_in']), const_spec(packed['b_in'])]
    for name in CHAINED:
        for pfx in ('w_', 'b_'):
            arr = packed[pfx + name]
            inputs.append(arr)
            in_specs.append(const_spec(arr))
    inputs += [packed['w_cat'], packed['b_cat']]
    in_specs += [const_spec(packed['w_cat']), const_spec(packed['b_cat'])]

    out2d = pl.pallas_call(
        kernel,
        grid=(N,),
        in_specs=in_specs,
        # lane-dense output slab (N, H, W*Cout); reshaped to NHWC below (free)
        out_specs=pl.BlockSpec((1, H, WC), lambda n: (n, 0, 0)),
        out_shape=jax.ShapeDtypeStruct((N, H, WC), x.dtype),
        scratch_shapes=[
            # vertical zero-halo scratch, bf16, lane-dense (W*Cout on lanes)
            pltpu.VMEM((H + 2 * PAD0, WC), jnp.bfloat16),
        ],
        compiler_params=pltpu.CompilerParams(
            dimension_semantics=("parallel",)),
    )(*inputs)
    return out2d.reshape(N, H, W, Cout)


# ----------------------------------------------------------------------------
# Pure-JAX reference (f32) for correctness checking.
# ----------------------------------------------------------------------------
def _conv_bn_ref(x, p):
    ph, pw = p['pad']
    y = jax.lax.conv_general_dilated(
        x, jnp.transpose(p['w'], (2, 3, 1, 0)),          # (Cout,Cin,KH,KW)->HWIO
        window_strides=(1, 1), padding=((ph, ph), (pw, pw)),
        rhs_dilation=p['dil'],
        dimension_numbers=('NHWC', 'HWIO', 'NHWC'),
        precision=jax.lax.Precision.HIGHEST)
    return y * p['scale'] + p['bias']


def raspm_reference(raw, x):
    c = lambda name, inp: _conv_bn_ref(inp, raw[name])
    x0 = c('branch0', x)
    x1 = c('branch1_1c', c('branch1_1b', c('branch1_1a', c('branch1_0', x) + x0)))
    x2 = c('branch2_1c', c('branch2_1b', c('branch2_1a', c('branch2_0', x) + x1)))
    x3 = c('branch3_1c', c('branch3_1b', c('branch3_1a', c('branch3_0', x) + x2)))
    x_cat = c('conv_cat', jnp.concatenate([x0, x1, x2, x3], axis=-1))
    return jnp.maximum(x_cat + c('conv_res', x), 0.0)


if __name__ == "__main__":
    key = jax.random.PRNGKey(0)
    k_param, k_x = jax.random.split(key)

    in_channel, out_channel = 4, 8
    N, H, W = 2, 16, 16            # W * out_channel = 128 -> fully lane-dense

    raw = init_raspm_raw(k_param, in_channel, out_channel)
    packed = pack_raspm(raw, W)

    # NHWC input (equivalent to a torch NCHW input of shape (2, 4, 16, 16))
    x = jax.random.normal(k_x, (N, H, W, in_channel), jnp.float32)

    out = jax.jit(raspm_forward)(packed, x)
    out = jax.block_until_ready(out)
    assert out.shape == (N, H, W, out_channel)
    assert bool(jnp.all(out >= 0.0))            # final ReLU

    # correctness vs. pure-JAX f32 reference (bf16-matmul tolerance)
    ref = raspm_reference(raw, x)
    err = float(jnp.max(jnp.abs(out - ref)))
    assert err < 6e-2, f"max abs error {err}"

    print("KERNEL_OK")
</pallas_src>

<mosaic_0001>
module attributes {stable_mosaic.version = 11 : i64} {
  func.func @kernel(%arg0: i32, %arg1: memref<1x16x64xf32, #tpu.memory_space<vmem>>, %arg2: memref<64x640xbf16, #tpu.memory_space<vmem>>, %arg3: memref<1x640xf32, #tpu.memory_space<vmem>>, %arg4: memref<1x128x128xbf16, #tpu.memory_space<vmem>>, %arg5: memref<1x128xf32, #tpu.memory_space<vmem>>, %arg6: memref<3x128x128xbf16, #tpu.memory_space<vmem>>, %arg7: memref<1x128xf32, #tpu.memory_space<vmem>>, %arg8: memref<3x128x128xbf16, #tpu.memory_space<vmem>>, %arg9: memref<1x128xf32, #tpu.memory_space<vmem>>, %arg10: memref<1x128x128xbf16, #tpu.memory_space<vmem>>, %arg11: memref<1x128xf32, #tpu.memory_space<vmem>>, %arg12: memref<5x128x128xbf16, #tpu.memory_space<vmem>>, %arg13: memref<1x128xf32, #tpu.memory_space<vmem>>, %arg14: memref<3x128x128xbf16, #tpu.memory_space<vmem>>, %arg15: memref<1x128xf32, #tpu.memory_space<vmem>>, %arg16: memref<1x128x128xbf16, #tpu.memory_space<vmem>>, %arg17: memref<1x128xf32, #tpu.memory_space<vmem>>, %arg18: memref<7x128x128xbf16, #tpu.memory_space<vmem>>, %arg19: memref<1x128xf32, #tpu.memory_space<vmem>>, %arg20: memref<3x128x128xbf16, #tpu.memory_space<vmem>>, %arg21: memref<1x128xf32, #tpu.memory_space<vmem>>, %arg22: memref<12x128x128xbf16, #tpu.memory_space<vmem>>, %arg23: memref<1x128xf32, #tpu.memory_space<vmem>>, %arg24: memref<1x16x128xf32, #tpu.memory_space<vmem>>, %arg25: memref<48x128xbf16, #tpu.memory_space<vmem>>) attributes {dimension_semantics = [#tpu.dimension_semantics<parallel>], iteration_bounds = array<i64: 2>, scalar_prefetch = 0 : i64, scratch_operands = 1 : i64, tpu.core_type = #tpu.core_type<tc>, window_params = [{transform_indices = @transform_0, window_bounds = array<i64: 1, 16, 64>}, {pipeline_mode = #tpu.pipeline_mode<synchronous>, transform_indices = @transform_1, window_bounds = array<i64: 64, 640>}, {pipeline_mode = #tpu.pipeline_mode<synchronous>, transform_indices = @transform_2, window_bounds = array<i64: 1, 640>}, {pipeline_mode = #tpu.pipeline_mode<synchronous>, transform_indices = @transform_3, window_bounds = array<i64: 1, 128, 128>}, {pipeline_mode = #tpu.pipeline_mode<synchronous>, transform_indices = @transform_4, window_bounds = array<i64: 1, 128>}, {pipeline_mode = #tpu.pipeline_mode<synchronous>, transform_indices = @transform_5, window_bounds = array<i64: 3, 128, 128>}, {pipeline_mode = #tpu.pipeline_mode<synchronous>, transform_indices = @transform_6, window_bounds = array<i64: 1, 128>}, {pipeline_mode = #tpu.pipeline_mode<synchronous>, transform_indices = @transform_7, window_bounds = array<i64: 3, 128, 128>}, {pipeline_mode = #tpu.pipeline_mode<synchronous>, transform_indices = @transform_8, window_bounds = array<i64: 1, 128>}, {pipeline_mode = #tpu.pipeline_mode<synchronous>, transform_indices = @transform_9, window_bounds = array<i64: 1, 128, 128>}, {pipeline_mode = #tpu.pipeline_mode<synchronous>, transform_indices = @transform_10, window_bounds = array<i64: 1, 128>}, {pipeline_mode = #tpu.pipeline_mode<synchronous>, transform_indices = @transform_11, window_bounds = array<i64: 5, 128, 128>}, {pipeline_mode = #tpu.pipeline_mode<synchronous>, transform_indices = @transform_12, window_bounds = array<i64: 1, 128>}, {pipeline_mode = #tpu.pipeline_mode<synchronous>, transform_indices = @transform_13, window_bounds = array<i64: 3, 128, 128>}, {pipeline_mode = #tpu.pipeline_mode<synchronous>, transform_indices = @transform_14, window_bounds = array<i64: 1, 128>}, {pipeline_mode = #tpu.pipeline_mode<synchronous>, transform_indices = @transform_15, window_bounds = array<i64: 1, 128, 128>}, {pipeline_mode = #tpu.pipeline_mode<synchronous>, transform_indices = @transform_16, window_bounds = array<i64: 1, 128>}, {pipeline_mode = #tpu.pipeline_mode<synchronous>, transform_indices = @transform_17, window_bounds = array<i64: 7, 128, 128>}, {pipeline_mode = #tpu.pipeline_mode<synchronous>, transform_indices = @transform_18, window_bounds = array<i64: 1, 128>}, {pipeline_mode = #tpu.pipeline_mode<synchronous>, transform_indices = @transform_19, window_bounds = array<i64: 3, 128, 128>}, {pipeline_mode = #tpu.pipeline_mode<synchronous>, transform_indices = @transform_20, window_bounds = array<i64: 1, 128>}, {pipeline_mode = #tpu.pipeline_mode<synchronous>, transform_indices = @transform_21, window_bounds = array<i64: 12, 128, 128>}, {pipeline_mode = #tpu.pipeline_mode<synchronous>, transform_indices = @transform_22, window_bounds = array<i64: 1, 128>}, {transform_indices = @transform_23, window_bounds = array<i64: 1, 16, 128>}]} {
    %cst = arith.constant 0.000000e+00 : bf16
    %0 = vector.broadcast %cst : bf16 to vector<16x128xbf16>
    %c0 = arith.constant 0 : index
    %c0_0 = arith.constant 0 : index
    %1 = vector.load %arg25[%c0, %c0_0] : memref<48x128xbf16, #tpu.memory_space<vmem>>, vector<16x128xbf16>
    tpu.vector_store %arg25[%c0, %c0_0], %0 {strides = array<i32>} : memref<48x128xbf16, #tpu.memory_space<vmem>>, vector<16x128xbf16>,
    %c32 = arith.constant 32 : index
    %c0_1 = arith.constant 0 : index
    %2 = vector.load %arg25[%c32, %c0_1] : memref<48x128xbf16, #tpu.memory_space<vmem>>, vector<16x128xbf16>
    tpu.vector_store %arg25[%c32, %c0_1], %0 {strides = array<i32>} : memref<48x128xbf16, #tpu.memory_space<vmem>>, vector<16x128xbf16>,
    %c0_2 = arith.constant 0 : index
    %c0_3 = arith.constant 0 : index
    %c0_4 = arith.constant 0 : index
    %3 = vector.load %arg1[%c0_2, %c0_3, %c0_4] : memref<1x16x64xf32, #tpu.memory_space<vmem>>, vector<1x16x64xf32>
    %4 = vector.shape_cast %3 : vector<1x16x64xf32> to vector<16x64xf32>
    %5 = arith.truncf %4 : vector<16x64xf32> to vector<16x64xbf16>
    %c0_5 = arith.constant 0 : index
    %c0_6 = arith.constant 0 : index
    %6 = vector.load %arg2[%c0_5, %c0_6] : memref<64x640xbf16, #tpu.memory_space<vmem>>, vector<64x640xbf16>
    %cst_7 = arith.constant dense<0.000000e+00> : vector<16x640xf32>
    %7 = tpu.matmul %5, %6, %cst_7 {dimension_numbers = #tpu.dot_dimension_numbers<[1], [0], [0], [1], [0, 0, 1, 1], [], []>} : vector<16x64xbf16>, vector<64x640xbf16>, vector<16x640xf32> -> vector<16x640xf32>
    %c0_8 = arith.constant 0 : index
    %c0_9 = arith.constant 0 : index
    %8 = vector.load %arg3[%c0_8, %c0_9] : memref<1x640xf32, #tpu.memory_space<vmem>>, vector<1x640xf32>
    %9 = vector.broadcast %8 : vector<1x640xf32> to vector<16x640xf32>
    %10 = arith.addf %7, %9 : vector<16x640xf32>
    %11 = vector.extract_strided_slice %10 {offsets = [0, 0], sizes = [16, 128], strides = [1, 1]} : vector<16x640xf32> to vector<16x128xf32>
    %12 = vector.extract_strided_slice %10 {offsets = [0, 128], sizes = [16, 128], strides = [1, 1]} : vector<16x640xf32> to vector<16x128xf32>
    %13 = vector.extract_strided_slice %10 {offsets = [0, 256], sizes = [16, 128], strides = [1, 1]} : vector<16x640xf32> to vector<16x128xf32>
    %14 = vector.extract_strided_slice %10 {offsets = [0, 384], sizes = [16, 128], strides = [1, 1]} : vector<16x640xf32> to vector<16x128xf32>
    %15 = vector.extract_strided_slice %10 {offsets = [0, 512], sizes = [16, 128], strides = [1, 1]} : vector<16x640xf32> to vector<16x128xf32>
    %16 = arith.addf %12, %11 : vector<16x128xf32>
    %17 = arith.truncf %16 : vector<16x128xf32> to vector<16x128xbf16>
    %c16 = arith.constant 16 : index
    %c0_10 = arith.constant 0 : index
    %18 = vector.load %arg25[%c16, %c0_10] : memref<48x128xbf16, #tpu.memory_space<vmem>>, vector<16x128xbf16>
    tpu.vector_store %arg25[%c16, %c0_10], %17 {strides = array<i32>} : memref<48x128xbf16, #tpu.memory_space<vmem>>, vector<16x128xbf16>,
    %cst_11 = arith.constant 0.000000e+00 : f32
    %19 = vector.broadcast %cst_11 : f32 to vector<16x128xf32>
    %c16_12 = arith.constant 16 : index
    %c0_13 = arith.constant 0 : index
    %20 = vector.load %arg25[%c16_12, %c0_13] : memref<48x128xbf16, #tpu.memory_space<vmem>>, vector<16x128xbf16>
    %c0_14 = arith.constant 0 : index
    %c0_15 = arith.constant 0 : index
    %c0_16 = arith.constant 0 : index
    %21 = vector.load %arg4[%c0_14, %c0_15, %c0_16] : memref<1x128x128xbf16, #tpu.memory_space<vmem>>, vector<1x128x128xbf16>
    %22 = vector.shape_cast %21 : vector<1x128x128xbf16> to vector<128x128xbf16>
    %cst_17 = arith.constant dense<0.000000e+00> : vector<16x128xf32>
    %23 = tpu.matmul %20, %22, %cst_17 {dimension_numbers = #tpu.dot_dimension_numbers<[1], [0], [0], [1], [0, 0, 1, 1], [], []>} : vector<16x128xbf16>, vector<128x128xbf16>, vector<16x128xf32> -> vector<16x128xf32>
    %24 = arith.addf %19, %23 : vector<16x128xf32>
    %c0_18 = arith.constant 0 : index
    %c0_19 = arith.constant 0 : index
    %25 = vector.load %arg5[%c0_18, %c0_19] : memref<1x128xf32, #tpu.memory_space<vmem>>, vector<1x128xf32>
    %26 = vector.broadcast %25 : vector<1x128xf32> to vector<16x128xf32>
    %27 = arith.addf %24, %26 : vector<16x128xf32>
    %28 = arith.truncf %27 : vector<16x128xf32> to vector<16x128xbf16>
    %c16_20 = arith.constant 16 : index
    %c0_21 = arith.constant 0 : index
    %29 = vector.load %arg25[%c16_20, %c0_21] : memref<48x128xbf16, #tpu.memory_space<vmem>>, vector<16x128xbf16>
    tpu.vector_store %arg25[%c16_20, %c0_21], %28 {strides = array<i32>} : memref<48x128xbf16, #tpu.memory_space<vmem>>, vector<16x128xbf16>,
    %cst_22 = arith.constant 0.000000e+00 : f32
    %30 = vector.broadcast %cst_22 : f32 to vector<16x128xf32>
    %c15 = arith.constant 15 : index
    %c0_23 = arith.constant 0 : index
    %31 = vector.load %arg25[%c15, %c0_23] : memref<48x128xbf16, #tpu.memory_space<vmem>>, vector<16x128xbf16>
    %c0_24 = arith.constant 0 : index
    %c0_25 = arith.constant 0 : index
    %c0_26 = arith.constant 0 : index
    %32 = vector.load %arg6[%c0_24, %c0_25, %c0_26] : memref<3x128x128xbf16, #tpu.memory_space<vmem>>, vector<1x128x128xbf16>
    %33 = vector.shape_cast %32 : vector<1x128x128xbf16> to vector<128x128xbf16>
    %cst_27 = arith.constant dense<0.000000e+00> : vector<16x128xf32>
    %34 = tpu.matmul %31, %33, %cst_27 {dimension_numbers = #tpu.dot_dimension_numbers<[1], [0], [0], [1], [0, 0, 1, 1], [], []>} : vector<16x128xbf16>, vector<128x128xbf16>, vector<16x128xf32> -> vector<16x128xf32>
    %35 = arith.addf %30, %34 : vector<16x128xf32>
    %c16_28 = arith.constant 16 : index
    %c0_29 = arith.constant 0 : index
    %36 = vector.load %arg25[%c16_28, %c0_29] : memref<48x128xbf16, #tpu.memory_space<vmem>>, vector<16x128xbf16>
    %c1 = arith.constant 1 : index
    %c0_30 = arith.constant 0 : index
    %c0_31 = arith.constant 0 : index
    %37 = vector.load %arg6[%c1, %c0_30, %c0_31] : memref<3x128x128xbf16, #tpu.memory_space<vmem>>, vector<1x128x128xbf16>
    %38 = vector.shape_cast %37 : vector<1x128x128xbf16> to vector<128x128xbf16>
    %cst_32 = arith.constant dense<0.000000e+00> : vector<16x128xf32>
    %39 = tpu.matmul %36, %38, %cst_32 {dimension_numbers = #tpu.dot_dimension_numbers<[1], [0], [0], [1], [0, 0, 1, 1], [], []>} : vector<16x128xbf16>, vector<128x128xbf16>, vector<16x128xf32> -> vector<16x128xf32>
    %40 = arith.addf %35, %39 : vector<16x128xf32>
    %c17 = arith.constant 17 : index
    %c0_33 = arith.constant 0 : index
    %41 = vector.load %arg25[%c17, %c0_33] : memref<48x128xbf16, #tpu.memory_space<vmem>>, vector<16x128xbf16>
    %c2 = arith.constant 2 : index
    %c0_34 = arith.constant 0 : index
    %c0_35 = arith.constant 0 : index
    %42 = vector.load %arg6[%c2, %c0_34, %c0_35] : memref<3x128x128xbf16, #tpu.memory_space<vmem>>, vector<1x128x128xbf16>
    %43 = vector.shape_cast %42 : vector<1x128x128xbf16> to vector<128x128xbf16>
    %cst_36 = arith.constant dense<0.000000e+00> : vector<16x128xf32>
    %44 = tpu.matmul %41, %43, %cst_36 {dimension_numbers = #tpu.dot_dimension_numbers<[1], [0], [0], [1], [0, 0, 1, 1], [], []>} : vector<16x128xbf16>, vector<128x128xbf16>, vector<16x128xf32> -> vector<16x128xf32>
    %45 = arith.addf %40, %44 : vector<16x128xf32>
    %c0_37 = arith.constant 0 : index
    %c0_38 = arith.constant 0 : index
    %46 = vector.load %arg7[%c0_37, %c0_38] : memref<1x128xf32, #tpu.memory_space<vmem>>, vector<1x128xf32>
    %47 = vector.broadcast %46 : vector<1x128xf32> to vector<16x128xf32>
    %48 = arith.addf %45, %47 : vector<16x128xf32>
    %49 = arith.truncf %48 : vector<16x128xf32> to vector<16x128xbf16>
    %c16_39 = arith.constant 16 : index
    %c0_40 = arith.constant 0 : index
    %50 = vector.load %arg25[%c16_39, %c0_40] : memref<48x128xbf16, #tpu.memory_space<vmem>>, vector<16x128xbf16>
    tpu.vector_store %arg25[%c16_39, %c0_40], %49 {strides = array<i32>} : memref<48x128xbf16, #tpu.memory_space<vmem>>, vector<16x128xbf16>,
    %cst_41 = arith.constant 0.000000e+00 : f32
    %51 = vector.broadcast %cst_41 : f32 to vector<16x128xf32>
    %c13 = arith.constant 13 : index
    %c0_42 = arith.constant 0 : index
    %52 = vector.load %arg25[%c13, %c0_42] : memref<48x128xbf16, #tpu.memory_space<vmem>>, vector<16x128xbf16>
    %c0_43 = arith.constant 0 : index
    %c0_44 = arith.constant 0 : index
    %c0_45 = arith.constant 0 : index
    %53 = vector.load %arg8[%c0_43, %c0_44, %c0_45] : memref<3x128x128xbf16, #tpu.memory_space<vmem>>, vector<1x128x128xbf16>
    %54 = vector.shape_cast %53 : vector<1x128x128xbf16> to vector<128x128xbf16>
    %cst_46 = arith.constant dense<0.000000e+00> : vector<16x128xf32>
    %55 = tpu.matmul %52, %54, %cst_46 {dimension_numbers = #tpu.dot_dimension_numbers<[1], [0], [0], [1], [0, 0, 1, 1], [], []>} : vector<16x128xbf16>, vector<128x128xbf16>, vector<16x128xf32> -> vector<16x128xf32>
    %56 = arith.addf %51, %55 : vector<16x128xf32>
    %c16_47 = arith.constant 16 : index
    %c0_48 = arith.constant 0 : index
    %57 = vector.load %arg25[%c16_47, %c0_48] : memref<48x128xbf16, #tpu.memory_space<vmem>>, vector<16x128xbf16>
    %c1_49 = arith.constant 1 : index
    %c0_50 = arith.constant 0 : index
    %c0_51 = arith.constant 0 : index
    %58 = vector.load %arg8[%c1_49, %c0_50, %c0_51] : memref<3x128x128xbf16, #tpu.memory_space<vmem>>, vector<1x128x128xbf16>
    %59 = vector.shape_cast %58 : vector<1x128x128xbf16> to vector<128x128xbf16>
    %cst_52 = arith.constant dense<0.000000e+00> : vector<16x128xf32>
    %60 = tpu.matmul %57, %59, %cst_52 {dimension_numbers = #tpu.dot_dimension_numbers<[1], [0], [0], [1], [0, 0, 1, 1], [], []>} : vector<16x128xbf16>, vector<128x128xbf16>, vector<16x128xf32> -> vector<16x128xf32>
    %61 = arith.addf %56, %60 : vector<16x128xf32>
    %c19 = arith.constant 19 : index
    %c0_53 = arith.constant 0 : index
    %62 = vector.load %arg25[%c19, %c0_53] : memref<48x128xbf16, #tpu.memory_space<vmem>>, vector<16x128xbf16>
    %c2_54 = arith.constant 2 : index
    %c0_55 = arith.constant 0 : index
    %c0_56 = arith.constant 0 : index
    %63 = vector.load %arg8[%c2_54, %c0_55, %c0_56] : memref<3x128x128xbf16, #tpu.memory_space<vmem>>, vector<1x128x128xbf16>
    %64 = vector.shape_cast %63 : vector<1x128x128xbf16> to vector<128x128xbf16>
    %cst_57 = arith.constant dense<0.000000e+00> : vector<16x128xf32>
    %65 = tpu.matmul %62, %64, %cst_57 {dimension_numbers = #tpu.dot_dimension_numbers<[1], [0], [0], [1], [0, 0, 1, 1], [], []>} : vector<16x128xbf16>, vector<128x128xbf16>, vector<16x128xf32> -> vector<16x128xf32>
    %66 = arith.addf %61, %65 : vector<16x128xf32>
    %c0_58 = arith.constant 0 : index
    %c0_59 = arith.constant 0 : index
    %67 = vector.load %arg9[%c0_58, %c0_59] : memref<1x128xf32, #tpu.memory_space<vmem>>, vector<1x128xf32>
    %68 = vector.broadcast %67 : vector<1x128xf32> to vector<16x128xf32>
    %69 = arith.addf %66, %68 : vector<16x128xf32>
    %70 = arith.addf %13, %69 : vector<16x128xf32>
    %71 = arith.truncf %70 : vector<16x128xf32> to vector<16x128xbf16>
    %c16_60 = arith.constant 16 : index
    %c0_61 = arith.constant 0 : index
    %72 = vector.load %arg25[%c16_60, %c0_61] : memref<48x128xbf16, #tpu.memory_space<vmem>>, vector<16x128xbf16>
    tpu.vector_store %arg25[%c16_60, %c0_61], %71 {strides = array<i32>} : memref<48x128xbf16, #tpu.memory_space<vmem>>, vector<16x128xbf16>,
    %cst_62 = arith.constant 0.000000e+00 : f32
    %73 = vector.broadcast %cst_62 : f32 to vector<16x128xf32>
    %c16_63 = arith.constant 16 : index
    %c0_64 = arith.constant 0 : index
    %74 = vector.load %arg25[%c16_63, %c0_64] : memref<48x128xbf16, #tpu.memory_space<vmem>>, vector<16x128xbf16>
    %c0_65 = arith.constant 0 : index
    %c0_66 = arith.constant 0 : index
    %c0_67 = arith.constant 0 : index
    %75 = vector.load %arg10[%c0_65, %c0_66, %c0_67] : memref<1x128x128xbf16, #tpu.memory_space<vmem>>, vector<1x128x128xbf16>
    %76 = vector.shape_cast %75 : vector<1x128x128xbf16> to vector<128x128xbf16>
    %cst_68 = arith.constant dense<0.000000e+00> : vector<16x128xf32>
    %77 = tpu.matmul %74, %76, %cst_68 {dimension_numbers = #tpu.dot_dimension_numbers<[1], [0], [0], [1], [0, 0, 1, 1], [], []>} : vector<16x128xbf16>, vector<128x128xbf16>, vector<16x128xf32> -> vector<16x128xf32>
    %78 = arith.addf %73, %77 : vector<16x128xf32>
    %c0_69 = arith.constant 0 : index
    %c0_70 = arith.constant 0 : index
    %79 = vector.load %arg11[%c0_69, %c0_70] : memref<1x128xf32, #tpu.memory_space<vmem>>, vector<1x128xf32>
    %80 = vector.broadcast %79 : vector<1x128xf32> to vector<16x128xf32>
    %81 = arith.addf %78, %80 : vector<16x128xf32>
    %82 = arith.truncf %81 : vector<16x128xf32> to vector<16x128xbf16>
    %c16_71 = arith.constant 16 : index
    %c0_72 = arith.constant 0 : index
    %83 = vector.load %arg25[%c16_71, %c0_72] : memref<48x128xbf16, #tpu.memory_space<vmem>>, vector<16x128xbf16>
    tpu.vector_store %arg25[%c16_71, %c0_72], %82 {strides = array<i32>} : memref<48x128xbf16, #tpu.memory_space<vmem>>, vector<16x128xbf16>,
    %cst_73 = arith.constant 0.000000e+00 : f32
    %84 = vector.broadcast %cst_73 : f32 to vector<16x128xf32>
    %c14 = arith.constant 14 : index
    %c0_74 = arith.constant 0 : index
    %85 = vector.load %arg25[%c14, %c0_74] : memref<48x128xbf16, #tpu.memory_space<vmem>>, vector<16x128xbf16>
    %c0_75 = arith.constant 0 : index
    %c0_76 = arith.constant 0 : index
    %c0_77 = arith.constant 0 : index
    %86 = vector.load %arg12[%c0_75, %c0_76, %c0_77] : memref<5x128x128xbf16, #tpu.memory_space<vmem>>, vector<1x128x128xbf16>
    %87 = vector.shape_cast %86 : vector<1x128x128xbf16> to vector<128x128xbf16>
    %cst_78 = arith.constant dense<0.000000e+00> : vector<16x128xf32>
    %88 = tpu.matmul %85, %87, %cst_78 {dimension_numbers = #tpu.dot_dimension_numbers<[1], [0], [0], [1], [0, 0, 1, 1], [], []>} : vector<16x128xbf16>, vector<128x128xbf16>, vector<16x128xf32> -> vector<16x128xf32>
    %89 = arith.addf %84, %88 : vector<16x128xf32>
    %c15_79 = arith.constant 15 : index
    %c0_80 = arith.constant 0 : index
    %90 = vector.load %arg25[%c15_79, %c0_80] : memref<48x128xbf16, #tpu.memory_space<vmem>>, vector<16x128xbf16>
    %c1_81 = arith.constant 1 : index
    %c0_82 = arith.constant 0 : index
    %c0_83 = arith.constant 0 : index
    %91 = vector.load %arg12[%c1_81, %c0_82, %c0_83] : memref<5x128x128xbf16, #tpu.memory_space<vmem>>, vector<1x128x128xbf16>
    %92 = vector.shape_cast %91 : vector<1x128x128xbf16> to vector<128x128xbf16>
    %cst_84 = arith.constant dense<0.000000e+00> : vector<16x128xf32>
    %93 = tpu.matmul %90, %92, %cst_84 {dimension_numbers = #tpu.dot_dimension_numbers<[1], [0], [0], [1], [0, 0, 1, 1], [], []>} : vector<16x128xbf16>, vector<128x128xbf16>, vector<16x128xf32> -> vector<16x128xf32>
    %94 = arith.addf %89, %93 : vector<16x128xf32>
    %c16_85 = arith.constant 16 : index
    %c0_86 = arith.constant 0 : index
    %95 = vector.load %arg25[%c16_85, %c0_86] : memref<48x128xbf16, #tpu.memory_space<vmem>>, vector<16x128xbf16>
    %c2_87 = arith.constant 2 : index
    %c0_88 = arith.constant 0 : index
    %c0_89 = arith.constant 0 : index
    %96 = vector.load %arg12[%c2_87, %c0_88, %c0_89] : memref<5x128x128xbf16, #tpu.memory_space<vmem>>, vector<1x128x128xbf16>
    %97 = vector.shape_cast %96 : vector<1x128x128xbf16> to vector<128x128xbf16>
    %cst_90 = arith.constant dense<0.000000e+00> : vector<16x128xf32>
    %98 = tpu.matmul %95, %97, %cst_90 {dimension_numbers = #tpu.dot_dimension_numbers<[1], [0], [0], [1], [0, 0, 1, 1], [], []>} : vector<16x128xbf16>, vector<128x128xbf16>, vector<16x128xf32> -> vector<16x128xf32>
    %99 = arith.addf %94, %98 : vector<16x128xf32>
    %c17_91 = arith.constant 17 : index
    %c0_92 = arith.constant 0 : index
    %100 = vector.load %arg25[%c17_91, %c0_92] : memref<48x128xbf16, #tpu.memory_space<vmem>>, vector<16x128xbf16>
    %c3 = arith.constant 3 : index
    %c0_93 = arith.constant 0 : index
    %c0_94 = arith.constant 0 : index
    %101 = vector.load %arg12[%c3, %c0_93, %c0_94] : memref<5x128x128xbf16, #tpu.memory_space<vmem>>, vector<1x128x128xbf16>
    %102 = vector.shape_cast %101 : vector<1x128x128xbf16> to vector<128x128xbf16>
    %cst_95 = arith.constant dense<0.000000e+00> : vector<16x128xf32>
    %103 = tpu.matmul %100, %102, %cst_95 {dimension_numbers = #tpu.dot_dimension_numbers<[1], [0], [0], [1], [0, 0, 1, 1], [], []>} : vector<16x128xbf16>, vector<128x128xbf16>, vector<16x128xf32> -> vector<16x128xf32>
    %104 = arith.addf %99, %103 : vector<16x128xf32>
    %c18 = arith.constant 18 : index
    %c0_96 = arith.constant 0 : index
    %105 = vector.load %arg25[%c18, %c0_96] : memref<48x128xbf16, #tpu.memory_space<vmem>>, vector<16x128xbf16>
    %c4 = arith.constant 4 : index
    %c0_97 = arith.constant 0 : index
    %c0_98 = arith.constant 0 : index
    %106 = vector.load %arg12[%c4, %c0_97, %c0_98] : memref<5x128x128xbf16, #tpu.memory_space<vmem>>, vector<1x128x128xbf16>
    %107 = vector.shape_cast %106 : vector<1x128x128xbf16> to vector<128x128xbf16>
    %cst_99 = arith.constant dense<0.000000e+00> : vector<16x128xf32>
    %108 = tpu.matmul %105, %107, %cst_99 {dimension_numbers = #tpu.dot_dimension_numbers<[1], [0], [0], [1], [0, 0, 1, 1], [], []>} : vector<16x128xbf16>, vector<128x128xbf16>, vector<16x128xf32> -> vector<16x128xf32>
    %109 = arith.addf %104, %108 : vector<16x128xf32>
    %c0_100 = arith.constant 0 : index
    %c0_101 = arith.constant 0 : index
    %110 = vector.load %arg13[%c0_100, %c0_101] : memref<1x128xf32, #tpu.memory_space<vmem>>, vector<1x128xf32>
    %111 = vector.broadcast %110 : vector<1x128xf32> to vector<16x128xf32>
    %112 = arith.addf %109, %111 : vector<16x128xf32>
    %113 = arith.truncf %112 : vector<16x128xf32> to vector<16x128xbf16>
    %c16_102 = arith.constant 16 : index
    %c0_103 = arith.constant 0 : index
    %114 = vector.load %arg25[%c16_102, %c0_103] : memref<48x128xbf16, #tpu.memory_space<vmem>>, vector<16x128xbf16>
    tpu.vector_store %arg25[%c16_102, %c0_103], %113 {strides = array<i32>} : memref<48x128xbf16, #tpu.memory_space<vmem>>, vector<16x128xbf16>,
    %cst_104 = arith.constant 0.000000e+00 : f32
    %115 = vector.broadcast %cst_104 : f32 to vector<16x128xf32>
    %c11 = arith.constant 11 : index
    %c0_105 = arith.constant 0 : index
    %116 = vector.load %arg25[%c11, %c0_105] : memref<48x128xbf16, #tpu.memory_space<vmem>>, vector<16x128xbf16>
    %c0_106 = arith.constant 0 : index
    %c0_107 = arith.constant 0 : index
    %c0_108 = arith.constant 0 : index
    %117 = vector.load %arg14[%c0_106, %c0_107, %c0_108] : memref<3x128x128xbf16, #tpu.memory_space<vmem>>, vector<1x128x128xbf16>
    %118 = vector.shape_cast %117 : vector<1x128x128xbf16> to vector<128x128xbf16>
    %cst_109 = arith.constant dense<0.000000e+00> : vector<16x128xf32>
    %119 = tpu.matmul %116, %118, %cst_109 {dimension_numbers = #tpu.dot_dimension_numbers<[1], [0], [0], [1], [0, 0, 1, 1], [], []>} : vector<16x128xbf16>, vector<128x128xbf16>, vector<16x128xf32> -> vector<16x128xf32>
    %120 = arith.addf %115, %119 : vector<16x128xf32>
    %c16_110 = arith.constant 16 : index
    %c0_111 = arith.constant 0 : index
    %121 = vector.load %arg25[%c16_110, %c0_111] : memref<48x128xbf16, #tpu.memory_space<vmem>>, vector<16x128xbf16>
    %c1_112 = arith.constant 1 : index
    %c0_113 = arith.constant 0 : index
    %c0_114 = arith.constant 0 : index
    %122 = vector.load %arg14[%c1_112, %c0_113, %c0_114] : memref<3x128x128xbf16, #tpu.memory_space<vmem>>, vector<1x128x128xbf16>
    %123 = vector.shape_cast %122 : vector<1x128x128xbf16> to vector<128x128xbf16>
    %cst_115 = arith.constant dense<0.000000e+00> : vector<16x128xf32>
    %124 = tpu.matmul %121, %123, %cst_115 {dimension_numbers = #tpu.dot_dimension_numbers<[1], [0], [0], [1], [0, 0, 1, 1], [], []>} : vector<16x128xbf16>, vector<128x128xbf16>, vector<16x128xf32> -> vector<16x128xf32>
    %125 = arith.addf %120, %124 : vector<16x128xf32>
    %c21 = arith.constant 21 : index
    %c0_116 = arith.constant 0 : index
    %126 = vector.load %arg25[%c21, %c0_116] : memref<48x128xbf16, #tpu.memory_space<vmem>>, vector<16x128xbf16>
    %c2_117 = arith.constant 2 : index
    %c0_118 = arith.constant 0 : index
    %c0_119 = arith.constant 0 : index
    %127 = vector.load %arg14[%c2_117, %c0_118, %c0_119] : memref<3x128x128xbf16, #tpu.memory_space<vmem>>, vector<1x128x128xbf16>
    %128 = vector.shape_cast %127 : vector<1x128x128xbf16> to vector<128x128xbf16>
    %cst_120 = arith.constant dense<0.000000e+00> : vector<16x128xf32>
    %129 = tpu.matmul %126, %128, %cst_120 {dimension_numbers = #tpu.dot_dimension_numbers<[1], [0], [0], [1], [0, 0, 1, 1], [], []>} : vector<16x128xbf16>, vector<128x128xbf16>, vector<16x128xf32> -> vector<16x128xf32>
    %130 = arith.addf %125, %129 : vector<16x128xf32>
    %c0_121 = arith.constant 0 : index
    %c0_122 = arith.constant 0 : index
    %131 = vector.load %arg15[%c0_121, %c0_122] : memref<1x128xf32, #tpu.memory_space<vmem>>, vector<1x128xf32>
    %132 = vector.broadcast %131 : vector<1x128xf32> to vector<16x128xf32>
    %133 = arith.addf %130, %132 : vector<16x128xf32>
    %134 = arith.addf %14, %133 : vector<16x128xf32>
    %135 = arith.truncf %134 : vector<16x128xf32> to vector<16x128xbf16>
    %c16_123 = arith.constant 16 : index
    %c0_124 = arith.constant 0 : index
    %136 = vector.load %arg25[%c16_123, %c0_124] : memref<48x128xbf16, #tpu.memory_space<vmem>>, vector<16x128xbf16>
    tpu.vector_store %arg25[%c16_123, %c0_124], %135 {strides = array<i32>} : memref<48x128xbf16, #tpu.memory_space<vmem>>, vector<16x128xbf16>,
    %cst_125 = arith.constant 0.000000e+00 : f32
    %137 = vector.broadcast %cst_125 : f32 to vector<16x128xf32>
    %c16_126 = arith.constant 16 : index
    %c0_127 = arith.constant 0 : index
    %138 = vector.load %arg25[%c16_126, %c0_127] : memref<48x128xbf16, #tpu.memory_space<vmem>>, vector<16x128xbf16>
    %c0_128 = arith.constant 0 : index
    %c0_129 = arith.constant 0 : index
    %c0_130 = arith.constant 0 : index
    %139 = vector.load %arg16[%c0_128, %c0_129, %c0_130] : memref<1x128x128xbf16, #tpu.memory_space<vmem>>, vector<1x128x128xbf16>
    %140 = vector.shape_cast %139 : vector<1x128x128xbf16> to vector<128x128xbf16>
    %cst_131 = arith.constant dense<0.000000e+00> : vector<16x128xf32>
    %141 = tpu.matmul %138, %140, %cst_131 {dimension_numbers = #tpu.dot_dimension_numbers<[1], [0], [0], [1], [0, 0, 1, 1], [], []>} : vector<16x128xbf16>, vector<128x128xbf16>, vector<16x128xf32> -> vector<16x128xf32>
    %142 = arith.addf %137, %141 : vector<16x128xf32>
    %c0_132 = arith.constant 0 : index
    %c0_133 = arith.constant 0 : index
    %143 = vector.load %arg17[%c0_132, %c0_133] : memref<1x128xf32, #tpu.memory_space<vmem>>, vector<1x128xf32>
    %144 = vector.broadcast %143 : vector<1x128xf32> to vector<16x128xf32>
    %145 = arith.addf %142, %144 : vector<16x128xf32>
    %146 = arith.truncf %145 : vector<16x128xf32> to vector<16x128xbf16>
    %c16_134 = arith.constant 16 : index
    %c0_135 = arith.constant 0 : index
    %147 = vector.load %arg25[%c16_134, %c0_135] : memref<48x128xbf16, #tpu.memory_space<vmem>>, vector<16x128xbf16>
    tpu.vector_store %arg25[%c16_134, %c0_135], %146 {strides = array<i32>} : memref<48x128xbf16, #tpu.memory_space<vmem>>, vector<16x128xbf16>,
    %cst_136 = arith.constant 0.000000e+00 : f32
    %148 = vector.broadcast %cst_136 : f32 to vector<16x128xf32>
    %c13_137 = arith.constant 13 : index
    %c0_138 = arith.constant 0 : index
    %149 = vector.load %arg25[%c13_137, %c0_138] : memref<48x128xbf16, #tpu.memory_space<vmem>>, vector<16x128xbf16>
    %c0_139 = arith.constant 0 : index
    %c0_140 = arith.constant 0 : index
    %c0_141 = arith.constant 0 : index
    %150 = vector.load %arg18[%c0_139, %c0_140, %c0_141] : memref<7x128x128xbf16, #tpu.memory_space<vmem>>, vector<1x128x128xbf16>
    %151 = vector.shape_cast %150 : vector<1x128x128xbf16> to vector<128x128xbf16>
    %cst_142 = arith.constant dense<0.000000e+00> : vector<16x128xf32>
    %152 = tpu.matmul %149, %151, %cst_142 {dimension_numbers = #tpu.dot_dimension_numbers<[1], [0], [0], [1], [0, 0, 1, 1], [], []>} : vector<16x128xbf16>, vector<128x128xbf16>, vector<16x128xf32> -> vector<16x128xf32>
    %153 = arith.addf %148, %152 : vector<16x128xf32>
    %c14_143 = arith.constant 14 : index
    %c0_144 = arith.constant 0 : index
    %154 = vector.load %arg25[%c14_143, %c0_144] : memref<48x128xbf16, #tpu.memory_space<vmem>>, vector<16x128xbf16>
    %c1_145 = arith.constant 1 : index
    %c0_146 = arith.constant 0 : index
    %c0_147 = arith.constant 0 : index
    %155 = vector.load %arg18[%c1_145, %c0_146, %c0_147] : memref<7x128x128xbf16, #tpu.memory_space<vmem>>, vector<1x128x128xbf16>
    %156 = vector.shape_cast %155 : vector<1x128x128xbf16> to vector<128x128xbf16>
    %cst_148 = arith.constant dense<0.000000e+00> : vector<16x128xf32>
    %157 = tpu.matmul %154, %156, %cst_148 {dimension_numbers = #tpu.dot_dimension_numbers<[1], [0], [0], [1], [0, 0, 1, 1], [], []>} : vector<16x128xbf16>, vector<128x128xbf16>, vector<16x128xf32> -> vector<16x128xf32>
    %158 = arith.addf %153, %157 : vector<16x128xf32>
    %c15_149 = arith.constant 15 : index
    %c0_150 = arith.constant 0 : index
    %159 = vector.load %arg25[%c15_149, %c0_150] : memref<48x128xbf16, #tpu.memory_space<vmem>>, vector<16x128xbf16>
    %c2_151 = arith.constant 2 : index
    %c0_152 = arith.constant 0 : index
    %c0_153 = arith.constant 0 : index
    %160 = vector.load %arg18[%c2_151, %c0_152, %c0_153] : memref<7x128x128xbf16, #tpu.memory_space<vmem>>, vector<1x128x128xbf16>
    %161 = vector.shape_cast %160 : vector<1x128x128xbf16> to vector<128x128xbf16>
    %cst_154 = arith.constant dense<0.000000e+00> : vector<16x128xf32>
    %162 = tpu.matmul %159, %161, %cst_154 {dimension_numbers = #tpu.dot_dimension_numbers<[1], [0], [0], [1], [0, 0, 1, 1], [], []>} : vector<16x128xbf16>, vector<128x128xbf16>, vector<16x128xf32> -> vector<16x128xf32>
    %163 = arith.addf %158, %162 : vector<16x128xf32>
    %c16_155 = arith.constant 16 : index
    %c0_156 = arith.constant 0 : index
    %164 = vector.load %arg25[%c16_155, %c0_156] : memref<48x128xbf16, #tpu.memory_space<vmem>>, vector<16x128xbf16>
    %c3_157 = arith.constant 3 : index
    %c0_158 = arith.constant 0 : index
    %c0_159 = arith.constant 0 : index
    %165 = vector.load %arg18[%c3_157, %c0_158, %c0_159] : memref<7x128x128xbf16, #tpu.memory_space<vmem>>, vector<1x128x128xbf16>
    %166 = vector.shape_cast %165 : vector<1x128x128xbf16> to vector<128x128xbf16>
    %cst_160 = arith.constant dense<0.000000e+00> : vector<16x128xf32>
    %167 = tpu.matmul %164, %166, %cst_160 {dimension_numbers = #tpu.dot_dimension_numbers<[1], [0], [0], [1], [0, 0, 1, 1], [], []>} : vector<16x128xbf16>, vector<128x128xbf16>, vector<16x128xf32> -> vector<16x128xf32>
    %168 = arith.addf %163, %167 : vector<16x128xf32>
    %c17_161 = arith.constant 17 : index
    %c0_162 = arith.constant 0 : index
    %169 = vector.load %arg25[%c17_161, %c0_162] : memref<48x128xbf16, #tpu.memory_space<vmem>>, vector<16x128xbf16>
    %c4_163 = arith.constant 4 : index
    %c0_164 = arith.constant 0 : index
    %c0_165 = arith.constant 0 : index
    %170 = vector.load %arg18[%c4_163, %c0_164, %c0_165] : memref<7x128x128xbf16, #tpu.memory_space<vmem>>, vector<1x128x128xbf16>
    %171 = vector.shape_cast %170 : vector<1x128x128xbf16> to vector<128x128xbf16>
    %cst_166 = arith.constant dense<0.000000e+00> : vector<16x128xf32>
    %172 = tpu.matmul %169, %171, %cst_166 {dimension_numbers = #tpu.dot_dimension_numbers<[1], [0], [0], [1], [0, 0, 1, 1], [], []>} : vector<16x128xbf16>, vector<128x128xbf16>, vector<16x128xf32> -> vector<16x128xf32>
    %173 = arith.addf %168, %172 : vector<16x128xf32>
    %c18_167 = arith.constant 18 : index
    %c0_168 = arith.constant 0 : index
    %174 = vector.load %arg25[%c18_167, %c0_168] : memref<48x128xbf16, #tpu.memory_space<vmem>>, vector<16x128xbf16>
    %c5 = arith.constant 5 : index
    %c0_169 = arith.constant 0 : index
    %c0_170 = arith.constant 0 : index
    %175 = vector.load %arg18[%c5, %c0_169, %c0_170] : memref<7x128x128xbf16, #tpu.memory_space<vmem>>, vector<1x128x128xbf16>
    %176 = vector.shape_cast %175 : vector<1x128x128xbf16> to vector<128x128xbf16>
    %cst_171 = arith.constant dense<0.000000e+00> : vector<16x128xf32>
    %177 = tpu.matmul %174, %176, %cst_171 {dimension_numbers = #tpu.dot_dimension_numbers<[1], [0], [0], [1], [0, 0, 1, 1], [], []>} : vector<16x128xbf16>, vector<128x128xbf16>, vector<16x128xf32> -> vector<16x128xf32>
    %178 = arith.addf %173, %177 : vector<16x128xf32>
    %c19_172 = arith.constant 19 : index
    %c0_173 = arith.constant 0 : index
    %179 = vector.load %arg25[%c19_172, %c0_173] : memref<48x128xbf16, #tpu.memory_space<vmem>>, vector<16x128xbf16>
    %c6 = arith.constant 6 : index
    %c0_174 = arith.constant 0 : index
    %c0_175 = arith.constant 0 : index
    %180 = vector.load %arg18[%c6, %c0_174, %c0_175] : memref<7x128x128xbf16, #tpu.memory_space<vmem>>, vector<1x128x128xbf16>
    %181 = vector.shape_cast %180 : vector<1x128x128xbf16> to vector<128x128xbf16>
    %cst_176 = arith.constant dense<0.000000e+00> : vector<16x128xf32>
    %182 = tpu.matmul %179, %181, %cst_176 {dimension_numbers = #tpu.dot_dimension_numbers<[1], [0], [0], [1], [0, 0, 1, 1], [], []>} : vector<16x128xbf16>, vector<128x128xbf16>, vector<16x128xf32> -> vector<16x128xf32>
    %183 = arith.addf %178, %182 : vector<16x128xf32>
    %c0_177 = arith.constant 0 : index
    %c0_178 = arith.constant 0 : index
    %184 = vector.load %arg19[%c0_177, %c0_178] : memref<1x128xf32, #tpu.memory_space<vmem>>, vector<1x128xf32>
    %185 = vector.broadcast %184 : vector<1x128xf32> to vector<16x128xf32>
    %186 = arith.addf %183, %185 : vector<16x128xf32>
    %187 = arith.truncf %186 : vector<16x128xf32> to vector<16x128xbf16>
    %c16_179 = arith.constant 16 : index
    %c0_180 = arith.constant 0 : index
    %188 = vector.load %arg25[%c16_179, %c0_180] : memref<48x128xbf16, #tpu.memory_space<vmem>>, vector<16x128xbf16>
    tpu.vector_store %arg25[%c16_179, %c0_180], %187 {strides = array<i32>} : memref<48x128xbf16, #tpu.memory_space<vmem>>, vector<16x128xbf16>,
    %cst_181 = arith.constant 0.000000e+00 : f32
    %189 = vector.broadcast %cst_181 : f32 to vector<16x128xf32>
    %c9 = arith.constant 9 : index
    %c0_182 = arith.constant 0 : index
    %190 = vector.load %arg25[%c9, %c0_182] : memref<48x128xbf16, #tpu.memory_space<vmem>>, vector<16x128xbf16>
    %c0_183 = arith.constant 0 : index
    %c0_184 = arith.constant 0 : index
    %c0_185 = arith.constant 0 : index
    %191 = vector.load %arg20[%c0_183, %c0_184, %c0_185] : memref<3x128x128xbf16, #tpu.memory_space<vmem>>, vector<1x128x128xbf16>
    %192 = vector.shape_cast %191 : vector<1x128x128xbf16> to vector<128x128xbf16>
    %cst_186 = arith.constant dense<0.000000e+00> : vector<16x128xf32>
    %193 = tpu.matmul %190, %192, %cst_186 {dimension_numbers = #tpu.dot_dimension_numbers<[1], [0], [0], [1], [0, 0, 1, 1], [], []>} : vector<16x128xbf16>, vector<128x128xbf16>, vector<16x128xf32> -> vector<16x128xf32>
    %194 = arith.addf %189, %193 : vector<16x128xf32>
    %c16_187 = arith.constant 16 : index
    %c0_188 = arith.constant 0 : index
    %195 = vector.load %arg25[%c16_187, %c0_188] : memref<48x128xbf16, #tpu.memory_space<vmem>>, vector<16x128xbf16>
    %c1_189 = arith.constant 1 : index
    %c0_190 = arith.constant 0 : index
    %c0_191 = arith.constant 0 : index
    %196 = vector.load %arg20[%c1_189, %c0_190, %c0_191] : memref<3x128x128xbf16, #tpu.memory_space<vmem>>, vector<1x128x128xbf16>
    %197 = vector.shape_cast %196 : vector<1x128x128xbf16> to vector<128x128xbf16>
    %cst_192 = arith.constant dense<0.000000e+00> : vector<16x128xf32>
    %198 = tpu.matmul %195, %197, %cst_192 {dimension_numbers = #tpu.dot_dimension_numbers<[1], [0], [0], [1], [0, 0, 1, 1], [], []>} : vector<16x128xbf16>, vector<128x128xbf16>, vector<16x128xf32> -> vector<16x128xf32>
    %199 = arith.addf %194, %198 : vector<16x128xf32>
    %c23 = arith.constant 23 : index
    %c0_193 = arith.constant 0 : index
    %200 = vector.load %arg25[%c23, %c0_193] : memref<48x128xbf16, #tpu.memory_space<vmem>>, vector<16x128xbf16>
    %c2_194 = arith.constant 2 : index
    %c0_195 = arith.constant 0 : index
    %c0_196 = arith.constant 0 : index
    %201 = vector.load %arg20[%c2_194, %c0_195, %c0_196] : memref<3x128x128xbf16, #tpu.memory_space<vmem>>, vector<1x128x128xbf16>
    %202 = vector.shape_cast %201 : vector<1x128x128xbf16> to vector<128x128xbf16>
    %cst_197 = arith.constant dense<0.000000e+00> : vector<16x128xf32>
    %203 = tpu.matmul %200, %202, %cst_197 {dimension_numbers = #tpu.dot_dimension_numbers<[1], [0], [0], [1], [0, 0, 1, 1], [], []>} : vector<16x128xbf16>, vector<128x128xbf16>, vector<16x128xf32> -> vector<16x128xf32>
    %204 = arith.addf %199, %203 : vector<16x128xf32>
    %c0_198 = arith.constant 0 : index
    %c0_199 = arith.constant 0 : index
    %205 = vector.load %arg21[%c0_198, %c0_199] : memref<1x128xf32, #tpu.memory_space<vmem>>, vector<1x128xf32>
    %206 = vector.broadcast %205 : vector<1x128xf32> to vector<16x128xf32>
    %207 = arith.addf %204, %206 : vector<16x128xf32>
    %cst_200 = arith.constant 0.000000e+00 : f32
    %208 = vector.broadcast %cst_200 : f32 to vector<16x128xf32>
    %209 = arith.truncf %11 : vector<16x128xf32> to vector<16x128xbf16>
    %c16_201 = arith.constant 16 : index
    %c0_202 = arith.constant 0 : index
    %210 = vector.load %arg25[%c16_201, %c0_202] : memref<48x128xbf16, #tpu.memory_space<vmem>>, vector<16x128xbf16>
    tpu.vector_store %arg25[%c16_201, %c0_202], %209 {strides = array<i32>} : memref<48x128xbf16, #tpu.memory_space<vmem>>, vector<16x128xbf16>,
    %c15_203 = arith.constant 15 : index
    %c0_204 = arith.constant 0 : index
    %211 = vector.load %arg25[%c15_203, %c0_204] : memref<48x128xbf16, #tpu.memory_space<vmem>>, vector<16x128xbf16>
    %c0_205 = arith.constant 0 : index
    %c0_206 = arith.constant 0 : index
    %c0_207 = arith.constant 0 : index
    %212 = vector.load %arg22[%c0_205, %c0_206, %c0_207] : memref<12x128x128xbf16, #tpu.memory_space<vmem>>, vector<1x128x128xbf16>
    %213 = vector.shape_cast %212 : vector<1x128x128xbf16> to vector<128x128xbf16>
    %cst_208 = arith.constant dense<0.000000e+00> : vector<16x128xf32>
    %214 = tpu.matmul %211, %213, %cst_208 {dimension_numbers = #tpu.dot_dimension_numbers<[1], [0], [0], [1], [0, 0, 1, 1], [], []>} : vector<16x128xbf16>, vector<128x128xbf16>, vector<16x128xf32> -> vector<16x128xf32>
    %215 = arith.addf %208, %214 : vector<16x128xf32>
    %c16_209 = arith.constant 16 : index
    %c0_210 = arith.constant 0 : index
    %216 = vector.load %arg25[%c16_209, %c0_210] : memref<48x128xbf16, #tpu.memory_space<vmem>>, vector<16x128xbf16>
    %c1_211 = arith.constant 1 : index
    %c0_212 = arith.constant 0 : index
    %c0_213 = arith.constant 0 : index
    %217 = vector.load %arg22[%c1_211, %c0_212, %c0_213] : memref<12x128x128xbf16, #tpu.memory_space<vmem>>, vector<1x128x128xbf16>
    %218 = vector.shape_cast %217 : vector<1x128x128xbf16> to vector<128x128xbf16>
    %cst_214 = arith.constant dense<0.000000e+00> : vector<16x128xf32>
    %219 = tpu.matmul %216, %218, %cst_214 {dimension_numbers = #tpu.dot_dimension_numbers<[1], [0], [0], [1], [0, 0, 1, 1], [], []>} : vector<16x128xbf16>, vector<128x128xbf16>, vector<16x128xf32> -> vector<16x128xf32>
    %220 = arith.addf %215, %219 : vector<16x128xf32>
    %c17_215 = arith.constant 17 : index
    %c0_216 = arith.constant 0 : index
    %221 = vector.load %arg25[%c17_215, %c0_216] : memref<48x128xbf16, #tpu.memory_space<vmem>>, vector<16x128xbf16>
    %c2_217 = arith.constant 2 : index
    %c0_218 = arith.constant 0 : index
    %c0_219 = arith.constant 0 : index
    %222 = vector.load %arg22[%c2_217, %c0_218, %c0_219] : memref<12x128x128xbf16, #tpu.memory_space<vmem>>, vector<1x128x128xbf16>
    %223 = vector.shape_cast %222 : vector<1x128x128xbf16> to vector<128x128xbf16>
    %cst_220 = arith.constant dense<0.000000e+00> : vector<16x128xf32>
    %224 = tpu.matmul %221, %223, %cst_220 {dimension_numbers = #tpu.dot_dimension_numbers<[1], [0], [0], [1], [0, 0, 1, 1], [], []>} : vector<16x128xbf16>, vector<128x128xbf16>, vector<16x128xf32> -> vector<16x128xf32>
    %225 = arith.addf %220, %224 : vector<16x128xf32>
    %226 = arith.truncf %69 : vector<16x128xf32> to vector<16x128xbf16>
    %c16_221 = arith.constant 16 : index
    %c0_222 = arith.constant 0 : index
    %227 = vector.load %arg25[%c16_221, %c0_222] : memref<48x128xbf16, #tpu.memory_space<vmem>>, vector<16x128xbf16>
    tpu.vector_store %arg25[%c16_221, %c0_222], %226 {strides = array<i32>} : memref<48x128xbf16, #tpu.memory_space<vmem>>, vector<16x128xbf16>,
    %c15_223 = arith.constant 15 : index
    %c0_224 = arith.constant 0 : index
    %228 = vector.load %arg25[%c15_223, %c0_224] : memref<48x128xbf16, #tpu.memory_space<vmem>>, vector<16x128xbf16>
    %c3_225 = arith.constant 3 : index
    %c0_226 = arith.constant 0 : index
    %c0_227 = arith.constant 0 : index
    %229 = vector.load %arg22[%c3_225, %c0_226, %c0_227] : memref<12x128x128xbf16, #tpu.memory_space<vmem>>, vector<1x128x128xbf16>
    %230 = vector.shape_cast %229 : vector<1x128x128xbf16> to vector<128x128xbf16>
    %cst_228 = arith.constant dense<0.000000e+00> : vector<16x128xf32>
    %231 = tpu.matmul %228, %230, %cst_228 {dimension_numbers = #tpu.dot_dimension_numbers<[1], [0], [0], [1], [0, 0, 1, 1], [], []>} : vector<16x128xbf16>, vector<128x128xbf16>, vector<16x128xf32> -> vector<16x128xf32>
    %232 = arith.addf %225, %231 : vector<16x128xf32>
    %c16_229 = arith.constant 16 : index
    %c0_230 = arith.constant 0 : index
    %233 = vector.load %arg25[%c16_229, %c0_230] : memref<48x128xbf16, #tpu.memory_space<vmem>>, vector<16x128xbf16>
    %c4_231 = arith.constant 4 : index
    %c0_232 = arith.constant 0 : index
    %c0_233 = arith.constant 0 : index
    %234 = vector.load %arg22[%c4_231, %c0_232, %c0_233] : memref<12x128x128xbf16, #tpu.memory_space<vmem>>, vector<1x128x128xbf16>
    %235 = vector.shape_cast %234 : vector<1x128x128xbf16> to vector<128x128xbf16>
    %cst_234 = arith.constant dense<0.000000e+00> : vector<16x128xf32>
    %236 = tpu.matmul %233, %235, %cst_234 {dimension_numbers = #tpu.dot_dimension_numbers<[1], [0], [0], [1], [0, 0, 1, 1], [], []>} : vector<16x128xbf16>, vector<128x128xbf16>, vector<16x128xf32> -> vector<16x128xf32>
    %237 = arith.addf %232, %236 : vector<16x128xf32>
    %c17_235 = arith.constant 17 : index
    %c0_236 = arith.constant 0 : index
    %238 = vector.load %arg25[%c17_235, %c0_236] : memref<48x128xbf16, #tpu.memory_space<vmem>>, vector<16x128xbf16>
    %c5_237 = arith.constant 5 : index
    %c0_238 = arith.constant 0 : index
    %c0_239 = arith.constant 0 : index
    %239 = vector.load %arg22[%c5_237, %c0_238, %c0_239] : memref<12x128x128xbf16, #tpu.memory_space<vmem>>, vector<1x128x128xbf16>
    %240 = vector.shape_cast %239 : vector<1x128x128xbf16> to vector<128x128xbf16>
    %cst_240 = arith.constant dense<0.000000e+00> : vector<16x128xf32>
    %241 = tpu.matmul %238, %240, %cst_240 {dimension_numbers = #tpu.dot_dimension_numbers<[1], [0], [0], [1], [0, 0, 1, 1], [], []>} : vector<16x128xbf16>, vector<128x128xbf16>, vector<16x128xf32> -> vector<16x128xf32>
    %242 = arith.addf %237, %241 : vector<16x128xf32>
    %243 = arith.truncf %133 : vector<16x128xf32> to vector<16x128xbf16>
    %c16_241 = arith.constant 16 : index
    %c0_242 = arith.constant 0 : index
    %244 = vector.load %arg25[%c16_241, %c0_242] : memref<48x128xbf16, #tpu.memory_space<vmem>>, vector<16x128xbf16>
    tpu.vector_store %arg25[%c16_241, %c0_242], %243 {strides = array<i32>} : memref<48x128xbf16, #tpu.memory_space<vmem>>, vector<16x128xbf16>,
    %c15_243 = arith.constant 15 : index
    %c0_244 = arith.constant 0 : index
    %245 = vector.load %arg25[%c15_243, %c0_244] : memref<48x128xbf16, #tpu.memory_space<vmem>>, vector<16x128xbf16>
    %c6_245 = arith.constant 6 : index
    %c0_246 = arith.constant 0 : index
    %c0_247 = arith.constant 0 : index
    %246 = vector.load %arg22[%c6_245, %c0_246, %c0_247] : memref<12x128x128xbf16, #tpu.memory_space<vmem>>, vector<1x128x128xbf16>
    %247 = vector.shape_cast %246 : vector<1x128x128xbf16> to vector<128x128xbf16>
    %cst_248 = arith.constant dense<0.000000e+00> : vector<16x128xf32>
    %248 = tpu.matmul %245, %247, %cst_248 {dimension_numbers = #tpu.dot_dimension_numbers<[1], [0], [0], [1], [0, 0, 1, 1], [], []>} : vector<16x128xbf16>, vector<128x128xbf16>, vector<16x128xf32> -> vector<16x128xf32>
    %249 = arith.addf %242, %248 : vector<16x128xf32>
    %c16_249 = arith.constant 16 : index
    %c0_250 = arith.constant 0 : index
    %250 = vector.load %arg25[%c16_249, %c0_250] : memref<48x128xbf16, #tpu.memory_space<vmem>>, vector<16x128xbf16>
    %c7 = arith.constant 7 : index
    %c0_251 = arith.constant 0 : index
    %c0_252 = arith.constant 0 : index
    %251 = vector.load %arg22[%c7, %c0_251, %c0_252] : memref<12x128x128xbf16, #tpu.memory_space<vmem>>, vector<1x128x128xbf16>
    %252 = vector.shape_cast %251 : vector<1x128x128xbf16> to vector<128x128xbf16>
    %cst_253 = arith.constant dense<0.000000e+00> : vector<16x128xf32>
    %253 = tpu.matmul %250, %252, %cst_253 {dimension_numbers = #tpu.dot_dimension_numbers<[1], [0], [0], [1], [0, 0, 1, 1], [], []>} : vector<16x128xbf16>, vector<128x128xbf16>, vector<16x128xf32> -> vector<16x128xf32>
    %254 = arith.addf %249, %253 : vector<16x128xf32>
    %c17_254 = arith.constant 17 : index
    %c0_255 = arith.constant 0 : index
    %255 = vector.load %arg25[%c17_254, %c0_255] : memref<48x128xbf16, #tpu.memory_space<vmem>>, vector<16x128xbf16>
    %c8 = arith.constant 8 : index
    %c0_256 = arith.constant 0 : index
    %c0_257 = arith.constant 0 : index
    %256 = vector.load %arg22[%c8, %c0_256, %c0_257] : memref<12x128x128xbf16, #tpu.memory_space<vmem>>, vector<1x128x128xbf16>
    %257 = vector.shape_cast %256 : vector<1x128x128xbf16> to vector<128x128xbf16>
    %cst_258 = arith.constant dense<0.000000e+00> : vector<16x128xf32>
    %258 = tpu.matmul %255, %257, %cst_258 {dimension_numbers = #tpu.dot_dimension_numbers<[1], [0], [0], [1], [0, 0, 1, 1], [], []>} : vector<16x128xbf16>, vector<128x128xbf16>, vector<16x128xf32> -> vector<16x128xf32>
    %259 = arith.addf %254, %258 : vector<16x128xf32>
    %260 = arith.truncf %207 : vector<16x128xf32> to vector<16x128xbf16>
    %c16_259 = arith.constant 16 : index
    %c0_260 = arith.constant 0 : index
    %261 = vector.load %arg25[%c16_259, %c0_260] : memref<48x128xbf16, #tpu.memory_space<vmem>>, vector<16x128xbf16>
    tpu.vector_store %arg25[%c16_259, %c0_260], %260 {strides = array<i32>} : memref<48x128xbf16, #tpu.memory_space<vmem>>, vector<16x128xbf16>,
    %c15_261 = arith.constant 15 : index
    %c0_262 = arith.constant 0 : index
    %262 = vector.load %arg25[%c15_261, %c0_262] : memref<48x128xbf16, #tpu.memory_space<vmem>>, vector<16x128xbf16>
    %c9_263 = arith.constant 9 : index
    %c0_264 = arith.constant 0 : index
    %c0_265 = arith.constant 0 : index
    %263 = vector.load %arg22[%c9_263, %c0_264, %c0_265] : memref<12x128x128xbf16, #tpu.memory_space<vmem>>, vector<1x128x128xbf16>
    %264 = vector.shape_cast %263 : vector<1x128x128xbf16> to vector<128x128xbf16>
    %cst_266 = arith.constant dense<0.000000e+00> : vector<16x128xf32>
    %265 = tpu.matmul %262, %264, %cst_266 {dimension_numbers = #tpu.dot_dimension_numbers<[1], [0], [0], [1], [0, 0, 1, 1], [], []>} : vector<16x128xbf16>, vector<128x128xbf16>, vector<16x128xf32> -> vector<16x128xf32>
    %266 = arith.addf %259, %265 : vector<16x128xf32>
    %c16_267 = arith.constant 16 : index
    %c0_268 = arith.constant 0 : index
    %267 = vector.load %arg25[%c16_267, %c0_268] : memref<48x128xbf16, #tpu.memory_space<vmem>>, vector<16x128xbf16>
    %c10 = arith.constant 10 : index
    %c0_269 = arith.constant 0 : index
    %c0_270 = arith.constant 0 : index
    %268 = vector.load %arg22[%c10, %c0_269, %c0_270] : memref<12x128x128xbf16, #tpu.memory_space<vmem>>, vector<1x128x128xbf16>
    %269 = vector.shape_cast %268 : vector<1x128x128xbf16> to vector<128x128xbf16>
    %cst_271 = arith.constant dense<0.000000e+00> : vector<16x128xf32>
    %270 = tpu.matmul %267, %269, %cst_271 {dimension_numbers = #tpu.dot_dimension_numbers<[1], [0], [0], [1], [0, 0, 1, 1], [], []>} : vector<16x128xbf16>, vector<128x128xbf16>, vector<16x128xf32> -> vector<16x128xf32>
    %271 = arith.addf %266, %270 : vector<16x128xf32>
    %c17_272 = arith.constant 17 : index
    %c0_273 = arith.constant 0 : index
    %272 = vector.load %arg25[%c17_272, %c0_273] : memref<48x128xbf16, #tpu.memory_space<vmem>>, vector<16x128xbf16>
    %c11_274 = arith.constant 11 : index
    %c0_275 = arith.constant 0 : index
    %c0_276 = arith.constant 0 : index
    %273 = vector.load %arg22[%c11_274, %c0_275, %c0_276] : memref<12x128x128xbf16, #tpu.memory_space<vmem>>, vector<1x128x128xbf16>
    %274 = vector.shape_cast %273 : vector<1x128x128xbf16> to vector<128x128xbf16>
    %cst_277 = arith.constant dense<0.000000e+00> : vector<16x128xf32>
    %275 = tpu.matmul %272, %274, %cst_277 {dimension_numbers = #tpu.dot_dimension_numbers<[1], [0], [0], [1], [0, 0, 1, 1], [], []>} : vector<16x128xbf16>, vector<128x128xbf16>, vector<16x128xf32> -> vector<16x128xf32>
    %276 = arith.addf %271, %275 : vector<16x128xf32>
    %c0_278 = arith.constant 0 : index
    %c0_279 = arith.constant 0 : index
    %277 = vector.load %arg23[%c0_278, %c0_279] : memref<1x128xf32, #tpu.memory_space<vmem>>, vector<1x128xf32>
    %278 = vector.broadcast %277 : vector<1x128xf32> to vector<16x128xf32>
    %279 = arith.addf %276, %278 : vector<16x128xf32>
    %280 = arith.addf %279, %15 : vector<16x128xf32>
    %cst_280 = arith.constant 0.000000e+00 : f32
    %281 = vector.broadcast %cst_280 : f32 to vector<16x128xf32>
    %282 = arith.maximumf %280, %281 : vector<16x128xf32>
    %283 = vector.shape_cast %282 : vector<16x128xf32> to vector<1x16x128xf32>
    %c0_281 = arith.constant 0 : index
    %c0_282 = arith.constant 0 : index
    %c0_283 = arith.constant 0 : index
    %284 = vector.load %arg24[%c0_281, %c0_282, %c0_283] : memref<1x16x128xf32, #tpu.memory_space<vmem>>, vector<1x16x128xf32>
    tpu.vector_store %arg24[%c0_281, %c0_282, %c0_283], %283 {strides = array<i32>} : memref<1x16x128xf32, #tpu.memory_space<vmem>>, vector<1x16x128xf32>,
    return
  }
  func.func @transform_0(%arg0: i32) -> (i32, i32, i32) {
    %c0_i32 = arith.constant 0 : i32
    %c0_i32_0 = arith.constant 0 : i32
    %c0_i32_1 = arith.constant 0 : i32
    return %arg0, %c0_i32, %c0_i32_0 : i32, i32, i32
  }
  func.func @transform_1(%arg0: i32) -> (i32, i32) {
    %c0_i32 = arith.constant 0 : i32
    %c0_i32_0 = arith.constant 0 : i32
    %c0_i32_1 = arith.constant 0 : i32
    return %c0_i32, %c0_i32_0 : i32, i32
  }
  func.func @transform_2(%arg0: i32) -> (i32, i32) {
    %c0_i32 = arith.constant 0 : i32
    %c0_i32_0 = arith.constant 0 : i32
    %c0_i32_1 = arith.constant 0 : i32
    return %c0_i32, %c0_i32_0 : i32, i32
  }
  func.func @transform_3(%arg0: i32) -> (i32, i32, i32) {
    %c0_i32 = arith.constant 0 : i32
    %c0_i32_0 = arith.constant 0 : i32
    %c0_i32_1 = arith.constant 0 : i32
    %c0_i32_2 = arith.constant 0 : i32
    return %c0_i32, %c0_i32_0, %c0_i32_1 : i32, i32, i32
  }
  func.func @transform_4(%arg0: i32) -> (i32, i32) {
    %c0_i32 = arith.constant 0 : i32
    %c0_i32_0 = arith.constant 0 : i32
    %c0_i32_1 = arith.constant 0 : i32
    return %c0_i32, %c0_i32_0 : i32, i32
  }
  func.func @transform_5(%arg0: i32) -> (i32, i32, i32) {
    %c0_i32 = arith.constant 0 : i32
    %c0_i32_0 = arith.constant 0 : i32
    %c0_i32_1 = arith.constant 0 : i32
    %c0_i32_2 = arith.constant 0 : i32
    return %c0_i32, %c0_i32_0, %c0_i32_1 : i32, i32, i32
  }
  func.func @transform_6(%arg0: i32) -> (i32, i32) {
    %c0_i32 = arith.constant 0 : i32
    %c0_i32_0 = arith.constant 0 : i32
    %c0_i32_1 = arith.constant 0 : i32
    return %c0_i32, %c0_i32_0 : i32, i32
  }
  func.func @transform_7(%arg0: i32) -> (i32, i32, i32) {
    %c0_i32 = arith.constant 0 : i32
    %c0_i32_0 = arith.constant 0 : i32
    %c0_i32_1 = arith.constant 0 : i32
    %c0_i32_2 = arith.constant 0 : i32
    return %c0_i32, %c0_i32_0, %c0_i32_1 : i32, i32, i32
  }
  func.func @transform_8(%arg0: i32) -> (i32, i32) {
    %c0_i32 = arith.constant 0 : i32
    %c0_i32_0 = arith.constant 0 : i32
    %c0_i32_1 = arith.constant 0 : i32
    return %c0_i32, %c0_i32_0 : i32, i32
  }
  func.func @transform_9(%arg0: i32) -> (i32, i32, i32) {
    %c0_i32 = arith.constant 0 : i32
    %c0_i32_0 = arith.constant 0 : i32
    %c0_i32_1 = arith.constant 0 : i32
    %c0_i32_2 = arith.constant 0 : i32
    return %c0_i32, %c0_i32_0, %c0_i32_1 : i32, i32, i32
  }
  func.func @transform_10(%arg0: i32) -> (i32, i32) {
    %c0_i32 = arith.constant 0 : i32
    %c0_i32_0 = arith.constant 0 : i32
    %c0_i32_1 = arith.constant 0 : i32
    return %c0_i32, %c0_i32_0 : i32, i32
  }
  func.func @transform_11(%arg0: i32) -> (i32, i32, i32) {
    %c0_i32 = arith.constant 0 : i32
    %c0_i32_0 = arith.constant 0 : i32
    %c0_i32_1 = arith.constant 0 : i32
    %c0_i32_2 = arith.constant 0 : i32
    return %c0_i32, %c0_i32_0, %c0_i32_1 : i32, i32, i32
  }
  func.func @transform_12(%arg0: i32) -> (i32, i32) {
    %c0_i32 = arith.constant 0 : i32
    %c0_i32_0 = arith.constant 0 : i32
    %c0_i32_1 = arith.constant 0 : i32
    return %c0_i32, %c0_i32_0 : i32, i32
  }
  func.func @transform_13(%arg0: i32) -> (i32, i32, i32) {
    %c0_i32 = arith.constant 0 : i32
    %c0_i32_0 = arith.constant 0 : i32
    %c0_i32_1 = arith.constant 0 : i32
    %c0_i32_2 = arith.constant 0 : i32
    return %c0_i32, %c0_i32_0, %c0_i32_1 : i32, i32, i32
  }
  func.func @transform_14(%arg0: i32) -> (i32, i32) {
    %c0_i32 = arith.constant 0 : i32
    %c0_i32_0 = arith.constant 0 : i32
    %c0_i32_1 = arith.constant 0 : i32
    return %c0_i32, %c0_i32_0 : i32, i32
  }
  func.func @transform_15(%arg0: i32) -> (i32, i32, i32) {
    %c0_i32 = arith.constant 0 : i32
    %c0_i32_0 = arith.constant 0 : i32
    %c0_i32_1 = arith.constant 0 : i32
    %c0_i32_2 = arith.constant 0 : i32
    return %c0_i32, %c0_i32_0, %c0_i32_1 : i32, i32, i32
  }
  func.func @transform_16(%arg0: i32) -> (i32, i32) {
    %c0_i32 = arith.constant 0 : i32
    %c0_i32_0 = arith.constant 0 : i32
    %c0_i32_1 = arith.constant 0 : i32
    return %c0_i32, %c0_i32_0 : i32, i32
  }
  func.func @transform_17(%arg0: i32) -> (i32, i32, i32) {
    %c0_i32 = arith.constant 0 : i32
    %c0_i32_0 = arith.constant 0 : i32
    %c0_i32_1 = arith.constant 0 : i32
    %c0_i32_2 = arith.constant 0 : i32
    return %c0_i32, %c0_i32_0, %c0_i32_1 : i32, i32, i32
  }
  func.func @transform_18(%arg0: i32) -> (i32, i32) {
    %c0_i32 = arith.constant 0 : i32
    %c0_i32_0 = arith.constant 0 : i32
    %c0_i32_1 = arith.constant 0 : i32
    return %c0_i32, %c0_i32_0 : i32, i32
  }
  func.func @transform_19(%arg0: i32) -> (i32, i32, i32) {
    %c0_i32 = arith.constant 0 : i32
    %c0_i32_0 = arith.constant 0 : i32
    %c0_i32_1 = arith.constant 0 : i32
    %c0_i32_2 = arith.constant 0 : i32
    return %c0_i32, %c0_i32_0, %c0_i32_1 : i32, i32, i32
  }
  func.func @transform_20(%arg0: i32) -> (i32, i32) {
    %c0_i32 = arith.constant 0 : i32
    %c0_i32_0 = arith.constant 0 : i32
    %c0_i32_1 = arith.constant 0 : i32
    return %c0_i32, %c0_i32_0 : i32, i32
  }
  func.func @transform_21(%arg0: i32) -> (i32, i32, i32) {
    %c0_i32 = arith.constant 0 : i32
    %c0_i32_0 = arith.constant 0 : i32
    %c0_i32_1 = arith.constant 0 : i32
    %c0_i32_2 = arith.constant 0 : i32
    return %c0_i32, %c0_i32_0, %c0_i32_1 : i32, i32, i32
  }
  func.func @transform_22(%arg0: i32) -> (i32, i32) {
    %c0_i32 = arith.constant 0 : i32
    %c0_i32_0 = arith.constant 0 : i32
    %c0_i32_1 = arith.constant 0 : i32
    return %c0_i32, %c0_i32_0 : i32, i32
  }
  func.func @transform_23(%arg0: i32) -> (i32, i32, i32) {
    %c0_i32 = arith.constant 0 : i32
    %c0_i32_0 = arith.constant 0 : i32
    %c0_i32_1 = arith.constant 0 : i32
    return %arg0, %c0_i32, %c0_i32_0 : i32, i32, i32
  }
}

</mosaic_0001>

<llo_original>
// kernel: raspm_forward.1
$region0: #{raspm_forward.1}
  #allocation0 [shape = 'u32[]', space=smem, size = 0x4, offset = 0x4, fixed_abs, tag = 'smem constant byte address 0x4 - core index']
  #allocation1 [shape = 'u32[72,128]{1,0:T(1,128)}', space=vmem, size = 0x9000, scoped, tag = 'internal scratch']
  #allocation2 [shape = 'bf16[48,128]{1,0:T(8,128)(2,1)}', space=vmem, size = 0x3000, scoped, tag = 'scratch operand']
  %s0 = inlined_call_operand.vmem [shape: f32[2,16,64], index: 0, kind: input, shape index: {}]
  %s1 = inlined_call_operand.hbm [shape: bf16[64,640], index: 1, kind: input, shape index: {}]
  %s2 = inlined_call_operand.vmem [shape: f32[1,640], index: 2, kind: input, shape index: {}]
  %s3 = inlined_call_operand.vmem [shape: bf16[1,128,128], index: 3, kind: input, shape index: {}]
  %s4 = inlined_call_operand.vmem [shape: f32[1,128], index: 4, kind: input, shape index: {}]
  %s5 = inlined_call_operand.hbm [shape: bf16[3,128,128], index: 5, kind: input, shape index: {}]
  %s6 = inlined_call_operand.vmem [shape: f32[1,128], index: 6, kind: input, shape index: {}]
  %s7 = inlined_call_operand.hbm [shape: bf16[3,128,128], index: 7, kind: input, shape index: {}]
  %s8 = inlined_call_operand.vmem [shape: f32[1,128], index: 8, kind: input, shape index: {}]
  %s9 = inlined_call_operand.hbm [shape: bf16[1,128,128], index: 9, kind: input, shape index: {}]
  %s10 = inlined_call_operand.vmem [shape: f32[1,128], index: 10, kind: input, shape index: {}]
  %s11 = inlined_call_operand.vmem [shape: bf16[5,128,128], index: 11, kind: input, shape index: {}]
  %s12 = inlined_call_operand.vmem [shape: f32[1,128], index: 12, kind: input, shape index: {}]
  %s13 = inlined_call_operand.hbm [shape: bf16[3,128,128], index: 13, kind: input, shape index: {}]
  %s14 = inlined_call_operand.vmem [shape: f32[1,128], index: 14, kind: input, shape index: {}]
  %s15 = inlined_call_operand.hbm [shape: bf16[1,128,128], index: 15, kind: input, shape index: {}]
  %s16 = inlined_call_operand.vmem [shape: f32[1,128], index: 16, kind: input, shape index: {}]
  %s17 = inlined_call_operand.hbm [shape: bf16[7,128,128], index: 17, kind: input, shape index: {}]
  %s18 = inlined_call_operand.vmem [shape: f32[1,128], index: 18, kind: input, shape index: {}]
  %s19 = inlined_call_operand.hbm [shape: bf16[3,128,128], index: 19, kind: input, shape index: {}]
  %s20 = inlined_call_operand.vmem [shape: f32[1,128], index: 20, kind: input, shape index: {}]
  %s21 = inlined_call_operand.hbm [shape: bf16[12,128,128], index: 21, kind: input, shape index: {}]
  %s22 = inlined_call_operand.vmem [shape: f32[1,128], index: 22, kind: input, shape index: {}]
  %s23 = inlined_call_operand.vmem [shape: f32[2,16,128], index: 23, kind: output, shape index: {}]
  %s24 = sld [smem:[#allocation0]]
  $region161: #{raspm_forward.1} parent=0
    _
  %s26 = ssub.s32 1, %s24
  %s27 = scalar_select 0, %s26, %s24
  $region1: #{raspm_forward.1} parent=0
    #allocation3 [shape = 'u8[81920]{0}', space=vmem, size = 0x14000, scoped, tag = 'input window, operand 1, single buffered']
    #allocation4 [shape = 's32[2]{0}', space=sflag, size = 0x8, scoped, tag = 'scoped memory for raspm_forward.1']
    #allocation5 [shape = 'u8[98304]{0}', space=vmem, size = 0x18000, scoped, tag = 'input window, operand 5, single buffered']
    #allocation6 [shape = 's32[1]{0}', space=sflag, size = 0x4, scoped, tag = 'scoped memory for raspm_forward.1']
    #allocation7 [shape = 'u8[98304]{0}', space=vmem, size = 0x18000, scoped, tag = 'input window, operand 7, single buffered']
    #allocation8 [shape = 'u8[32768]{0}', space=vmem, size = 0x8000, scoped, tag = 'input window, operand 9, single buffered']
    #allocation9 [shape = 's32[1]{0}', space=sflag, size = 0x4, scoped, tag = 'scoped memory for raspm_forward.1']
    #allocation10 [shape = 'u8[98304]{0}', space=vmem, size = 0x18000, scoped, tag = 'input window, operand 13, single buffered']
    #allocation11 [shape = 'u8[32768]{0}', space=vmem, size = 0x8000, scoped, tag = 'input window, operand 15, single buffered']
    #allocation12 [shape = 's32[1]{0}', space=sflag, size = 0x4, scoped, tag = 'scoped memory for raspm_forward.1']
    #allocation13 [shape = 'u8[229376]{0}', space=vmem, size = 0x38000, scoped, tag = 'input window, operand 17, single buffered']
    #allocation14 [shape = 'u8[98304]{0}', space=vmem, size = 0x18000, scoped, tag = 'input window, operand 19, single buffered']
    #allocation15 [shape = 's32[1]{0}', space=sflag, size = 0x4, scoped, tag = 'scoped memory for raspm_forward.1']
    #allocation16 [shape = 'u8[393216]{0}', space=vmem, size = 0x60000, scoped, tag = 'input window, operand 21, single buffered']
    %28 = vsyncpa [#allocation4], 0
    %29 = vsyncpa [#allocation6], 0
    %30 = vsyncpa [#allocation9], 0
    %31 = vsyncpa [#allocation12], 0
    %32 = vsyncpa [#allocation15], 0
    loop: start=0, step=1, limit=4
    $region2: #{raspm_forward.1} parent=1 // loop_pre_header
      _
    $region3: #{raspm_forward.1} parent=1 // loop_header
      %s34 = sphi 0, %s38
      %p35 = scmp.ge.s32.totalorder %s34, 4
      %s44 = sphi 0, %s46
      %s47 = sphi 0, %s44
      %s48 = sphi 0, %s47
      %s64 = sphi 0, %s48
      %s68 = sphi 0, %s68
      %s70 = sphi 0, %s68
      %s71 = sphi 0, %s70
      %s85 = sphi 0, %s71
      %s89 = sphi 0, %s89
      %s91 = sphi 0, %s89
      %s92 = sphi 0, %s91
      %s106 = sphi 0, %s92
      %s110 = sphi 0, %s110
      %s112 = sphi 0, %s110
      %s113 = sphi 0, %s112
      %s127 = sphi 0, %s113
      %s131 = sphi 0, %s131
      %s133 = sphi 0, %s131
      %s134 = sphi 0, %s133
      %s148 = sphi 0, %s134
      %s152 = sphi 0, %s152
      %s154 = sphi 0, %s152
      %s155 = sphi 0, %s154
      %s169 = sphi 0, %s155
      %s173 = sphi 0, %s173
      %s175 = sphi 0, %s173
      %s176 = sphi 0, %s175
      %s190 = sphi 0, %s176
      %s194 = sphi 0, %s194
      %s196 = sphi 0, %s194
      %s197 = sphi 0, %s196
      %s211 = sphi 0, %s197
      %s215 = sphi 0, %s215
      %s217 = sphi 0, %s215
      %s218 = sphi 0, %s217
      %s232 = sphi 0, %s218
      %s236 = sphi 0, %s236
      %s238 = sphi 0, %s236
      %s239 = sphi 0, %s238
      %s253 = sphi 0, %s239
      %s257 = sphi 0, %s257
      %s259 = sphi 0, %s257
      %s260 = sphi 0, %s259
      %s274 = sphi 0, %s260
      %s278 = sphi 0, %s278
      %s280 = sphi 0, %s278
      %s281 = sphi 0, %s280
      %s295 = sphi 0, %s281
      %s299 = sphi 0, %s299
      %s301 = sphi 0, %s299
      %s302 = sphi 0, %s301
      %s316 = sphi 0, %s302
      %s320 = sphi 0, %s320
      %s322 = sphi 0, %s320
      %s323 = sphi 0, %s322
      %s337 = sphi 0, %s323
      %s341 = sphi 0, %s341
      %s343 = sphi 0, %s341
      %s344 = sphi 0, %s343
      %s358 = sphi 0, %s344
      %s362 = sphi 0, %s362
      %s364 = sphi 0, %s362
      %s365 = sphi 0, %s364
      %s379 = sphi 0, %s365
      %s383 = sphi 0, %s383
      %s385 = sphi 0, %s383
      %s386 = sphi 0, %s385
      %s400 = sphi 0, %s386
      %s404 = sphi 0, %s404
      %s406 = sphi 0, %s404
      %s407 = sphi 0, %s406
      %s421 = sphi 0, %s407
      %s425 = sphi 0, %s425
      %s427 = sphi 0, %s425
      %s428 = sphi 0, %s427
      %s442 = sphi 0, %s428
      %s446 = sphi 0, %s446
      %s448 = sphi 0, %s446
      %s449 = sphi 0, %s448
      %s463 = sphi 0, %s449
      %s467 = sphi 0, %s467
      %s469 = sphi 0, %s467
      %s470 = sphi 0, %s469
      %s484 = sphi 0, %s470
      %s488 = sphi 0, %s488
      %s490 = sphi 0, %s488
      %s491 = sphi 0, %s490
      %s505 = sphi 0, %s491
      %s509 = sphi 0, %s509
      %s511 = sphi 0, %s509
      %s512 = sphi 0, %s511
      %s526 = sphi 0, %s512
      %s532 = sphi 0, %s534
      %s535 = sphi 0, %s532
      %s536 = sphi 0, %s535
      %s552 = sphi 0, %s536
    $region4: #{raspm_forward.1} parent=1 // loop_header_branch
      %37 = sbr.rel (%p35) target = $region8
    $region5: #{raspm_forward.1} parent=1 // loop_body
      %s39 = ssub.s32 %s34, 1
      %s40 = ssub.s32 %s34, 2
      %s41 = sadd.s32 %s34, 1
      %s42 = ssub.s32 %s34, %s41
      %p43 = scmp.eq.s32.totalorder %s42, 0
      %s45 = sadd.s32 %s44, 1
      %s46 = scalar_select %p43, %s44, %s45
      %p49 = pneg %p43
      %p50 = scmp.eq.s32.totalorder %s34, 1
      %p51 = por %p49, %p50
      %p52 = scmp.ne.s32.totalorder %s44, %s47
      %p53 = scmp.eq.s32.totalorder %s34, 0
      %p54 = por %p52, %p53
      %p55 = scmp.ne.s32.totalorder %s44, %s47
      %p56 = scmp.eq.s32.totalorder %s39, 1
      %p57 = por %p55, %p56
      %p58 = scmp.ne.s32.totalorder %s47, %s48
      %p59 = scmp.eq.s32.totalorder %s39, 0
      %p60 = por %p58, %p59
      %p61 = scmp.ne.s32.totalorder %s47, %s48
      %p62 = scmp.eq.s32.totalorder %s40, 1
      %p63 = por %p61, %p62
      %p65 = scmp.ne.s32.totalorder %s48, %s64
      %p66 = scmp.eq.s32.totalorder %s40, 0
      %p67 = por %p65, %p66
      %s69 = sadd.s32 %s68, 1
      %p72 = scmp.eq.s32.totalorder %s34, 1
      %p73 = scmp.ne.s32.totalorder %s68, %s70
      %p74 = scmp.eq.s32.totalorder %s34, 0
      %p75 = por %p73, %p74
      %p76 = scmp.ne.s32.totalorder %s68, %s70
      %p77 = scmp.eq.s32.totalorder %s39, 1
      %p78 = por %p76, %p77
      %p79 = scmp.ne.s32.totalorder %s70, %s71
      %p80 = scmp.eq.s32.totalorder %s39, 0
      %p81 = por %p79, %p80
      %p82 = scmp.ne.s32.totalorder %s70, %s71
      %p83 = scmp.eq.s32.totalorder %s40, 1
      %p84 = por %p82, %p83
      %p86 = scmp.ne.s32.totalorder %s71, %s85
      %p87 = scmp.eq.s32.totalorder %s40, 0
      %p88 = por %p86, %p87
      %s90 = sadd.s32 %s89, 1
      %p93 = scmp.eq.s32.totalorder %s34, 1
      %p94 = scmp.ne.s32.totalorder %s89, %s91
      %p95 = scmp.eq.s32.totalorder %s34, 0
      %p96 = por %p94, %p95
      %p97 = scmp.ne.s32.totalorder %s89, %s91
      %p98 = scmp.eq.s32.totalorder %s39, 1
      %p99 = por %p97, %p98
      %p100 = scmp.ne.s32.totalorder %s91, %s92
      %p101 = scmp.eq.s32.totalorder %s39, 0
      %p102 = por %p100, %p101
      %p103 = scmp.ne.s32.totalorder %s91, %s92
      %p104 = scmp.eq.s32.totalorder %s40, 1
      %p105 = por %p103, %p104
      %p107 = scmp.ne.s32.totalorder %s92, %s106
      %p108 = scmp.eq.s32.totalorder %s40, 0
      %p109 = por %p107, %p108
      %s111 = sadd.s32 %s110, 1
      %p114 = scmp.eq.s32.totalorder %s34, 1
      %p115 = scmp.ne.s32.totalorder %s110, %s112
      %p116 = scmp.eq.s32.totalorder %s34, 0
      %p117 = por %p115, %p116
      %p118 = scmp.ne.s32.totalorder %s110, %s112
      %p119 = scmp.eq.s32.totalorder %s39, 1
      %p120 = por %p118, %p119
      %p121 = scmp.ne.s32.totalorder %s112, %s113
      %p122 = scmp.eq.s32.totalorder %s39, 0
      %p123 = por %p121, %p122
      %p124 = scmp.ne.s32.totalorder %s112, %s113
      %p125 = scmp.eq.s32.totalorder %s40, 1
      %p126 = por %p124, %p125
      %p128 = scmp.ne.s32.totalorder %s113, %s127
      %p129 = scmp.eq.s32.totalorder %s40, 0
      %p130 = por %p128, %p129
      %s132 = sadd.s32 %s131, 1
      %p135 = scmp.eq.s32.totalorder %s34, 1
      %p136 = scmp.ne.s32.totalorder %s131, %s133
      %p137 = scmp.eq.s32.totalorder %s34, 0
      %p138 = por %p136, %p137
      %p139 = scmp.ne.s32.totalorder %s131, %s133
      %p140 = scmp.eq.s32.totalorder %s39, 1
      %p141 = por %p139, %p140
      %p142 = scmp.ne.s32.totalorder %s133, %s134
      %p143 = scmp.eq.s32.totalorder %s39, 0
      %p144 = por %p142, %p143
      %p145 = scmp.ne.s32.totalorder %s133, %s134
      %p146 = scmp.eq.s32.totalorder %s40, 1
      %p147 = por %p145, %p146
      %p149 = scmp.ne.s32.totalorder %s134, %s148
      %p150 = scmp.eq.s32.totalorder %s40, 0
      %p151 = por %p149, %p150
      %s153 = sadd.s32 %s152, 1
      %p156 = scmp.eq.s32.totalorder %s34, 1
      %p157 = scmp.ne.s32.totalorder %s152, %s154
      %p158 = scmp.eq.s32.totalorder %s34, 0
      %p159 = por %p157, %p158
      %p160 = scmp.ne.s32.totalorder %s152, %s154
      %p161 = scmp.eq.s32.totalorder %s39, 1
      %p162 = por %p160, %p161
      %p163 = scmp.ne.s32.totalorder %s154, %s155
      %p164 = scmp.eq.s32.totalorder %s39, 0
      %p165 = por %p163, %p164
      %p166 = scmp.ne.s32.totalorder %s154, %s155
      %p167 = scmp.eq.s32.totalorder %s40, 1
      %p168 = por %p166, %p167
      %p170 = scmp.ne.s32.totalorder %s155, %s169
      %p171 = scmp.eq.s32.totalorder %s40, 0
      %p172 = por %p170, %p171
      %s174 = sadd.s32 %s173, 1
      %p177 = scmp.eq.s32.totalorder %s34, 1
      %p178 = scmp.ne.s32.totalorder %s173, %s175
      %p179 = scmp.eq.s32.totalorder %s34, 0
      %p180 = por %p178, %p179
      %p181 = scmp.ne.s32.totalorder %s173, %s175
      %p182 = scmp.eq.s32.totalorder %s39, 1
      %p183 = por %p181, %p182
      %p184 = scmp.ne.s32.totalorder %s175, %s176
      %p185 = scmp.eq.s32.totalorder %s39, 0
      %p186 = por %p184, %p185
      %p187 = scmp.ne.s32.totalorder %s175, %s176
      %p188 = scmp.eq.s32.totalorder %s40, 1
      %p189 = por %p187, %p188
      %p191 = scmp.ne.s32.totalorder %s176, %s190
      %p192 = scmp.eq.s32.totalorder %s40, 0
      %p193 = por %p191, %p192
      %s195 = sadd.s32 %s194, 1
      %p198 = scmp.eq.s32.totalorder %s34, 1
      %p199 = scmp.ne.s32.totalorder %s194, %s196
      %p200 = scmp.eq.s32.totalorder %s34, 0
      %p201 = por %p199, %p200
      %p202 = scmp.ne.s32.totalorder %s194, %s196
      %p203 = scmp.eq.s32.totalorder %s39, 1
      %p204 = por %p202, %p203
      %p205 = scmp.ne.s32.totalorder %s196, %s197
      %p206 = scmp.eq.s32.totalorder %s39, 0
      %p207 = por %p205, %p206
      %p208 = scmp.ne.s32.totalorder %s196, %s197
      %p209 = scmp.eq.s32.totalorder %s40, 1
      %p210 = por %p208, %p209
      %p212 = scmp.ne.s32.totalorder %s197, %s211
      %p213 = scmp.eq.s32.totalorder %s40, 0
      %p214 = por %p212, %p213
      %s216 = sadd.s32 %s215, 1
      %p219 = scmp.eq.s32.totalorder %s34, 1
      %p220 = scmp.ne.s32.totalorder %s215, %s217
      %p221 = scmp.eq.s32.totalorder %s34, 0
      %p222 = por %p220, %p221
      %p223 = scmp.ne.s32.totalorder %s215, %s217
      %p224 = scmp.eq.s32.totalorder %s39, 1
      %p225 = por %p223, %p224
      %p226 = scmp.ne.s32.totalorder %s217, %s218
      %p227 = scmp.eq.s32.totalorder %s39, 0
      %p228 = por %p226, %p227
      %p229 = scmp.ne.s32.totalorder %s217, %s218
      %p230 = scmp.eq.s32.totalorder %s40, 1
      %p231 = por %p229, %p230
      %p233 = scmp.ne.s32.totalorder %s218, %s232
      %p234 = scmp.eq.s32.totalorder %s40, 0
      %p235 = por %p233, %p234
      %s237 = sadd.s32 %s236, 1
      %p240 = scmp.eq.s32.totalorder %s34, 1
      %p241 = scmp.ne.s32.totalorder %s236, %s238
      %p242 = scmp.eq.s32.totalorder %s34, 0
      %p243 = por %p241, %p242
      %p244 = scmp.ne.s32.totalorder %s236, %s238
      %p245 = scmp.eq.s32.totalorder %s39, 1
      %p246 = por %p244, %p245
      %p247 = scmp.ne.s32.totalorder %s238, %s239
      %p248 = scmp.eq.s32.totalorder %s39, 0
      %p249 = por %p247, %p248
      %p250 = scmp.ne.s32.totalorder %s238, %s239
      %p251 = scmp.eq.s32.totalorder %s40, 1
      %p252 = por %p250, %p251
      %p254 = scmp.ne.s32.totalorder %s239, %s253
      %p255 = scmp.eq.s32.totalorder %s40, 0
      %p256 = por %p254, %p255
      %s258 = sadd.s32 %s257, 1
      %p261 = scmp.eq.s32.totalorder %s34, 1
      %p262 = scmp.ne.s32.totalorder %s257, %s259
      %p263 = scmp.eq.s32.totalorder %s34, 0
      %p264 = por %p262, %p263
      %p265 = scmp.ne.s32.totalorder %s257, %s259
      %p266 = scmp.eq.s32.totalorder %s39, 1
      %p267 = por %p265, %p266
      %p268 = scmp.ne.s32.totalorder %s259, %s260
      %p269 = scmp.eq.s32.totalorder %s39, 0
      %p270 = por %p268, %p269
      %p271 = scmp.ne.s32.totalorder %s259, %s260
      %p272 = scmp.eq.s32.totalorder %s40, 1
      %p273 = por %p271, %p272
      %p275 = scmp.ne.s32.totalorder %s260, %s274
      %p276 = scmp.eq.s32.totalorder %s40, 0
      %p277 = por %p275, %p276
      %s279 = sadd.s32 %s278, 1
      %p282 = scmp.eq.s32.totalorder %s34, 1
      %p283 = scmp.ne.s32.totalorder %s278, %s280
      %p284 = scmp.eq.s32.totalorder %s34, 0
      %p285 = por %p283, %p284
      %p286 = scmp.ne.s32.totalorder %s278, %s280
      %p287 = scmp.eq.s32.totalorder %s39, 1
      %p288 = por %p286, %p287
      %p289 = scmp.ne.s32.totalorder %s280, %s281
      %p290 = scmp.eq.s32.totalorder %s39, 0
      %p291 = por %p289, %p290
      %p292 = scmp.ne.s32.totalorder %s280, %s281
      %p293 = scmp.eq.s32.totalorder %s40, 1
      %p294 = por %p292, %p293
      %p296 = scmp.ne.s32.totalorder %s281, %s295
      %p297 = scmp.eq.s32.totalorder %s40, 0
      %p298 = por %p296, %p297
      %s300 = sadd.s32 %s299, 1
      %p303 = scmp.eq.s32.totalorder %s34, 1
      %p304 = scmp.ne.s32.totalorder %s299, %s301
      %p305 = scmp.eq.s32.totalorder %s34, 0
      %p306 = por %p304, %p305
      %p307 = scmp.ne.s32.totalorder %s299, %s301
      %p308 = scmp.eq.s32.totalorder %s39, 1
      %p309 = por %p307, %p308
      %p310 = scmp.ne.s32.totalorder %s301, %s302
      %p311 = scmp.eq.s32.totalorder %s39, 0
      %p312 = por %p310, %p311
      %p313 = scmp.ne.s32.totalorder %s301, %s302
      %p314 = scmp.eq.s32.totalorder %s40, 1
      %p315 = por %p313, %p314
      %p317 = scmp.ne.s32.totalorder %s302, %s316
      %p318 = scmp.eq.s32.totalorder %s40, 0
      %p319 = por %p317, %p318
      %s321 = sadd.s32 %s320, 1
      %p324 = scmp.eq.s32.totalorder %s34, 1
      %p325 = scmp.ne.s32.totalorder %s320, %s322
      %p326 = scmp.eq.s32.totalorder %s34, 0
      %p327 = por %p325, %p326
      %p328 = scmp.ne.s32.totalorder %s320, %s322
      %p329 = scmp.eq.s32.totalorder %s39, 1
      %p330 = por %p328, %p329
      %p331 = scmp.ne.s32.totalorder %s322, %s323
      %p332 = scmp.eq.s32.totalorder %s39, 0
      %p333 = por %p331, %p332
      %p334 = scmp.ne.s32.totalorder %s322, %s323
      %p335 = scmp.eq.s32.totalorder %s40, 1
      %p336 = por %p334, %p335
      %p338 = scmp.ne.s32.totalorder %s323, %s337
      %p339 = scmp.eq.s32.totalorder %s40, 0
      %p340 = por %p338, %p339
      %s342 = sadd.s32 %s341, 1
      %p345 = scmp.eq.s32.totalorder %s34, 1
      %p346 = scmp.ne.s32.totalorder %s341, %s343
      %p347 = scmp.eq.s32.totalorder %s34, 0
      %p348 = por %p346, %p347
      %p349 = scmp.ne.s32.totalorder %s341, %s343
      %p350 = scmp.eq.s32.totalorder %s39, 1
      %p351 = por %p349, %p350
      %p352 = scmp.ne.s32.totalorder %s343, %s344
      %p353 = scmp.eq.s32.totalorder %s39, 0
      %p354 = por %p352, %p353
      %p355 = scmp.ne.s32.totalorder %s343, %s344
      %p356 = scmp.eq.s32.totalorder %s40, 1
      %p357 = por %p355, %p356
      %p359 = scmp.ne.s32.totalorder %s344, %s358
      %p360 = scmp.eq.s32.totalorder %s40, 0
      %p361 = por %p359, %p360
      %s363 = sadd.s32 %s362, 1
      %p366 = scmp.eq.s32.totalorder %s34, 1
      %p367 = scmp.ne.s32.totalorder %s362, %s364
      %p368 = scmp.eq.s32.totalorder %s34, 0
      %p369 = por %p367, %p368
      %p370 = scmp.ne.s32.totalorder %s362, %s364
      %p371 = scmp.eq.s32.totalorder %s39, 1
      %p372 = por %p370, %p371
      %p373 = scmp.ne.s32.totalorder %s364, %s365
      %p374 = scmp.eq.s32.totalorder %s39, 0
      %p375 = por %p373, %p374
      %p376 = scmp.ne.s32.totalorder %s364, %s365
      %p377 = scmp.eq.s32.totalorder %s40, 1
      %p378 = por %p376, %p377
      %p380 = scmp.ne.s32.totalorder %s365, %s379
      %p381 = scmp.eq.s32.totalorder %s40, 0
      %p382 = por %p380, %p381
      %s384 = sadd.s32 %s383, 1
      %p387 = scmp.eq.s32.totalorder %s34, 1
      %p388 = scmp.ne.s32.totalorder %s383, %s385
      %p389 = scmp.eq.s32.totalorder %s34, 0
      %p390 = por %p388, %p389
      %p391 = scmp.ne.s32.totalorder %s383, %s385
      %p392 = scmp.eq.s32.totalorder %s39, 1
      %p393 = por %p391, %p392
      %p394 = scmp.ne.s32.totalorder %s385, %s386
      %p395 = scmp.eq.s32.totalorder %s39, 0
      %p396 = por %p394, %p395
      %p397 = scmp.ne.s32.totalorder %s385, %s386
      %p398 = scmp.eq.s32.totalorder %s40, 1
      %p399 = por %p397, %p398
      %p401 = scmp.ne.s32.totalorder %s386, %s400
      %p402 = scmp.eq.s32.totalorder %s40, 0
      %p403 = por %p401, %p402
      %s405 = sadd.s32 %s404, 1
      %p408 = scmp.eq.s32.totalorder %s34, 1
      %p409 = scmp.ne.s32.totalorder %s404, %s406
      %p410 = scmp.eq.s32.totalorder %s34, 0
      %p411 = por %p409, %p410
      %p412 = scmp.ne.s32.totalorder %s404, %s406
      %p413 = scmp.eq.s32.totalorder %s39, 1
      %p414 = por %p412, %p413
      %p415 = scmp.ne.s32.totalorder %s406, %s407
      %p416 = scmp.eq.s32.totalorder %s39, 0
      %p417 = por %p415, %p416
      %p418 = scmp.ne.s32.totalorder %s406, %s407
      %p419 = scmp.eq.s32.totalorder %s40, 1
      %p420 = por %p418, %p419
      %p422 = scmp.ne.s32.totalorder %s407, %s421
      %p423 = scmp.eq.s32.totalorder %s40, 0
      %p424 = por %p422, %p423
      %s426 = sadd.s32 %s425, 1
      %p429 = scmp.eq.s32.totalorder %s34, 1
      %p430 = scmp.ne.s32.totalorder %s425, %s427
      %p431 = scmp.eq.s32.totalorder %s34, 0
      %p432 = por %p430, %p431
      %p433 = scmp.ne.s32.totalorder %s425, %s427
      %p434 = scmp.eq.s32.totalorder %s39, 1
      %p435 = por %p433, %p434
      %p436 = scmp.ne.s32.totalorder %s427, %s428
      %p437 = scmp.eq.s32.totalorder %s39, 0
      %p438 = por %p436, %p437
      %p439 = scmp.ne.s32.totalorder %s427, %s428
      %p440 = scmp.eq.s32.totalorder %s40, 1
      %p441 = por %p439, %p440
      %p443 = scmp.ne.s32.totalorder %s428, %s442
      %p444 = scmp.eq.s32.totalorder %s40, 0
      %p445 = por %p443, %p444
      %s447 = sadd.s32 %s446, 1
      %p450 = scmp.eq.s32.totalorder %s34, 1
      %p451 = scmp.ne.s32.totalorder %s446, %s448
      %p452 = scmp.eq.s32.totalorder %s34, 0
      %p453 = por %p451, %p452
      %p454 = scmp.ne.s32.totalorder %s446, %s448
      %p455 = scmp.eq.s32.totalorder %s39, 1
      %p456 = por %p454, %p455
      %p457 = scmp.ne.s32.totalorder %s448, %s449
      %p458 = scmp.eq.s32.totalorder %s39, 0
      %p459 = por %p457, %p458
      %p460 = scmp.ne.s32.totalorder %s448, %s449
      %p461 = scmp.eq.s32.totalorder %s40, 1
      %p462 = por %p460, %p461
      %p464 = scmp.ne.s32.totalorder %s449, %s463
      %p465 = scmp.eq.s32.totalorder %s40, 0
      %p466 = por %p464, %p465
      %s468 = sadd.s32 %s467, 1
      %p471 = scmp.eq.s32.totalorder %s34, 1
      %p472 = scmp.ne.s32.totalorder %s467, %s469
      %p473 = scmp.eq.s32.totalorder %s34, 0
      %p474 = por %p472, %p473
      %p475 = scmp.ne.s32.totalorder %s467, %s469
      %p476 = scmp.eq.s32.totalorder %s39, 1
      %p477 = por %p475, %p476
      %p478 = scmp.ne.s32.totalorder %s469, %s470
      %p479 = scmp.eq.s32.totalorder %s39, 0
      %p480 = por %p478, %p479
      %p481 = scmp.ne.s32.totalorder %s469, %s470
      %p482 = scmp.eq.s32.totalorder %s40, 1
      %p483 = por %p481, %p482
      %p485 = scmp.ne.s32.totalorder %s470, %s484
      %p486 = scmp.eq.s32.totalorder %s40, 0
      %p487 = por %p485, %p486
      %s489 = sadd.s32 %s488, 1
      %p492 = scmp.eq.s32.totalorder %s34, 1
      %p493 = scmp.ne.s32.totalorder %s488, %s490
      %p494 = scmp.eq.s32.totalorder %s34, 0
      %p495 = por %p493, %p494
      %p496 = scmp.ne.s32.totalorder %s488, %s490
      %p497 = scmp.eq.s32.totalorder %s39, 1
      %p498 = por %p496, %p497
      %p499 = scmp.ne.s32.totalorder %s490, %s491
      %p500 = scmp.eq.s32.totalorder %s39, 0
      %p501 = por %p499, %p500
      %p502 = scmp.ne.s32.totalorder %s490, %s491
      %p503 = scmp.eq.s32.totalorder %s40, 1
      %p504 = por %p502, %p503
      %p506 = scmp.ne.s32.totalorder %s491, %s505
      %p507 = scmp.eq.s32.totalorder %s40, 0
      %p508 = por %p506, %p507
      %s510 = sadd.s32 %s509, 1
      %p513 = scmp.eq.s32.totalorder %s34, 1
      %p514 = scmp.ne.s32.totalorder %s509, %s511
      %p515 = scmp.eq.s32.totalorder %s34, 0
      %p516 = por %p514, %p515
      %p517 = scmp.ne.s32.totalorder %s509, %s511
      %p518 = scmp.eq.s32.totalorder %s39, 1
      %p519 = por %p517, %p518
      %p520 = scmp.ne.s32.totalorder %s511, %s512
      %p521 = scmp.eq.s32.totalorder %s39, 0
      %p522 = por %p520, %p521
      %p523 = scmp.ne.s32.totalorder %s511, %s512
      %p524 = scmp.eq.s32.totalorder %s40, 1
      %p525 = por %p523, %p524
      %p527 = scmp.ne.s32.totalorder %s512, %s526
      %p528 = scmp.eq.s32.totalorder %s40, 0
      %p529 = por %p527, %p528
      %s530 = ssub.s32 %s34, %s41
      %p531 = scmp.eq.s32.totalorder %s530, 0
      %s533 = sadd.s32 %s532, 1
      %s534 = scalar_select %p531, %s532, %s533
      %p537 = pneg %p531
      %p538 = scmp.eq.s32.totalorder %s34, 1
      %p539 = por %p537, %p538
      %p540 = scmp.ne.s32.totalorder %s532, %s535
      %p541 = scmp.eq.s32.totalorder %s34, 0
      %p542 = por %p540, %p541
      %p543 = scmp.ne.s32.totalorder %s532, %s535
      %p544 = scmp.eq.s32.totalorder %s39, 1
      %p545 = por %p543, %p544
      %p546 = scmp.ne.s32.totalorder %s535, %s536
      %p547 = scmp.eq.s32.totalorder %s39, 0
      %p548 = por %p546, %p547
      %p549 = scmp.ne.s32.totalorder %s535, %s536
      %p550 = scmp.eq.s32.totalorder %s40, 1
      %p551 = por %p549, %p550
      %p553 = scmp.ne.s32.totalorder %s536, %s552
      %p554 = scmp.eq.s32.totalorder %s40, 0
      %p555 = por %p553, %p554
      %p556 = scmp.le.s32.totalorder 1, %s34
      %p557 = scmp.lt.s32.totalorder %s34, 3
      %p558 = pnand %p556, %p557
      %p559 = pneg %p558
      // Predicated region
      $region9: #{raspm_forward.1} parent=5 // pred_check
        _
      $region10: #{raspm_forward.1} parent=5 // pred_check_branch
        %561 = sbr.rel (%p558) target = $region12
      $region11: #{raspm_forward.1} parent=5 // pred_region
        %s562 = ssub.s32 %s34, 1
        // Predicated region
        $region13: #{raspm_forward.1} parent=11 // pred_check
          %p563 = pneg %p81
        $region14: #{raspm_forward.1} parent=11 // pred_check_branch
          %565 = sbr.rel (%p563) target = $region16
        $region15: #{raspm_forward.1} parent=11 // pred_region
          %567 = vsyncadd [#allocation4], 0
          %s568 = sshll.u32 %s1, 4
          %s569 = int_to_ptr.hbm [resolvable:$true] %s568
          %s570 = sshll.u32 [#allocation3], 4
          %s571 = int_to_ptr.vmem [resolvable:$true] %s570
          %576 = dma.hbm_to_vmem [thread:$0]  %s569, 2560, %s571, [#allocation4], 320, 320, 20
        $region16: #{raspm_forward.1} parent=11 // pred_fallthru
          _
        // Predicated region
        $region17: #{raspm_forward.1} parent=11 // pred_check
          %p577 = pneg %p102
        $region18: #{raspm_forward.1} parent=11 // pred_check_branch
          %579 = sbr.rel (%p577) target = $region20
        $region19: #{raspm_forward.1} parent=11 // pred_region
          _
        $region20: #{raspm_forward.1} parent=11 // pred_fallthru
          _
        // Predicated region
        $region21: #{raspm_forward.1} parent=11 // pred_check
          %p580 = pneg %p123
        $region22: #{raspm_forward.1} parent=11 // pred_check_branch
          %582 = sbr.rel (%p580) target = $region24
        $region23: #{raspm_forward.1} parent=11 // pred_region
          _
        $region24: #{raspm_forward.1} parent=11 // pred_fallthru
          _
        // Predicated region
        $region25: #{raspm_forward.1} parent=11 // pred_check
          %p583 = pneg %p144
        $region26: #{raspm_forward.1} parent=11 // pred_check_branch
          %585 = sbr.rel (%p583) target = $region28
        $region27: #{raspm_forward.1} parent=11 // pred_region
          _
        $region28: #{raspm_forward.1} parent=11 // pred_fallthru
          _
        // Predicated region
        $region29: #{raspm_forward.1} parent=11 // pred_check
          %p586 = pneg %p165
        $region30: #{raspm_forward.1} parent=11 // pred_check_branch
          %588 = sbr.rel (%p586) target = $region32
        $region31: #{raspm_forward.1} parent=11 // pred_region
          %590 = vsyncadd [#allocation6], 0
          %s591 = sshll.u32 %s5, 4
          %s592 = int_to_ptr.hbm [resolvable:$true] %s591
          %s593 = sshll.u32 [#allocation5], 4
          %s594 = int_to_ptr.vmem [resolvable:$true] %s593
          %599 = dma.hbm_to_vmem [thread:$0]  %s592, 3072, %s594, [#allocation6], 64, 64, 4
        $region32: #{raspm_forward.1} parent=11 // pred_fallthru
          _
        // Predicated region
        $region33: #{raspm_forward.1} parent=11 // pred_check
          %p600 = pneg %p186
        $region34: #{raspm_forward.1} parent=11 // pred_check_branch
          %602 = sbr.rel (%p600) target = $region36
        $region35: #{raspm_forward.1} parent=11 // pred_region
          _
        $region36: #{raspm_forward.1} parent=11 // pred_fallthru
          _
        // Predicated region
        $region37: #{raspm_forward.1} parent=11 // pred_check
          %p603 = pneg %p207
        $region38: #{raspm_forward.1} parent=11 // pred_check_branch
          %605 = sbr.rel (%p603) target = $region40
        $region39: #{raspm_forward.1} parent=11 // pred_region
          %607 = vsyncadd [#allocation6], 0
          %s608 = sshll.u32 %s7, 4
          %s609 = int_to_ptr.hbm [resolvable:$true] %s608
          %s610 = sshll.u32 [#allocation7], 4
          %s611 = int_to_ptr.vmem [resolvable:$true] %s610
          %616 = dma.hbm_to_vmem [thread:$0]  %s609, 3072, %s611, [#allocation6], 64, 64, 4
        $region40: #{raspm_forward.1} parent=11 // pred_fallthru
          _
        // Predicated region
        $region41: #{raspm_forward.1} parent=11 // pred_check
          %p617 = pneg %p228
        $region42: #{raspm_forward.1} parent=11 // pred_check_branch
          %619 = sbr.rel (%p617) target = $region44
        $region43: #{raspm_forward.1} parent=11 // pred_region
          _
        $region44: #{raspm_forward.1} parent=11 // pred_fallthru
          _
        // Predicated region
        $region45: #{raspm_forward.1} parent=11 // pred_check
          %p620 = pneg %p249
        $region46: #{raspm_forward.1} parent=11 // pred_check_branch
          %622 = sbr.rel (%p620) target = $region48
        $region47: #{raspm_forward.1} parent=11 // pred_region
          %624 = vsyncadd [#allocation9], 0
          %s625 = sshll.u32 %s9, 4
          %s626 = int_to_ptr.hbm [resolvable:$true] %s625
          %s627 = sshll.u32 [#allocation8], 4
          %s628 = int_to_ptr.vmem [resolvable:$true] %s627
          %633 = dma.hbm_to_vmem [thread:$0]  %s626, 1024, %s628, [#allocation9], 64, 64, 4
        $region48: #{raspm_forward.1} parent=11 // pred_fallthru
          _
        // Predicated region
        $region49: #{raspm_forward.1} parent=11 // pred_check
          %p634 = pneg %p270
        $region50: #{raspm_forward.1} parent=11 // pred_check_branch
          %636 = sbr.rel (%p634) target = $region52
        $region51: #{raspm_forward.1} parent=11 // pred_region
          _
        $region52: #{raspm_forward.1} parent=11 // pred_fallthru
          _
        // Predicated region
        $region53: #{raspm_forward.1} parent=11 // pred_check
          %p637 = pneg %p291
        $region54: #{raspm_forward.1} parent=11 // pred_check_branch
          %639 = sbr.rel (%p637) target = $region56
        $region55: #{raspm_forward.1} parent=11 // pred_region
          _
        $region56: #{raspm_forward.1} parent=11 // pred_fallthru
          _
        // Predicated region
        $region57: #{raspm_forward.1} parent=11 // pred_check
          %p640 = pneg %p312
        $region58: #{raspm_forward.1} parent=11 // pred_check_branch
          %642 = sbr.rel (%p640) target = $region60
        $region59: #{raspm_forward.1} parent=11 // pred_region
          _
        $region60: #{raspm_forward.1} parent=11 // pred_fallthru
          _
        // Predicated region
        $region61: #{raspm_forward.1} parent=11 // pred_check
          %p643 = pneg %p333
        $region62: #{raspm_forward.1} parent=11 // pred_check_branch
          %645 = sbr.rel (%p643) target = $region64
        $region63: #{raspm_forward.1} parent=11 // pred_region
          %647 = vsyncadd [#allocation9], 0
          %s648 = sshll.u32 %s13, 4
          %s649 = int_to_ptr.hbm [resolvable:$true] %s648
          %s650 = sshll.u32 [#allocation10], 4
          %s651 = int_to_ptr.vmem [resolvable:$true] %s650
          %656 = dma.hbm_to_vmem [thread:$0]  %s649, 3072, %s651, [#allocation9], 64, 64, 4
        $region64: #{raspm_forward.1} parent=11 // pred_fallthru
          _
        // Predicated region
        $region65: #{raspm_forward.1} parent=11 // pred_check
          %p657 = pneg %p354
        $region66: #{raspm_forward.1} parent=11 // pred_check_branch
          %659 = sbr.rel (%p657) target = $region68
        $region67: #{raspm_forward.1} parent=11 // pred_region
          _
        $region68: #{raspm_forward.1} parent=11 // pred_fallthru
          _
        // Predicated region
        $region69: #{raspm_forward.1} parent=11 // pred_check
          %p660 = pneg %p375
        $region70: #{raspm_forward.1} parent=11 // pred_check_branch
          %662 = sbr.rel (%p660) target = $region72
        $region71: #{raspm_forward.1} parent=11 // pred_region
          %664 = vsyncadd [#allocation12], 0
          %s665 = sshll.u32 %s15, 4
          %s666 = int_to_ptr.hbm [resolvable:$true] %s665
          %s667 = sshll.u32 [#allocation11], 4
          %s668 = int_to_ptr.vmem [resolvable:$true] %s667
          %673 = dma.hbm_to_vmem [thread:$0]  %s666, 1024, %s668, [#allocation12], 64, 64, 4
        $region72: #{raspm_forward.1} parent=11 // pred_fallthru
          _
        // Predicated region
        $region73: #{raspm_forward.1} parent=11 // pred_check
          %p674 = pneg %p396
        $region74: #{raspm_forward.1} parent=11 // pred_check_branch
          %676 = sbr.rel (%p674) target = $region76
        $region75: #{raspm_forward.1} parent=11 // pred_region
          _
        $region76: #{raspm_forward.1} parent=11 // pred_fallthru
          _
        // Predicated region
        $region77: #{raspm_forward.1} parent=11 // pred_check
          %p677 = pneg %p417
        $region78: #{raspm_forward.1} parent=11 // pred_check_branch
          %679 = sbr.rel (%p677) target = $region80
        $region79: #{raspm_forward.1} parent=11 // pred_region
          %681 = vsyncadd [#allocation12], 0
          %s682 = sshll.u32 %s17, 4
          %s683 = int_to_ptr.hbm [resolvable:$true] %s682
          %s684 = sshll.u32 [#allocation13], 4
          %s685 = int_to_ptr.vmem [resolvable:$true] %s684
          %690 = dma.hbm_to_vmem [thread:$0]  %s683, 7168, %s685, [#allocation12], 64, 64, 4
        $region80: #{raspm_forward.1} parent=11 // pred_fallthru
          _
        // Predicated region
        $region81: #{raspm_forward.1} parent=11 // pred_check
          %p691 = pneg %p438
        $region82: #{raspm_forward.1} parent=11 // pred_check_branch
          %693 = sbr.rel (%p691) target = $region84
        $region83: #{raspm_forward.1} parent=11 // pred_region
          _
        $region84: #{raspm_forward.1} parent=11 // pred_fallthru
          _
        // Predicated region
        $region85: #{raspm_forward.1} parent=11 // pred_check
          %p694 = pneg %p459
        $region86: #{raspm_forward.1} parent=11 // pred_check_branch
          %696 = sbr.rel (%p694) target = $region88
        $region87: #{raspm_forward.1} parent=11 // pred_region
          %698 = vsyncadd [#allocation15], 0
          %s699 = sshll.u32 %s19, 4
          %s700 = int_to_ptr.hbm [resolvable:$true] %s699
          %s701 = sshll.u32 [#allocation14], 4
          %s702 = int_to_ptr.vmem [resolvable:$true] %s701
          %707 = dma.hbm_to_vmem [thread:$0]  %s700, 3072, %s702, [#allocation15], 64, 64, 4
        $region88: #{raspm_forward.1} parent=11 // pred_fallthru
          _
        // Predicated region
        $region89: #{raspm_forward.1} parent=11 // pred_check
          %p708 = pneg %p480
        $region90: #{raspm_forward.1} parent=11 // pred_check_branch
          %710 = sbr.rel (%p708) target = $region92
        $region91: #{raspm_forward.1} parent=11 // pred_region
          _
        $region92: #{raspm_forward.1} parent=11 // pred_fallthru
          _
        // Predicated region
        $region93: #{raspm_forward.1} parent=11 // pred_check
          %p711 = pneg %p501
        $region94: #{raspm_forward.1} parent=11 // pred_check_branch
          %713 = sbr.rel (%p711) target = $region96
        $region95: #{raspm_forward.1} parent=11 // pred_region
          %715 = vsyncadd [#allocation15], 0
          %s716 = sshll.u32 %s21, 4
          %s717 = int_to_ptr.hbm [resolvable:$true] %s716
          %s718 = sshll.u32 [#allocation16], 4
          %s719 = int_to_ptr.vmem [resolvable:$true] %s718
          %724 = dma.hbm_to_vmem [thread:$0]  %s717, 12288, %s719, [#allocation15], 64, 64, 4
        $region96: #{raspm_forward.1} parent=11 // pred_fallthru
          _
        // Predicated region
        $region97: #{raspm_forward.1} parent=11 // pred_check
          %p725 = pneg %p522
        $region98: #{raspm_forward.1} parent=11 // pred_check_branch
          %727 = sbr.rel (%p725) target = $region100
        $region99: #{raspm_forward.1} parent=11 // pred_region
          _
        $region100: #{raspm_forward.1} parent=11 // pred_fallthru
          _
      $region12: #{raspm_forward.1} parent=5 // pred_fallthru
        _
      %p728 = scmp.lt.s32.totalorder %s34, 2
      // Predicated region
      $region101: #{raspm_forward.1} parent=5 // pred_check
        %p729 = pneg %p728
      $region102: #{raspm_forward.1} parent=5 // pred_check_branch
        %731 = sbr.rel (%p729) target = $region104
      $region103: #{raspm_forward.1} parent=5 // pred_region
        // Predicated region
        $region105: #{raspm_forward.1} parent=103 // pred_check
          %p732 = pneg %p54
        $region106: #{raspm_forward.1} parent=103 // pred_check_branch
          %734 = sbr.rel (%p732) target = $region108
        $region107: #{raspm_forward.1} parent=103 // pred_region
          %p735 = scmp.lt.s32.totalorder %s34, 1
          %s736 = scalar_select %p735, %s34, 1
          %s737 = smul.addr %s736, 2
          %s738 = smul.addr %s737, 8
          %s739 = scalar_lea.vmem %s0, %s738
        $region108: #{raspm_forward.1} parent=103 // pred_fallthru
          _
      $region104: #{raspm_forward.1} parent=5 // pred_fallthru
        _
      %p740 = scmp.le.s32.totalorder 1, %s34
      %p741 = scmp.lt.s32.totalorder %s34, 3
      %p742 = pnand %p740, %p741
      %p743 = pneg %p742
      // Predicated region
      $region109: #{raspm_forward.1} parent=5 // pred_check
        _
      $region110: #{raspm_forward.1} parent=5 // pred_check_branch
        %745 = sbr.rel (%p742) target = $region112
      $region111: #{raspm_forward.1} parent=5 // pred_region
        %s746 = ssub.s32 %s34, 1
        // Predicated region
        $region113: #{raspm_forward.1} parent=111 // pred_check
          %p747 = pneg %p81
        $region114: #{raspm_forward.1} parent=111 // pred_check_branch
          %749 = sbr.rel (%p747) target = $region116
        $region115: #{raspm_forward.1} parent=111 // pred_region
          %751 = dma.done [#allocation4], 2560
        $region116: #{raspm_forward.1} parent=111 // pred_fallthru
          _
        // Predicated region
        $region117: #{raspm_forward.1} parent=111 // pred_check
          %p752 = pneg %p165
        $region118: #{raspm_forward.1} parent=111 // pred_check_branch
          %754 = sbr.rel (%p752) target = $region120
        $region119: #{raspm_forward.1} parent=111 // pred_region
          %756 = dma.done [#allocation6], 3072
        $region120: #{raspm_forward.1} parent=111 // pred_fallthru
          _
        // Predicated region
        $region121: #{raspm_forward.1} parent=111 // pred_check
          %p757 = pneg %p207
        $region122: #{raspm_forward.1} parent=111 // pred_check_branch
          %759 = sbr.rel (%p757) target = $region124
        $region123: #{raspm_forward.1} parent=111 // pred_region
          %761 = dma.done [#allocation6], 3072
        $region124: #{raspm_forward.1} parent=111 // pred_fallthru
          _
        // Predicated region
        $region125: #{raspm_forward.1} parent=111 // pred_check
          %p762 = pneg %p249
        $region126: #{raspm_forward.1} parent=111 // pred_check_branch
          %764 = sbr.rel (%p762) target = $region128
        $region127: #{raspm_forward.1} parent=111 // pred_region
          %766 = dma.done [#allocation9], 1024
        $region128: #{raspm_forward.1} parent=111 // pred_fallthru
          _
        // Predicated region
        $region129: #{raspm_forward.1} parent=111 // pred_check
          %p767 = pneg %p333
        $region130: #{raspm_forward.1} parent=111 // pred_check_branch
          %769 = sbr.rel (%p767) target = $region132
        $region131: #{raspm_forward.1} parent=111 // pred_region
          %771 = dma.done [#allocation9], 3072
        $region132: #{raspm_forward.1} parent=111 // pred_fallthru
          _
        // Predicated region
        $region133: #{raspm_forward.1} parent=111 // pred_check
          %p772 = pneg %p375
        $region134: #{raspm_forward.1} parent=111 // pred_check_branch
          %774 = sbr.rel (%p772) target = $region136
        $region135: #{raspm_forward.1} parent=111 // pred_region
          %776 = dma.done [#allocation12], 1024
        $region136: #{raspm_forward.1} parent=111 // pred_fallthru
          _
        // Predicated region
        $region137: #{raspm_forward.1} parent=111 // pred_check
          %p777 = pneg %p417
        $region138: #{raspm_forward.1} parent=111 // pred_check_branch
          %779 = sbr.rel (%p777) target = $region140
        $region139: #{raspm_forward.1} parent=111 // pred_region
          %781 = dma.done [#allocation12], 7168
        $region140: #{raspm_forward.1} parent=111 // pred_fallthru
          _
        // Predicated region
        $region141: #{raspm_forward.1} parent=111 // pred_check
          %p782 = pneg %p459
        $region142: #{raspm_forward.1} parent=111 // pred_check_branch
          %784 = sbr.rel (%p782) target = $region144
        $region143: #{raspm_forward.1} parent=111 // pred_region
          %786 = dma.done [#allocation15], 3072
        $region144: #{raspm_forward.1} parent=111 // pred_fallthru
          _
        // Predicated region
        $region145: #{raspm_forward.1} parent=111 // pred_check
          %p787 = pneg %p501
        $region146: #{raspm_forward.1} parent=111 // pred_check_branch
          %789 = sbr.rel (%p787) target = $region148
        $region147: #{raspm_forward.1} parent=111 // pred_region
          %791 = dma.done [#allocation15], 12288
        $region148: #{raspm_forward.1} parent=111 // pred_fallthru
          _
        %p792 = scmp.lt.s32.totalorder %s39, 1
        %s793 = scalar_select %p792, %s39, 1
        %s794 = smul.addr %s793, 2
        %s795 = smul.addr %s794, 8
        %s796 = scalar_lea.vmem %s0, %s795
        %p797 = pneg %p60
        %p798 = pneg %p57
        %p799 = pneg %p81
        %p800 = pneg %p78
        %p801 = pneg %p102
        %p802 = pneg %p99
        %p803 = pneg %p123
        %p804 = pneg %p120
        %p805 = pneg %p144
        %p806 = pneg %p141
        %p807 = pneg %p165
        %p808 = pneg %p162
        %p809 = pneg %p186
        %p810 = pneg %p183
        %p811 = pneg %p207
        %p812 = pneg %p204
        %p813 = pneg %p228
        %p814 = pneg %p225
        %p815 = pneg %p249
        %p816 = pneg %p246
        %p817 = pneg %p270
        %p818 = pneg %p267
        %p819 = pneg %p291
        %p820 = pneg %p288
        %p821 = pneg %p312
        %p822 = pneg %p309
        %p823 = pneg %p333
        %p824 = pneg %p330
        %p825 = pneg %p354
        %p826 = pneg %p351
        %p827 = pneg %p375
        %p828 = pneg %p372
        %p829 = pneg %p396
        %p830 = pneg %p393
        %p831 = pneg %p417
        %p832 = pneg %p414
        %p833 = pneg %p438
        %p834 = pneg %p435
        %p835 = pneg %p459
        %p836 = pneg %p456
        %p837 = pneg %p480
        %p838 = pneg %p477
        %p839 = pneg %p501
        %p840 = pneg %p498
        %p841 = pneg %p522
        %p842 = pneg %p519
        %p843 = pneg %p548
        %p844 = pneg %p545
        %p845 = scmp.lt.s32.totalorder %s39, 1
        %s846 = scalar_select %p845, %s39, 1
        %s847 = smul.addr %s846, 2
        %s848 = smul.addr %s847, 8
        %s849 = scalar_lea.vmem %s23, %s848
        %p850 = scmp.lt.s32.totalorder %s39, 1
        %s851 = scalar_select %p850, %s39, 1
        %s852 = smul.addr %s851, 2
        %s853 = smul.addr %s852, 8
        %s854 = scalar_lea.vmem %s0, %s853
        %p855 = scmp.lt.s32.totalorder %s39, 1
        %s856 = scalar_select %p855, %s39, 1
        %s857 = smul.addr %s856, 2
        %s858 = smul.addr %s857, 8
        %s859 = scalar_lea.vmem %s23, %s858
        %861 = vst [vmem:[#allocation2] sm:$0xf] 0
        %862 = vst [vmem:[#allocation2 + $0x4] sm:$0xf] 0
        %863 = vst [vmem:[#allocation2 + $0x10] sm:$0xf] 0
        %864 = vst [vmem:[#allocation2 + $0x14] sm:$0xf] 0
        %v865 = vld [vmem:[%s854] sm:$0xff]
        %v866 = vld [vmem:[%s854 + $0x8] sm:$0xff]
        %v867 = vpack.c.bf16 %v866, %v865
        %v868 = vld [vmem:[#allocation3] sm:$0xff]
        %v869 = vld [vmem:[#allocation3 + $0x8] sm:$0xff]
        %v870 = vld [vmem:[#allocation3 + $0x10] sm:$0xf]
        %v871 = vld [vmem:[#allocation3 + $0x14] sm:$0xff]
        %v872 = vld [vmem:[#allocation3 + $0x1c] sm:$0xff]
        %v873 = vld [vmem:[#allocation3 + $0x24] sm:$0xf]
        %v874 = vld [vmem:[#allocation3 + $0x28] sm:$0xff]
        %v875 = vld [vmem:[#allocation3 + $0x30] sm:$0xff]
        %v876 = vld [vmem:[#allocation3 + $0x38] sm:$0xf]
        %v877 = vld [vmem:[#allocation3 + $0x3c] sm:$0xff]
        %v878 = vld [vmem:[#allocation3 + $0x44] sm:$0xff]
        %v879 = vld [vmem:[#allocation3 + $0x4c] sm:$0xf]
        %v880 = vld [vmem:[#allocation3 + $0x50] sm:$0xff]
        %v881 = vld [vmem:[#allocation3 + $0x58] sm:$0xff]
        %v882 = vld [vmem:[#allocation3 + $0x60] sm:$0xf]
        %v883 = vld [vmem:[#allocation3 + $0x64] sm:$0xff]
        %v884 = vld [vmem:[#allocation3 + $0x6c] sm:$0xff]
        %v885 = vld [vmem:[#allocation3 + $0x74] sm:$0xf]
        %v886 = vld [vmem:[#allocation3 + $0x78] sm:$0xff]
        %v887 = vld [vmem:[#allocation3 + $0x80] sm:$0xff]
        %v888 = vld [vmem:[#allocation3 + $0x88] sm:$0xf]
        %v889 = vld [vmem:[#allocation3 + $0x8c] sm:$0xff]
        %v890 = vld [vmem:[#allocation3 + $0x94] sm:$0xff]
        %v891 = vld [vmem:[#allocation3 + $0x9c] sm:$0xf]
        %v892 = vld [vmem:[%s2] sm:$0x1f]
        %v894 = vperm.slane %v892, 0
        %v895 = vperm.slane %v892, 1
        %v896 = vperm.slane %v892, 2
        %v897 = vperm.slane %v892, 3
        %v898 = vperm.slane %v892, 4
        %v928 = vunpack.c.l.b16 %v868
        %v929 = vunpack.c.h.b16 %v868
        %v930 = vunpack.c.l.b16 %v869
        %v931 = vunpack.c.h.b16 %v869
        %v932 = vunpack.c.l.b16 %v870
        %v933 = vunpack.c.l.b16 %v871
        %v934 = vunpack.c.h.b16 %v871
        %v935 = vunpack.c.l.b16 %v872
        %v936 = vunpack.c.h.b16 %v872
        %v937 = vunpack.c.l.b16 %v873
        %v938 = vunpack.c.l.b16 %v874
        %v939 = vunpack.c.h.b16 %v874
        %v940 = vunpack.c.l.b16 %v875
        %v941 = vunpack.c.h.b16 %v875
        %v942 = vunpack.c.l.b16 %v876
        %v943 = vunpack.c.l.b16 %v877
        %v944 = vunpack.c.h.b16 %v877
        %v945 = vunpack.c.l.b16 %v878
        %v946 = vunpack.c.h.b16 %v878
        %v947 = vunpack.c.l.b16 %v879
        %v948 = vunpack.c.l.b16 %v880
        %v949 = vunpack.c.h.b16 %v880
        %v950 = vunpack.c.l.b16 %v881
        %v951 = vunpack.c.h.b16 %v881
        %v952 = vunpack.c.l.b16 %v882
        %v953 = vunpack.c.l.b16 %v883
        %v954 = vunpack.c.h.b16 %v883
        %v955 = vunpack.c.l.b16 %v884
        %v956 = vunpack.c.h.b16 %v884
        %v957 = vunpack.c.l.b16 %v885
        %v958 = vunpack.c.l.b16 %v886
        %v959 = vunpack.c.h.b16 %v886
        %v960 = vunpack.c.l.b16 %v887
        %v961 = vunpack.c.h.b16 %v887
        %v962 = vunpack.c.l.b16 %v888
        %v963 = vunpack.c.l.b16 %v889
        %v964 = vunpack.c.h.b16 %v889
        %v965 = vunpack.c.l.b16 %v890
        %v966 = vunpack.c.h.b16 %v890
        %v967 = vunpack.c.l.b16 %v891
        %v968 = vpack.c.b16 %v933, %v928
        %v969 = vpack.c.b16 %v934, %v929
        %v970 = vpack.c.b16 %v935, %v930
        %v971 = vpack.c.b16 %v936, %v931
        %v972 = vpack.c.b16 %v937, %v932
        %v973 = vpack.c.b16 %v943, %v938
        %v974 = vpack.c.b16 %v944, %v939
        %v975 = vpack.c.b16 %v945, %v940
        %v976 = vpack.c.b16 %v946, %v941
        %v977 = vpack.c.b16 %v947, %v942
        %v978 = vpack.c.b16 %v953, %v948
        %v979 = vpack.c.b16 %v954, %v949
        %v980 = vpack.c.b16 %v955, %v950
        %v981 = vpack.c.b16 %v956, %v951
        %v982 = vpack.c.b16 %v957, %v952
        %v983 = vpack.c.b16 %v963, %v958
        %v984 = vpack.c.b16 %v964, %v959
        %v985 = vpack.c.b16 %v965, %v960
        %v986 = vpack.c.b16 %v966, %v961
        %v987 = vpack.c.b16 %v967, %v962
        %vm1008 = vcmask 523264
        %v1010 = vsel %vm1008, %v867, 0
        %1012 = vmatpush.bf16.msra.mxu0 0
        %1013 = vmatpush.bf16.msra.mxu0 0
        %1014 = vmatpush.bf16.msra.mxu0 0
        %1015 = vmatpush.bf16.msra.mxu0 0
        %1016 = vmatpush.bf16.msra.mxu0 %v983
        %1017 = vmatpush.bf16.msra.mxu0 %v978
        %1018 = vmatpush.bf16.msra.mxu0 %v973
        %1019 = vmatpush.bf16.msra.mxu0 %v968
        %1020 = vmatmul.bf16.gmra.mxu0 %v1010
        %v1021 = vpop.f32.mrf.mxu0
        %v1022 = vadd.f32 %v894, %v1021
        %v1023 = vpop.f32.mrf.mxu0
        %v1024 = vadd.f32 %v894, %v1023
        %1025 = vdwg.mxu0
        %1026 = vmatpush.bf16.msra.mxu0 0
        %1027 = vmatpush.bf16.msra.mxu0 0
        %1028 = vmatpush.bf16.msra.mxu0 0
        %1029 = vmatpush.bf16.msra.mxu0 0
        %1030 = vmatpush.bf16.msra.mxu0 %v984
        %1031 = vmatpush.bf16.msra.mxu0 %v979
        %1032 = vmatpush.bf16.msra.mxu0 %v974
        %1033 = vmatpush.bf16.msra.mxu0 %v969
        %1034 = vmatmul.bf16.gmra.mxu0 %v1010
        %v1035 = vpop.f32.mrf.mxu0
        %v1036 = vadd.f32 %v895, %v1035
        %v1037 = vpop.f32.mrf.mxu0
        %v1038 = vadd.f32 %v895, %v1037
        %1039 = vdwg.mxu0
        %1040 = vmatpush.bf16.msra.mxu0 0
        %1041 = vmatpush.bf16.msra.mxu0 0
        %1042 = vmatpush.bf16.msra.mxu0 0
        %1043 = vmatpush.bf16.msra.mxu0 0
        %1044 = vmatpush.bf16.msra.mxu0 %v985
        %1045 = vmatpush.bf16.msra.mxu0 %v980
        %1046 = vmatpush.bf16.msra.mxu0 %v975
        %1047 = vmatpush.bf16.msra.mxu0 %v970
        %1048 = vmatmul.bf16.gmra.mxu0 %v1010
        %v1049 = vpop.f32.mrf.mxu0
        %v1050 = vadd.f32 %v896, %v1049
        %v1051 = vpop.f32.mrf.mxu0
        %v1052 = vadd.f32 %v896, %v1051
        %1053 = vdwg.mxu0
        %1054 = vmatpush.bf16.msra.mxu0 0
        %1055 = vmatpush.bf16.msra.mxu0 0
        %1056 = vmatpush.bf16.msra.mxu0 0
        %1057 = vmatpush.bf16.msra.mxu0 0
        %1058 = vmatpush.bf16.msra.mxu0 %v986
        %1059 = vmatpush.bf16.msra.mxu0 %v981
        %1060 = vmatpush.bf16.msra.mxu0 %v976
        %1061 = vmatpush.bf16.msra.mxu0 %v971
        %1062 = vmatmul.bf16.gmra.mxu0 %v1010
        %v1063 = vpop.f32.mrf.mxu0
        %v1064 = vadd.f32 %v897, %v1063
        %v1065 = vpop.f32.mrf.mxu0
        %v1066 = vadd.f32 %v897, %v1065
        %1067 = vdwg.mxu0
        %1068 = vmatpush.bf16.msra.mxu0 0
        %1069 = vmatpush.bf16.msra.mxu0 0
        %1070 = vmatpush.bf16.msra.mxu0 0
        %1071 = vmatpush.bf16.msra.mxu0 0
        %1072 = vmatpush.bf16.msra.mxu0 %v987
        %1073 = vmatpush.bf16.msra.mxu0 %v982
        %1074 = vmatpush.bf16.msra.mxu0 %v977
        %1075 = vmatpush.bf16.msra.mxu0 %v972
        %1076 = vmatmul.bf16.gmra.mxu0 %v1010
        %v1077 = vpop.f32.mrf.mxu0
        %v1078 = vadd.f32 %v898, %v1077
        %v1079 = vpop.f32.mrf.mxu0
        %v1080 = vadd.f32 %v898, %v1079
        %1081 = vdwg.mxu0
        %v1082 = vadd.f32 %v1036, %v1022
        %v1083 = vadd.f32 %v1038, %v1024
        %v1084 = vpack.c.bf16 %v1082, %v1082
        %v1085 = vpack.c.bf16 %v1083, %v1083
        %1086 = vst [vmem:[#allocation2 + $0x8] sm:$0xf] %v1084
        %1087 = vst [vmem:[#allocation2 + $0xc] sm:$0xf] %v1085
        %v1088 = vld [vmem:[#allocation2 + $0x8] sm:$0xf]
        %v1089 = vld [vmem:[#allocation2 + $0xc] sm:$0xf]
        %v1090 = vld [vmem:[%s3] sm:$0xf]
        %v1091 = vld [vmem:[%s3 + $0x4] sm:$0xf]
        %v1092 = vld [vmem:[%s3 + $0x8] sm:$0xf]
        %v1093 = vld [vmem:[%s3 + $0xc] sm:$0xf]
        %v1094 = vld [vmem:[%s3 + $0x10] sm:$0xf]
        %v1095 = vld [vmem:[%s3 + $0x14] sm:$0xf]
        %v1096 = vld [vmem:[%s3 + $0x18] sm:$0xf]
        %v1097 = vld [vmem:[%s3 + $0x1c] sm:$0xf]
        %v1098 = vld [vmem:[%s3 + $0x20] sm:$0xf]
        %v1099 = vld [vmem:[%s3 + $0x24] sm:$0xf]
        %v1100 = vld [vmem:[%s3 + $0x28] sm:$0xf]
        %v1101 = vld [vmem:[%s3 + $0x2c] sm:$0xf]
        %v1102 = vld [vmem:[%s3 + $0x30] sm:$0xf]
        %v1103 = vld [vmem:[%s3 + $0x34] sm:$0xf]
        %v1104 = vld [vmem:[%s3 + $0x38] sm:$0xf]
        %v1105 = vld [vmem:[%s3 + $0x3c] sm:$0xf]
        %v1106 = vld [vmem:[%s4] sm:$0x1]
        %v1108 = vperm.slane %v1106, 0
        %v1112 = vunpack.c.l.b16 %v1088
        %v1113 = vunpack.c.l.b16 %v1089
        %v1114 = vpack.c.b16 %v1113, %v1112
        %v1132 = vunpack.c.l.b16 %v1090
        %v1133 = vunpack.c.l.b16 %v1091
        %v1134 = vunpack.c.l.b16 %v1092
        %v1135 = vunpack.c.l.b16 %v1093
        %v1136 = vunpack.c.l.b16 %v1094
        %v1137 = vunpack.c.l.b16 %v1095
        %v1138 = vunpack.c.l.b16 %v1096
        %v1139 = vunpack.c.l.b16 %v1097
        %v1140 = vunpack.c.l.b16 %v1098
        %v1141 = vunpack.c.l.b16 %v1099
        %v1142 = vunpack.c.l.b16 %v1100
        %v1143 = vunpack.c.l.b16 %v1101
        %v1144 = vunpack.c.l.b16 %v1102
        %v1145 = vunpack.c.l.b16 %v1103
        %v1146 = vunpack.c.l.b16 %v1104
        %v1147 = vunpack.c.l.b16 %v1105
        %v1148 = vpack.c.b16 %v1133, %v1132
        %v1149 = vpack.c.b16 %v1135, %v1134
        %v1150 = vpack.c.b16 %v1137, %v1136
        %v1151 = vpack.c.b16 %v1139, %v1138
        %v1152 = vpack.c.b16 %v1141, %v1140
        %v1153 = vpack.c.b16 %v1143, %v1142
        %v1154 = vpack.c.b16 %v1145, %v1144
        %v1155 = vpack.c.b16 %v1147, %v1146
        %1164 = vmatpush.bf16.msra.mxu0 %v1155
        %1165 = vmatpush.bf16.msra.mxu0 %v1154
        %1166 = vmatpush.bf16.msra.mxu0 %v1153
        %1167 = vmatpush.bf16.msra.mxu0 %v1152
        %1168 = vmatpush.bf16.msra.mxu0 %v1151
        %1169 = vmatpush.bf16.msra.mxu0 %v1150
        %1170 = vmatpush.bf16.msra.mxu0 %v1149
        %1171 = vmatpush.bf16.msra.mxu0 %v1148
        %1172 = vmatmul.bf16.gmra.mxu0 %v1114
        %v1173 = vpop.f32.mrf.mxu0
        %v1174 = vadd.f32 %v1108, %v1173
        %v1175 = vpop.f32.mrf.mxu0
        %v1176 = vadd.f32 %v1108, %v1175
        %1177 = vdwg.mxu0
        %v1178 = vpack.c.bf16 %v1174, %v1174
        %v1179 = vpack.c.bf16 %v1176, %v1176
        %1180 = vst [vmem:[#allocation2 + $0x8] sm:$0xf] %v1178
        %1181 = vst [vmem:[#allocation2 + $0xc] sm:$0xf] %v1179
        %v1182 = vld [vmem:[#allocation2 + $0x4] sm:$0x8]
        %v1183 = vld [vmem:[#allocation2 + $0x8] sm:$0xf]
        %v1184 = vld [vmem:[#allocation2 + $0xc] sm:$0xf]
        %v1185 = vld [vmem:[#allocation5] sm:$0xf]
        %v1186 = vld [vmem:[#allocation5 + $0x4] sm:$0xf]
        %v1187 = vld [vmem:[#allocation5 + $0x8] sm:$0xf]
        %v1188 = vld [vmem:[#allocation5 + $0xc] sm:$0xf]
        %v1189 = vld [vmem:[#allocation5 + $0x10] sm:$0xf]
        %v1190 = vld [vmem:[#allocation5 + $0x14] sm:$0xf]
        %v1191 = vld [vmem:[#allocation5 + $0x18] sm:$0xf]
        %v1192 = vld [vmem:[#allocation5 + $0x1c] sm:$0xf]
        %v1193 = vld [vmem:[#allocation5 + $0x20] sm:$0xf]
        %v1194 = vld [vmem:[#allocation5 + $0x24] sm:$0xf]
        %v1195 = vld [vmem:[#allocation5 + $0x28] sm:$0xf]
        %v1196 = vld [vmem:[#allocation5 + $0x2c] sm:$0xf]
        %v1197 = vld [vmem:[#allocation5 + $0x30] sm:$0xf]
        %v1198 = vld [vmem:[#allocation5 + $0x34] sm:$0xf]
        %v1199 = vld [vmem:[#allocation5 + $0x38] sm:$0xf]
        %v1200 = vld [vmem:[#allocation5 + $0x3c] sm:$0xf]
        %s1201 = scalar_lea.vmem [#allocation5], 64
        %v1202 = vld [vmem:[%s1201] sm:$0xf]
        %v1203 = vld [vmem:[%s1201 + $0x4] sm:$0xf]
        %v1204 = vld [vmem:[%s1201 + $0x8] sm:$0xf]
        %v1205 = vld [vmem:[%s1201 + $0xc] sm:$0xf]
        %v1206 = vld [vmem:[%s1201 + $0x10] sm:$0xf]
        %v1207 = vld [vmem:[%s1201 + $0x14] sm:$0xf]
        %v1208 = vld [vmem:[%s1201 + $0x18] sm:$0xf]
        %v1209 = vld [vmem:[%s1201 + $0x1c] sm:$0xf]
        %v1210 = vld [vmem:[%s1201 + $0x20] sm:$0xf]
        %v1211 = vld [vmem:[%s1201 + $0x24] sm:$0xf]
        %v1212 = vld [vmem:[%s1201 + $0x28] sm:$0xf]
        %v1213 = vld [vmem:[%s1201 + $0x2c] sm:$0xf]
        %v1214 = vld [vmem:[%s1201 + $0x30] sm:$0xf]
        %v1215 = vld [vmem:[%s1201 + $0x34] sm:$0xf]
        %v1216 = vld [vmem:[%s1201 + $0x38] sm:$0xf]
        %v1217 = vld [vmem:[%s1201 + $0x3c] sm:$0xf]
        %v1220 = vunpack.c.l.b16 %v1183
        %v1221 = vunpack.c.l.b16 %v1184
        %v1222 = vpack.c.b16 %v1221, %v1220
        %v1240 = vunpack.c.l.b16 %v1202
        %v1241 = vunpack.c.l.b16 %v1203
        %v1242 = vunpack.c.l.b16 %v1204
        %v1243 = vunpack.c.l.b16 %v1205
        %v1244 = vunpack.c.l.b16 %v1206
        %v1245 = vunpack.c.l.b16 %v1207
        %v1246 = vunpack.c.l.b16 %v1208
        %v1247 = vunpack.c.l.b16 %v1209
        %v1248 = vunpack.c.l.b16 %v1210
        %v1249 = vunpack.c.l.b16 %v1211
        %v1250 = vunpack.c.l.b16 %v1212
        %v1251 = vunpack.c.l.b16 %v1213
        %v1252 = vunpack.c.l.b16 %v1214
        %v1253 = vunpack.c.l.b16 %v1215
        %v1254 = vunpack.c.l.b16 %v1216
        %v1255 = vunpack.c.l.b16 %v1217
        %v1256 = vpack.c.b16 %v1241, %v1240
        %v1257 = vpack.c.b16 %v1243, %v1242
        %v1258 = vpack.c.b16 %v1245, %v1244
        %v1259 = vpack.c.b16 %v1247, %v1246
        %v1260 = vpack.c.b16 %v1249, %v1248
        %v1261 = vpack.c.b16 %v1251, %v1250
        %v1262 = vpack.c.b16 %v1253, %v1252
        %v1263 = vpack.c.b16 %v1255, %v1254
        %1272 = vmatpush.bf16.msra.mxu0 %v1263
        %1273 = vmatpush.bf16.msra.mxu0 %v1262
        %1274 = vmatpush.bf16.msra.mxu0 %v1261
        %1275 = vmatpush.bf16.msra.mxu0 %v1260
        %1276 = vmatpush.bf16.msra.mxu0 %v1259
        %1277 = vmatpush.bf16.msra.mxu0 %v1258
        %1278 = vmatpush.bf16.msra.mxu0 %v1257
        %1279 = vmatpush.bf16.msra.mxu0 %v1256
        %1280 = vmatmul.bf16.gmra.mxu0 %v1222
        %v1281 = vpop.f32.mrf.mxu0
        %v1282 = vadd.f32 0.0, %v1281
        %v1283 = vpop.f32.mrf.mxu0
        %v1284 = vadd.f32 0.0, %v1283
        %1285 = vdwg.mxu0
        %v1287 = vunpack.c.l.b16 %v1182
        %v1288 = vpack.c.b16 %v1220, %v1287
        %v1289 = vpack.c.b16 %v1221, %v1221
        %vm1290 = vsmask.f32 4352
        %v1292 = vshrl.u32 %v1288, 16
        %v1294 = vrot.slane %v1292, 3
        %v1295 = vshll.u32 %v1288, 16
        %v1297 = vrot.slane %v1295, 4
        %v1298 = vor.u32 %v1294, %v1297
        %v1300 = vshrl.u32 %v1289, 16
        %v1302 = vrot.slane %v1300, 3
        %v1303 = vshll.u32 %v1289, 16
        %v1305 = vrot.slane %v1303, 4
        %v1306 = vor.u32 %v1302, %v1305
        %v1307 = vsel %vm1290, %v1298, %v1306
        %v1325 = vunpack.c.l.b16 %v1185
        %v1326 = vunpack.c.l.b16 %v1186
        %v1327 = vunpack.c.l.b16 %v1187
        %v1328 = vunpack.c.l.b16 %v1188
        %v1329 = vunpack.c.l.b16 %v1189
        %v1330 = vunpack.c.l.b16 %v1190
        %v1331 = vunpack.c.l.b16 %v1191
        %v1332 = vunpack.c.l.b16 %v1192
        %v1333 = vunpack.c.l.b16 %v1193
        %v1334 = vunpack.c.l.b16 %v1194
        %v1335 = vunpack.c.l.b16 %v1195
        %v1336 = vunpack.c.l.b16 %v1196
        %v1337 = vunpack.c.l.b16 %v1197
        %v1338 = vunpack.c.l.b16 %v1198
        %v1339 = vunpack.c.l.b16 %v1199
        %v1340 = vunpack.c.l.b16 %v1200
        %v1341 = vpack.c.b16 %v1326, %v1325
        %v1342 = vpack.c.b16 %v1328, %v1327
        %v1343 = vpack.c.b16 %v1330, %v1329
        %v1344 = vpack.c.b16 %v1332, %v1331
        %v1345 = vpack.c.b16 %v1334, %v1333
        %v1346 = vpack.c.b16 %v1336, %v1335
        %v1347 = vpack.c.b16 %v1338, %v1337
        %v1348 = vpack.c.b16 %v1340, %v1339
        %1357 = vmatpush.bf16.msra.mxu0 %v1348
        %1358 = vmatpush.bf16.msra.mxu0 %v1347
        %1359 = vmatpush.bf16.msra.mxu0 %v1346
        %1360 = vmatpush.bf16.msra.mxu0 %v1345
        %1361 = vmatpush.bf16.msra.mxu0 %v1344
        %1362 = vmatpush.bf16.msra.mxu0 %v1343
        %1363 = vmatpush.bf16.msra.mxu0 %v1342
        %1364 = vmatpush.bf16.msra.mxu0 %v1341
        %1365 = vmatmul.bf16.gmra.mxu0 %v1307
        %v1366 = vpop.f32.mrf.mxu0
        %v1367 = vadd.f32 %v1282, %v1366
        %v1368 = vpop.f32.mrf.mxu0
        %v1369 = vadd.f32 %v1284, %v1368
        %1370 = vdwg.mxu0
        %v1371 = vld [vmem:[#allocation2 + $0x8] sm:$0xf]
        %v1372 = vld [vmem:[#allocation2 + $0xc] sm:$0xf]
        %v1373 = vld [vmem:[#allocation2 + $0x10] sm:$0x1]
        %s1374 = scalar_lea.vmem [#allocation5], 128
        %v1375 = vld [vmem:[%s1374] sm:$0xf]
        %v1376 = vld [vmem:[%s1374 + $0x4] sm:$0xf]
        %v1377 = vld [vmem:[%s1374 + $0x8] sm:$0xf]
        %v1378 = vld [vmem:[%s1374 + $0xc] sm:$0xf]
        %v1379 = vld [vmem:[%s1374 + $0x10] sm:$0xf]
        %v1380 = vld [vmem:[%s1374 + $0x14] sm:$0xf]
        %v1381 = vld [vmem:[%s1374 + $0x18] sm:$0xf]
        %v1382 = vld [vmem:[%s1374 + $0x1c] sm:$0xf]
        %v1383 = vld [vmem:[%s1374 + $0x20] sm:$0xf]
        %v1384 = vld [vmem:[%s1374 + $0x24] sm:$0xf]
        %v1385 = vld [vmem:[%s1374 + $0x28] sm:$0xf]
        %v1386 = vld [vmem:[%s1374 + $0x2c] sm:$0xf]
        %v1387 = vld [vmem:[%s1374 + $0x30] sm:$0xf]
        %v1388 = vld [vmem:[%s1374 + $0x34] sm:$0xf]
        %v1389 = vld [vmem:[%s1374 + $0x38] sm:$0xf]
        %v1390 = vld [vmem:[%s1374 + $0x3c] sm:$0xf]
        %v1394 = vunpack.c.l.b16 %v1371
        %v1395 = vunpack.c.l.b16 %v1372
        %v1396 = vunpack.c.l.b16 %v1373
        %v1397 = vpack.c.b16 %v1395, %v1394
        %v1398 = vpack.c.b16 %v1396, %v1396
        %vm1399 = vsmask.f32 7424
        %v1401 = vshrl.u32 %v1397, 16
        %v1403 = vshll.u32 %v1397, 16
        %v1405 = vrot.slane %v1403, 1
        %v1406 = vor.u32 %v1401, %v1405
        %v1408 = vshll.u32 %v1398, 16
        %v1410 = vrot.slane %v1408, 1
        %v1411 = vsel %vm1399, %v1406, %v1410
        %v1429 = vunpack.c.l.b16 %v1375
        %v1430 = vunpack.c.l.b16 %v1376
        %v1431 = vunpack.c.l.b16 %v1377
        %v1432 = vunpack.c.l.b16 %v1378
        %v1433 = vunpack.c.l.b16 %v1379
        %v1434 = vunpack.c.l.b16 %v1380
        %v1435 = vunpack.c.l.b16 %v1381
        %v1436 = vunpack.c.l.b16 %v1382
        %v1437 = vunpack.c.l.b16 %v1383
        %v1438 = vunpack.c.l.b16 %v1384
        %v1439 = vunpack.c.l.b16 %v1385
        %v1440 = vunpack.c.l.b16 %v1386
        %v1441 = vunpack.c.l.b16 %v1387
        %v1442 = vunpack.c.l.b16 %v1388
        %v1443 = vunpack.c.l.b16 %v1389
        %v1444 = vunpack.c.l.b16 %v1390
        %v1445 = vpack.c.b16 %v1430, %v1429
        %v1446 = vpack.c.b16 %v1432, %v1431
        %v1447 = vpack.c.b16 %v1434, %v1433
        %v1448 = vpack.c.b16 %v1436, %v1435
        %v1449 = vpack.c.b16 %v1438, %v1437
        %v1450 = vpack.c.b16 %v1440, %v1439
        %v1451 = vpack.c.b16 %v1442, %v1441
        %v1452 = vpack.c.b16 %v1444, %v1443
        %1461 = vmatpush.bf16.msra.mxu0 %v1452
        %1462 = vmatpush.bf16.msra.mxu0 %v1451
        %1463 = vmatpush.bf16.msra.mxu0 %v1450
        %1464 = vmatpush.bf16.msra.mxu0 %v1449
        %1465 = vmatpush.bf16.msra.mxu0 %v1448
        %1466 = vmatpush.bf16.msra.mxu0 %v1447
        %1467 = vmatpush.bf16.msra.mxu0 %v1446
        %1468 = vmatpush.bf16.msra.mxu0 %v1445
        %1469 = vmatmul.bf16.gmra.mxu0 %v1411
        %v1470 = vpop.f32.mrf.mxu0
        %v1471 = vadd.f32 0.0, %v1470
        %v1472 = vpop.f32.mrf.mxu0
        %v1473 = vadd.f32 0.0, %v1472
        %1474 = vdwg.mxu0
        %v1475 = vadd.f32 %v1367, %v1471
        %v1476 = vadd.f32 %v1369, %v1473
        %v1477 = vld [vmem:[%s6] sm:$0x1]
        %v1479 = vperm.slane %v1477, 0
        %v1481 = vadd.f32 %v1475, %v1479
        %v1482 = vadd.f32 %v1476, %v1479
        %v1483 = vpack.c.bf16 %v1481, %v1481
        %v1484 = vpack.c.bf16 %v1482, %v1482
        %1485 = vst [vmem:[#allocation2 + $0x8] sm:$0xf] %v1483
        %1486 = vst [vmem:[#allocation2 + $0xc] sm:$0xf] %v1484
        %v1487 = vld [vmem:[#allocation2 + $0x4] sm:$0xc]
        %v1488 = vld [vmem:[#allocation2 + $0x8] sm:$0xf]
        %v1489 = vld [vmem:[#allocation2 + $0xc] sm:$0x7]
        %v1490 = vld [vmem:[#allocation7] sm:$0xf]
        %v1491 = vld [vmem:[#allocation7 + $0x4] sm:$0xf]
        %v1492 = vld [vmem:[#allocation7 + $0x8] sm:$0xf]
        %v1493 = vld [vmem:[#allocation7 + $0xc] sm:$0xf]
        %v1494 = vld [vmem:[#allocation7 + $0x10] sm:$0xf]
        %v1495 = vld [vmem:[#allocation7 + $0x14] sm:$0xf]
        %v1496 = vld [vmem:[#allocation7 + $0x18] sm:$0xf]
        %v1497 = vld [vmem:[#allocation7 + $0x1c] sm:$0xf]
        %v1498 = vld [vmem:[#allocation7 + $0x20] sm:$0xf]
        %v1499 = vld [vmem:[#allocation7 + $0x24] sm:$0xf]
        %v1500 = vld [vmem:[#allocation7 + $0x28] sm:$0xf]
        %v1501 = vld [vmem:[#allocation7 + $0x2c] sm:$0xf]
        %v1502 = vld [vmem:[#allocation7 + $0x30] sm:$0xf]
        %v1503 = vld [vmem:[#allocation7 + $0x34] sm:$0xf]
        %v1504 = vld [vmem:[#allocation7 + $0x38] sm:$0xf]
        %v1505 = vld [vmem:[#allocation7 + $0x3c] sm:$0xf]
        %v1506 = vld [vmem:[#allocation2 + $0xc] sm:$0xf]
        %s1507 = scalar_lea.vmem [#allocation7], 64
        %v1508 = vld [vmem:[%s1507] sm:$0xf]
        %v1509 = vld [vmem:[%s1507 + $0x4] sm:$0xf]
        %v1510 = vld [vmem:[%s1507 + $0x8] sm:$0xf]
        %v1511 = vld [vmem:[%s1507 + $0xc] sm:$0xf]
        %v1512 = vld [vmem:[%s1507 + $0x10] sm:$0xf]
        %v1513 = vld [vmem:[%s1507 + $0x14] sm:$0xf]
        %v1514 = vld [vmem:[%s1507 + $0x18] sm:$0xf]
        %v1515 = vld [vmem:[%s1507 + $0x1c] sm:$0xf]
        %v1516 = vld [vmem:[%s1507 + $0x20] sm:$0xf]
        %v1517 = vld [vmem:[%s1507 + $0x24] sm:$0xf]
        %v1518 = vld [vmem:[%s1507 + $0x28] sm:$0xf]
        %v1519 = vld [vmem:[%s1507 + $0x2c] sm:$0xf]
        %v1520 = vld [vmem:[%s1507 + $0x30] sm:$0xf]
        %v1521 = vld [vmem:[%s1507 + $0x34] sm:$0xf]
        %v1522 = vld [vmem:[%s1507 + $0x38] sm:$0xf]
        %v1523 = vld [vmem:[%s1507 + $0x3c] sm:$0xf]
        %v1526 = vunpack.c.l.b16 %v1488
        %v1527 = vunpack.c.l.b16 %v1506
        %v1528 = vpack.c.b16 %v1527, %v1526
        %v1546 = vunpack.c.l.b16 %v1508
        %v1547 = vunpack.c.l.b16 %v1509
        %v1548 = vunpack.c.l.b16 %v1510
        %v1549 = vunpack.c.l.b16 %v1511
        %v1550 = vunpack.c.l.b16 %v1512
        %v1551 = vunpack.c.l.b16 %v1513
        %v1552 = vunpack.c.l.b16 %v1514
        %v1553 = vunpack.c.l.b16 %v1515
        %v1554 = vunpack.c.l.b16 %v1516
        %v1555 = vunpack.c.l.b16 %v1517
        %v1556 = vunpack.c.l.b16 %v1518
        %v1557 = vunpack.c.l.b16 %v1519
        %v1558 = vunpack.c.l.b16 %v1520
        %v1559 = vunpack.c.l.b16 %v1521
        %v1560 = vunpack.c.l.b16 %v1522
        %v1561 = vunpack.c.l.b16 %v1523
        %v1562 = vpack.c.b16 %v1547, %v1546
        %v1563 = vpack.c.b16 %v1549, %v1548
        %v1564 = vpack.c.b16 %v1551, %v1550
        %v1565 = vpack.c.b16 %v1553, %v1552
        %v1566 = vpack.c.b16 %v1555, %v1554
        %v1567 = vpack.c.b16 %v1557, %v1556
        %v1568 = vpack.c.b16 %v1559, %v1558
        %v1569 = vpack.c.b16 %v1561, %v1560
        %1578 = vmatpush.bf16.msra.mxu0 %v1569
        %1579 = vmatpush.bf16.msra.mxu0 %v1568
        %1580 = vmatpush.bf16.msra.mxu0 %v1567
        %1581 = vmatpush.bf16.msra.mxu0 %v1566
        %1582 = vmatpush.bf16.msra.mxu0 %v1565
        %1583 = vmatpush.bf16.msra.mxu0 %v1564
        %1584 = vmatpush.bf16.msra.mxu0 %v1563
        %1585 = vmatpush.bf16.msra.mxu0 %v1562
        %1586 = vmatmul.bf16.gmra.mxu0 %v1528
        %v1587 = vpop.f32.mrf.mxu0
        %v1588 = vadd.f32 0.0, %v1587
        %v1589 = vpop.f32.mrf.mxu0
        %v1590 = vadd.f32 0.0, %v1589
        %1591 = vdwg.mxu0
        %v1594 = vunpack.c.l.b16 %v1487
        %v1595 = vunpack.c.l.b16 %v1489
        %v1596 = vpack.c.b16 %v1526, %v1594
        %v1597 = vpack.c.b16 %v1595, %v1595
        %vm1598 = vsmask.f32 5376
        %v1600 = vshrl.u32 %v1596, 16
        %v1602 = vrot.slane %v1600, 2
        %v1603 = vshll.u32 %v1596, 16
        %v1605 = vrot.slane %v1603, 3
        %v1606 = vor.u32 %v1602, %v1605
        %v1608 = vshrl.u32 %v1597, 16
        %v1610 = vrot.slane %v1608, 2
        %v1611 = vshll.u32 %v1597, 16
        %v1613 = vrot.slane %v1611, 3
        %v1614 = vor.u32 %v1610, %v1613
        %v1615 = vsel %vm1598, %v1606, %v1614
        %v1633 = vunpack.c.l.b16 %v1490
        %v1634 = vunpack.c.l.b16 %v1491
        %v1635 = vunpack.c.l.b16 %v1492
        %v1636 = vunpack.c.l.b16 %v1493
        %v1637 = vunpack.c.l.b16 %v1494
        %v1638 = vunpack.c.l.b16 %v1495
        %v1639 = vunpack.c.l.b16 %v1496
        %v1640 = vunpack.c.l.b16 %v1497
        %v1641 = vunpack.c.l.b16 %v1498
        %v1642 = vunpack.c.l.b16 %v1499
        %v1643 = vunpack.c.l.b16 %v1500
        %v1644 = vunpack.c.l.b16 %v1501
        %v1645 = vunpack.c.l.b16 %v1502
        %v1646 = vunpack.c.l.b16 %v1503
        %v1647 = vunpack.c.l.b16 %v1504
        %v1648 = vunpack.c.l.b16 %v1505
        %v1649 = vpack.c.b16 %v1634, %v1633
        %v1650 = vpack.c.b16 %v1636, %v1635
        %v1651 = vpack.c.b16 %v1638, %v1637
        %v1652 = vpack.c.b16 %v1640, %v1639
        %v1653 = vpack.c.b16 %v1642, %v1641
        %v1654 = vpack.c.b16 %v1644, %v1643
        %v1655 = vpack.c.b16 %v1646, %v1645
        %v1656 = vpack.c.b16 %v1648, %v1647
        %1665 = vmatpush.bf16.msra.mxu0 %v1656
        %1666 = vmatpush.bf16.msra.mxu0 %v1655
        %1667 = vmatpush.bf16.msra.mxu0 %v1654
        %1668 = vmatpush.bf16.msra.mxu0 %v1653
        %1669 = vmatpush.bf16.msra.mxu0 %v1652
        %1670 = vmatpush.bf16.msra.mxu0 %v1651
        %1671 = vmatpush.bf16.msra.mxu0 %v1650
        %1672 = vmatpush.bf16.msra.mxu0 %v1649
        %1673 = vmatmul.bf16.gmra.mxu0 %v1615
        %v1674 = vpop.f32.mrf.mxu0
        %v1675 = vadd.f32 %v1588, %v1674
        %v1676 = vpop.f32.mrf.mxu0
        %v1677 = vadd.f32 %v1590, %v1676
        %1678 = vdwg.mxu0
        %v1679 = vld [vmem:[#allocation2 + $0x8] sm:$0xe]
        %v1680 = vld [vmem:[#allocation2 + $0xc] sm:$0xf]
        %v1681 = vld [vmem:[#allocation2 + $0x10] sm:$0x3]
        %s1682 = scalar_lea.vmem [#allocation7], 128
        %v1683 = vld [vmem:[%s1682] sm:$0xf]
        %v1684 = vld [vmem:[%s1682 + $0x4] sm:$0xf]
        %v1685 = vld [vmem:[%s1682 + $0x8] sm:$0xf]
        %v1686 = vld [vmem:[%s1682 + $0xc] sm:$0xf]
        %v1687 = vld [vmem:[%s1682 + $0x10] sm:$0xf]
        %v1688 = vld [vmem:[%s1682 + $0x14] sm:$0xf]
        %v1689 = vld [vmem:[%s1682 + $0x18] sm:$0xf]
        %v1690 = vld [vmem:[%s1682 + $0x1c] sm:$0xf]
        %v1691 = vld [vmem:[%s1682 + $0x20] sm:$0xf]
        %v1692 = vld [vmem:[%s1682 + $0x24] sm:$0xf]
        %v1693 = vld [vmem:[%s1682 + $0x28] sm:$0xf]
        %v1694 = vld [vmem:[%s1682 + $0x2c] sm:$0xf]
        %v1695 = vld [vmem:[%s1682 + $0x30] sm:$0xf]
        %v1696 = vld [vmem:[%s1682 + $0x34] sm:$0xf]
        %v1697 = vld [vmem:[%s1682 + $0x38] sm:$0xf]
        %v1698 = vld [vmem:[%s1682 + $0x3c] sm:$0xf]
        %v1702 = vunpack.c.l.b16 %v1679
        %v1703 = vunpack.c.l.b16 %v1680
        %v1704 = vunpack.c.l.b16 %v1681
        %v1705 = vpack.c.b16 %v1703, %v1702
        %v1706 = vpack.c.b16 %v1704, %v1704
        %vm1707 = vsmask.f32 6400
        %v1709 = vshrl.u32 %v1705, 16
        %v1711 = vrot.slane %v1709, 1
        %v1712 = vshll.u32 %v1705, 16
        %v1714 = vrot.slane %v1712, 2
        %v1715 = vor.u32 %v1711, %v1714
        %v1717 = vshrl.u32 %v1706, 16
        %v1719 = vrot.slane %v1717, 1
        %v1720 = vshll.u32 %v1706, 16
        %v1722 = vrot.slane %v1720, 2
        %v1723 = vor.u32 %v1719, %v1722
        %v1724 = vsel %vm1707, %v1715, %v1723
        %v1742 = vunpack.c.l.b16 %v1683
        %v1743 = vunpack.c.l.b16 %v1684
        %v1744 = vunpack.c.l.b16 %v1685
        %v1745 = vunpack.c.l.b16 %v1686
        %v1746 = vunpack.c.l.b16 %v1687
        %v1747 = vunpack.c.l.b16 %v1688
        %v1748 = vunpack.c.l.b16 %v1689
        %v1749 = vunpack.c.l.b16 %v1690
        %v1750 = vunpack.c.l.b16 %v1691
        %v1751 = vunpack.c.l.b16 %v1692
        %v1752 = vunpack.c.l.b16 %v1693
        %v1753 = vunpack.c.l.b16 %v1694
        %v1754 = vunpack.c.l.b16 %v1695
        %v1755 = vunpack.c.l.b16 %v1696
        %v1756 = vunpack.c.l.b16 %v1697
        %v1757 = vunpack.c.l.b16 %v1698
        %v1758 = vpack.c.b16 %v1743, %v1742
        %v1759 = vpack.c.b16 %v1745, %v1744
        %v1760 = vpack.c.b16 %v1747, %v1746
        %v1761 = vpack.c.b16 %v1749, %v1748
        %v1762 = vpack.c.b16 %v1751, %v1750
        %v1763 = vpack.c.b16 %v1753, %v1752
        %v1764 = vpack.c.b16 %v1755, %v1754
        %v1765 = vpack.c.b16 %v1757, %v1756
        %1774 = vmatpush.bf16.msra.mxu0 %v1765
        %1775 = vmatpush.bf16.msra.mxu0 %v1764
        %1776 = vmatpush.bf16.msra.mxu0 %v1763
        %1777 = vmatpush.bf16.msra.mxu0 %v1762
        %1778 = vmatpush.bf16.msra.mxu0 %v1761
        %1779 = vmatpush.bf16.msra.mxu0 %v1760
        %1780 = vmatpush.bf16.msra.mxu0 %v1759
        %1781 = vmatpush.bf16.msra.mxu0 %v1758
        %1782 = vmatmul.bf16.gmra.mxu0 %v1724
        %v1783 = vpop.f32.mrf.mxu0
        %v1784 = vadd.f32 0.0, %v1783
        %v1785 = vpop.f32.mrf.mxu0
        %v1786 = vadd.f32 0.0, %v1785
        %1787 = vdwg.mxu0
        %v1788 = vadd.f32 %v1675, %v1784
        %v1789 = vadd.f32 %v1677, %v1786
        %v1790 = vld [vmem:[%s8] sm:$0x1]
        %v1792 = vperm.slane %v1790, 0
        %v1794 = vadd.f32 %v1788, %v1792
        %v1795 = vadd.f32 %v1789, %v1792
        %v1796 = vadd.f32 %v1050, %v1794
        %v1797 = vadd.f32 %v1052, %v1795
        %v1798 = vpack.c.bf16 %v1796, %v1796
        %v1799 = vpack.c.bf16 %v1797, %v1797
        %1800 = vst [vmem:[#allocation2 + $0x8] sm:$0xf] %v1798
        %1801 = vst [vmem:[#allocation2 + $0xc] sm:$0xf] %v1799
        %v1802 = vld [vmem:[#allocation2 + $0x8] sm:$0xf]
        %v1803 = vld [vmem:[#allocation2 + $0xc] sm:$0xf]
        %v1804 = vld [vmem:[#allocation8] sm:$0xf]
        %v1805 = vld [vmem:[#allocation8 + $0x4] sm:$0xf]
        %v1806 = vld [vmem:[#allocation8 + $0x8] sm:$0xf]
        %v1807 = vld [vmem:[#allocation8 + $0xc] sm:$0xf]
        %v1808 = vld [vmem:[#allocation8 + $0x10] sm:$0xf]
        %v1809 = vld [vmem:[#allocation8 + $0x14] sm:$0xf]
        %v1810 = vld [vmem:[#allocation8 + $0x18] sm:$0xf]
        %v1811 = vld [vmem:[#allocation8 + $0x1c] sm:$0xf]
        %v1812 = vld [vmem:[#allocation8 + $0x20] sm:$0xf]
        %v1813 = vld [vmem:[#allocation8 + $0x24] sm:$0xf]
        %v1814 = vld [vmem:[#allocation8 + $0x28] sm:$0xf]
        %v1815 = vld [vmem:[#allocation8 + $0x2c] sm:$0xf]
        %v1816 = vld [vmem:[#allocation8 + $0x30] sm:$0xf]
        %v1817 = vld [vmem:[#allocation8 + $0x34] sm:$0xf]
        %v1818 = vld [vmem:[#allocation8 + $0x38] sm:$0xf]
        %v1819 = vld [vmem:[#allocation8 + $0x3c] sm:$0xf]
        %v1820 = vld [vmem:[%s10] sm:$0x1]
        %v1822 = vperm.slane %v1820, 0
        %v1826 = vunpack.c.l.b16 %v1802
        %v1827 = vunpack.c.l.b16 %v1803
        %v1828 = vpack.c.b16 %v1827, %v1826
        %v1846 = vunpack.c.l.b16 %v1804
        %v1847 = vunpack.c.l.b16 %v1805
        %v1848 = vunpack.c.l.b16 %v1806
        %v1849 = vunpack.c.l.b16 %v1807
        %v1850 = vunpack.c.l.b16 %v1808
        %v1851 = vunpack.c.l.b16 %v1809
        %v1852 = vunpack.c.l.b16 %v1810
        %v1853 = vunpack.c.l.b16 %v1811
        %v1854 = vunpack.c.l.b16 %v1812
        %v1855 = vunpack.c.l.b16 %v1813
        %v1856 = vunpack.c.l.b16 %v1814
        %v1857 = vunpack.c.l.b16 %v1815
        %v1858 = vunpack.c.l.b16 %v1816
        %v1859 = vunpack.c.l.b16 %v1817
        %v1860 = vunpack.c.l.b16 %v1818
        %v1861 = vunpack.c.l.b16 %v1819
        %v1862 = vpack.c.b16 %v1847, %v1846
        %v1863 = vpack.c.b16 %v1849, %v1848
        %v1864 = vpack.c.b16 %v1851, %v1850
        %v1865 = vpack.c.b16 %v1853, %v1852
        %v1866 = vpack.c.b16 %v1855, %v1854
        %v1867 = vpack.c.b16 %v1857, %v1856
        %v1868 = vpack.c.b16 %v1859, %v1858
        %v1869 = vpack.c.b16 %v1861, %v1860
        %1878 = vmatpush.bf16.msra.mxu0 %v1869
        %1879 = vmatpush.bf16.msra.mxu0 %v1868
        %1880 = vmatpush.bf16.msra.mxu0 %v1867
        %1881 = vmatpush.bf16.msra.mxu0 %v1866
        %1882 = vmatpush.bf16.msra.mxu0 %v1865
        %1883 = vmatpush.bf16.msra.mxu0 %v1864
        %1884 = vmatpush.bf16.msra.mxu0 %v1863
        %1885 = vmatpush.bf16.msra.mxu0 %v1862
        %1886 = vmatmul.bf16.gmra.mxu0 %v1828
        %v1887 = vpop.f32.mrf.mxu0
        %v1888 = vadd.f32 %v1822, %v1887
        %v1889 = vpop.f32.mrf.mxu0
        %v1890 = vadd.f32 %v1822, %v1889
        %1891 = vdwg.mxu0
        %v1892 = vpack.c.bf16 %v1888, %v1888
        %v1893 = vpack.c.bf16 %v1890, %v1890
        %1894 = vst [vmem:[#allocation2 + $0x8] sm:$0xf] %v1892
        %1895 = vst [vmem:[#allocation2 + $0xc] sm:$0xf] %v1893
        %v1896 = vld [vmem:[#allocation2 + $0x4] sm:$0x8]
        %v1897 = vld [vmem:[#allocation2 + $0x8] sm:$0xf]
        %v1898 = vld [vmem:[#allocation2 + $0xc] sm:$0x7]
        %v1899 = vld [vmem:[%s11] sm:$0xf]
        %v1900 = vld [vmem:[%s11 + $0x4] sm:$0xf]
        %v1901 = vld [vmem:[%s11 + $0x8] sm:$0xf]
        %v1902 = vld [vmem:[%s11 + $0xc] sm:$0xf]
        %v1903 = vld [vmem:[%s11 + $0x10] sm:$0xf]
        %v1904 = vld [vmem:[%s11 + $0x14] sm:$0xf]
        %v1905 = vld [vmem:[%s11 + $0x18] sm:$0xf]
        %v1906 = vld [vmem:[%s11 + $0x1c] sm:$0xf]
        %v1907 = vld [vmem:[%s11 + $0x20] sm:$0xf]
        %v1908 = vld [vmem:[%s11 + $0x24] sm:$0xf]
        %v1909 = vld [vmem:[%s11 + $0x28] sm:$0xf]
        %v1910 = vld [vmem:[%s11 + $0x2c] sm:$0xf]
        %v1911 = vld [vmem:[%s11 + $0x30] sm:$0xf]
        %v1912 = vld [vmem:[%s11 + $0x34] sm:$0xf]
        %v1913 = vld [vmem:[%s11 + $0x38] sm:$0xf]
        %v1914 = vld [vmem:[%s11 + $0x3c] sm:$0xf]
        %v1915 = vld [vmem:[#allocation2 + $0xc] sm:$0xf]
        %s1916 = scalar_lea.vmem %s11, 64
        %v1917 = vld [vmem:[%s1916] sm:$0xf]
        %v1918 = vld [vmem:[%s1916 + $0x4] sm:$0xf]
        %v1919 = vld [vmem:[%s1916 + $0x8] sm:$0xf]
        %v1920 = vld [vmem:[%s1916 + $0xc] sm:$0xf]
        %v1921 = vld [vmem:[%s1916 + $0x10] sm:$0xf]
        %v1922 = vld [vmem:[%s1916 + $0x14] sm:$0xf]
        %v1923 = vld [vmem:[%s1916 + $0x18] sm:$0xf]
        %v1924 = vld [vmem:[%s1916 + $0x1c] sm:$0xf]
        %v1925 = vld [vmem:[%s1916 + $0x20] sm:$0xf]
        %v1926 = vld [vmem:[%s1916 + $0x24] sm:$0xf]
        %v1927 = vld [vmem:[%s1916 + $0x28] sm:$0xf]
        %v1928 = vld [vmem:[%s1916 + $0x2c] sm:$0xf]
        %v1929 = vld [vmem:[%s1916 + $0x30] sm:$0xf]
        %v1930 = vld [vmem:[%s1916 + $0x34] sm:$0xf]
        %v1931 = vld [vmem:[%s1916 + $0x38] sm:$0xf]
        %v1932 = vld [vmem:[%s1916 + $0x3c] sm:$0xf]
        %v1936 = vunpack.c.l.b16 %v1896
        %v1937 = vunpack.c.l.b16 %v1897
        %v1938 = vunpack.c.l.b16 %v1915
        %v1939 = vpack.c.b16 %v1937, %v1936
        %v1940 = vpack.c.b16 %v1938, %v1938
        %v1942 = vshrl.u32 %v1939, 16
        %v1944 = vrot.slane %v1942, 3
        %v1945 = vshll.u32 %v1939, 16
        %v1947 = vrot.slane %v1945, 4
        %v1948 = vor.u32 %v1944, %v1947
        %v1950 = vshrl.u32 %v1940, 16
        %v1952 = vrot.slane %v1950, 3
        %v1953 = vshll.u32 %v1940, 16
        %v1955 = vrot.slane %v1953, 4
        %v1956 = vor.u32 %v1952, %v1955
        %v1957 = vsel %vm1290, %v1948, %v1956
        %v1975 = vunpack.c.l.b16 %v1917
        %v1976 = vunpack.c.l.b16 %v1918
        %v1977 = vunpack.c.l.b16 %v1919
        %v1978 = vunpack.c.l.b16 %v1920
        %v1979 = vunpack.c.l.b16 %v1921
        %v1980 = vunpack.c.l.b16 %v1922
        %v1981 = vunpack.c.l.b16 %v1923
        %v1982 = vunpack.c.l.b16 %v1924
        %v1983 = vunpack.c.l.b16 %v1925
        %v1984 = vunpack.c.l.b16 %v1926
        %v1985 = vunpack.c.l.b16 %v1927
        %v1986 = vunpack.c.l.b16 %v1928
        %v1987 = vunpack.c.l.b16 %v1929
        %v1988 = vunpack.c.l.b16 %v1930
        %v1989 = vunpack.c.l.b16 %v1931
        %v1990 = vunpack.c.l.b16 %v1932
        %v1991 = vpack.c.b16 %v1976, %v1975
        %v1992 = vpack.c.b16 %v1978, %v1977
        %v1993 = vpack.c.b16 %v1980, %v1979
        %v1994 = vpack.c.b16 %v1982, %v1981
        %v1995 = vpack.c.b16 %v1984, %v1983
        %v1996 = vpack.c.b16 %v1986, %v1985
        %v1997 = vpack.c.b16 %v1988, %v1987
        %v1998 = vpack.c.b16 %v1990, %v1989
        %2007 = vmatpush.bf16.msra.mxu0 %v1998
        %2008 = vmatpush.bf16.msra.mxu0 %v1997
        %2009 = vmatpush.bf16.msra.mxu0 %v1996
        %2010 = vmatpush.bf16.msra.mxu0 %v1995
        %2011 = vmatpush.bf16.msra.mxu0 %v1994
        %2012 = vmatpush.bf16.msra.mxu0 %v1993
        %2013 = vmatpush.bf16.msra.mxu0 %v1992
        %2014 = vmatpush.bf16.msra.mxu0 %v1991
        %2015 = vmatmul.bf16.gmra.mxu0 %v1957
        %v2016 = vpop.f32.mrf.mxu0
        %v2017 = vadd.f32 0.0, %v2016
        %v2018 = vpop.f32.mrf.mxu0
        %v2019 = vadd.f32 0.0, %v2018
        %2020 = vdwg.mxu0
        %v2022 = vunpack.c.l.b16 %v1898
        %v2023 = vpack.c.b16 %v2022, %v2022
        %vm2024 = vcmask 1044480
        %v2025 = vrot.slane %v1939, 3
        %v2026 = vrot.slane %v2023, 3
        %v2027 = vsel %vm2024, %v2025, %v2026
        %v2045 = vunpack.c.l.b16 %v1899
        %v2046 = vunpack.c.l.b16 %v1900
        %v2047 = vunpack.c.l.b16 %v1901
        %v2048 = vunpack.c.l.b16 %v1902
        %v2049 = vunpack.c.l.b16 %v1903
        %v2050 = vunpack.c.l.b16 %v1904
        %v2051 = vunpack.c.l.b16 %v1905
        %v2052 = vunpack.c.l.b16 %v1906
        %v2053 = vunpack.c.l.b16 %v1907
        %v2054 = vunpack.c.l.b16 %v1908
        %v2055 = vunpack.c.l.b16 %v1909
        %v2056 = vunpack.c.l.b16 %v1910
        %v2057 = vunpack.c.l.b16 %v1911
        %v2058 = vunpack.c.l.b16 %v1912
        %v2059 = vunpack.c.l.b16 %v1913
        %v2060 = vunpack.c.l.b16 %v1914
        %v2061 = vpack.c.b16 %v2046, %v2045
        %v2062 = vpack.c.b16 %v2048, %v2047
        %v2063 = vpack.c.b16 %v2050, %v2049
        %v2064 = vpack.c.b16 %v2052, %v2051
        %v2065 = vpack.c.b16 %v2054, %v2053
        %v2066 = vpack.c.b16 %v2056, %v2055
        %v2067 = vpack.c.b16 %v2058, %v2057
        %v2068 = vpack.c.b16 %v2060, %v2059
        %2077 = vmatpush.bf16.msra.mxu0 %v2068
        %2078 = vmatpush.bf16.msra.mxu0 %v2067
        %2079 = vmatpush.bf16.msra.mxu0 %v2066
        %2080 = vmatpush.bf16.msra.mxu0 %v2065
        %2081 = vmatpush.bf16.msra.mxu0 %v2064
        %2082 = vmatpush.bf16.msra.mxu0 %v2063
        %2083 = vmatpush.bf16.msra.mxu0 %v2062
        %2084 = vmatpush.bf16.msra.mxu0 %v2061
        %2085 = vmatmul.bf16.gmra.mxu0 %v2027
        %v2086 = vpop.f32.mrf.mxu0
        %v2087 = vadd.f32 %v2017, %v2086
        %v2088 = vpop.f32.mrf.mxu0
        %v2089 = vadd.f32 %v2019, %v2088
        %2090 = vdwg.mxu0
        %s2091 = scalar_lea.vmem %s11, 128
        %v2092 = vld [vmem:[%s2091] sm:$0xf]
        %v2093 = vld [vmem:[%s2091 + $0x4] sm:$0xf]
        %v2094 = vld [vmem:[%s2091 + $0x8] sm:$0xf]
        %v2095 = vld [vmem:[%s2091 + $0xc] sm:$0xf]
        %v2096 = vld [vmem:[%s2091 + $0x10] sm:$0xf]
        %v2097 = vld [vmem:[%s2091 + $0x14] sm:$0xf]
        %v2098 = vld [vmem:[%s2091 + $0x18] sm:$0xf]
        %v2099 = vld [vmem:[%s2091 + $0x1c] sm:$0xf]
        %v2100 = vld [vmem:[%s2091 + $0x20] sm:$0xf]
        %v2101 = vld [vmem:[%s2091 + $0x24] sm:$0xf]
        %v2102 = vld [vmem:[%s2091 + $0x28] sm:$0xf]
        %v2103 = vld [vmem:[%s2091 + $0x2c] sm:$0xf]
        %v2104 = vld [vmem:[%s2091 + $0x30] sm:$0xf]
        %v2105 = vld [vmem:[%s2091 + $0x34] sm:$0xf]
        %v2106 = vld [vmem:[%s2091 + $0x38] sm:$0xf]
        %v2107 = vld [vmem:[%s2091 + $0x3c] sm:$0xf]
        %v2108 = vpack.c.b16 %v1938, %v1937
        %v2126 = vunpack.c.l.b16 %v2092
        %v2127 = vunpack.c.l.b16 %v2093
        %v2128 = vunpack.c.l.b16 %v2094
        %v2129 = vunpack.c.l.b16 %v2095
        %v2130 = vunpack.c.l.b16 %v2096
        %v2131 = vunpack.c.l.b16 %v2097
        %v2132 = vunpack.c.l.b16 %v2098
        %v2133 = vunpack.c.l.b16 %v2099
        %v2134 = vunpack.c.l.b16 %v2100
        %v2135 = vunpack.c.l.b16 %v2101
        %v2136 = vunpack.c.l.b16 %v2102
        %v2137 = vunpack.c.l.b16 %v2103
        %v2138 = vunpack.c.l.b16 %v2104
        %v2139 = vunpack.c.l.b16 %v2105
        %v2140 = vunpack.c.l.b16 %v2106
        %v2141 = vunpack.c.l.b16 %v2107
        %v2142 = vpack.c.b16 %v2127, %v2126
        %v2143 = vpack.c.b16 %v2129, %v2128
        %v2144 = vpack.c.b16 %v2131, %v2130
        %v2145 = vpack.c.b16 %v2133, %v2132
        %v2146 = vpack.c.b16 %v2135, %v2134
        %v2147 = vpack.c.b16 %v2137, %v2136
        %v2148 = vpack.c.b16 %v2139, %v2138
        %v2149 = vpack.c.b16 %v2141, %v2140
        %2158 = vmatpush.bf16.msra.mxu0 %v2149
        %2159 = vmatpush.bf16.msra.mxu0 %v2148
        %2160 = vmatpush.bf16.msra.mxu0 %v2147
        %2161 = vmatpush.bf16.msra.mxu0 %v2146
        %2162 = vmatpush.bf16.msra.mxu0 %v2145
        %2163 = vmatpush.bf16.msra.mxu0 %v2144
        %2164 = vmatpush.bf16.msra.mxu0 %v2143
        %2165 = vmatpush.bf16.msra.mxu0 %v2142
        %2166 = vmatmul.bf16.gmra.mxu0 %v2108
        %v2167 = vpop.f32.mrf.mxu0
        %v2168 = vadd.f32 0.0, %v2167
        %v2169 = vpop.f32.mrf.mxu0
        %v2170 = vadd.f32 0.0, %v2169
        %2171 = vdwg.mxu0
        %v2172 = vadd.f32 %v2087, %v2168
        %v2173 = vadd.f32 %v2089, %v2170
        %v2174 = vld [vmem:[#allocation2 + $0x8] sm:$0xf]
        %v2175 = vld [vmem:[#allocation2 + $0xc] sm:$0xf]
        %v2176 = vld [vmem:[#allocation2 + $0x10] sm:$0x1]
        %s2177 = scalar_lea.vmem %s11, 192
        %v2178 = vld [vmem:[%s2177] sm:$0xf]
        %v2179 = vld [vmem:[%s2177 + $0x4] sm:$0xf]
        %v2180 = vld [vmem:[%s2177 + $0x8] sm:$0xf]
        %v2181 = vld [vmem:[%s2177 + $0xc] sm:$0xf]
        %v2182 = vld [vmem:[%s2177 + $0x10] sm:$0xf]
        %v2183 = vld [vmem:[%s2177 + $0x14] sm:$0xf]
        %v2184 = vld [vmem:[%s2177 + $0x18] sm:$0xf]
        %v2185 = vld [vmem:[%s2177 + $0x1c] sm:$0xf]
        %v2186 = vld [vmem:[%s2177 + $0x20] sm:$0xf]
        %v2187 = vld [vmem:[%s2177 + $0x24] sm:$0xf]
        %v2188 = vld [vmem:[%s2177 + $0x28] sm:$0xf]
        %v2189 = vld [vmem:[%s2177 + $0x2c] sm:$0xf]
        %v2190 = vld [vmem:[%s2177 + $0x30] sm:$0xf]
        %v2191 = vld [vmem:[%s2177 + $0x34] sm:$0xf]
        %v2192 = vld [vmem:[%s2177 + $0x38] sm:$0xf]
        %v2193 = vld [vmem:[%s2177 + $0x3c] sm:$0xf]
        %v2197 = vunpack.c.l.b16 %v2174
        %v2198 = vunpack.c.l.b16 %v2175
        %v2199 = vunpack.c.l.b16 %v2176
        %v2200 = vpack.c.b16 %v2198, %v2197
        %v2201 = vpack.c.b16 %v2199, %v2199
        %v2203 = vshrl.u32 %v2200, 16
        %v2205 = vshll.u32 %v2200, 16
        %v2207 = vrot.slane %v2205, 1
        %v2208 = vor.u32 %v2203, %v2207
        %v2210 = vshll.u32 %v2201, 16
        %v2212 = vrot.slane %v2210, 1
        %v2213 = vsel %vm1399, %v2208, %v2212
        %v2231 = vunpack.c.l.b16 %v2178
        %v2232 = vunpack.c.l.b16 %v2179
        %v2233 = vunpack.c.l.b16 %v2180
        %v2234 = vunpack.c.l.b16 %v2181
        %v2235 = vunpack.c.l.b16 %v2182
        %v2236 = vunpack.c.l.b16 %v2183
        %v2237 = vunpack.c.l.b16 %v2184
        %v2238 = vunpack.c.l.b16 %v2185
        %v2239 = vunpack.c.l.b16 %v2186
        %v2240 = vunpack.c.l.b16 %v2187
        %v2241 = vunpack.c.l.b16 %v2188
        %v2242 = vunpack.c.l.b16 %v2189
        %v2243 = vunpack.c.l.b16 %v2190
        %v2244 = vunpack.c.l.b16 %v2191
        %v2245 = vunpack.c.l.b16 %v2192
        %v2246 = vunpack.c.l.b16 %v2193
        %v2247 = vpack.c.b16 %v2232, %v2231
        %v2248 = vpack.c.b16 %v2234, %v2233
        %v2249 = vpack.c.b16 %v2236, %v2235
        %v2250 = vpack.c.b16 %v2238, %v2237
        %v2251 = vpack.c.b16 %v2240, %v2239
        %v2252 = vpack.c.b16 %v2242, %v2241
        %v2253 = vpack.c.b16 %v2244, %v2243
        %v2254 = vpack.c.b16 %v2246, %v2245
        %2263 = vmatpush.bf16.msra.mxu0 %v2254
        %2264 = vmatpush.bf16.msra.mxu0 %v2253
        %2265 = vmatpush.bf16.msra.mxu0 %v2252
        %2266 = vmatpush.bf16.msra.mxu0 %v2251
        %2267 = vmatpush.bf16.msra.mxu0 %v2250
        %2268 = vmatpush.bf16.msra.mxu0 %v2249
        %2269 = vmatpush.bf16.msra.mxu0 %v2248
        %2270 = vmatpush.bf16.msra.mxu0 %v2247
        %2271 = vmatmul.bf16.gmra.mxu0 %v2213
        %v2272 = vpop.f32.mrf.mxu0
        %v2273 = vadd.f32 0.0, %v2272
        %v2274 = vpop.f32.mrf.mxu0
        %v2275 = vadd.f32 0.0, %v2274
        %2276 = vdwg.mxu0
        %v2277 = vadd.f32 %v2172, %v2273
        %v2278 = vadd.f32 %v2173, %v2275
        %v2279 = vld [vmem:[#allocation2 + $0x8] sm:$0xe]
        %s2280 = scalar_lea.vmem %s11, 256
        %v2281 = vld [vmem:[%s2280] sm:$0xf]
        %v2282 = vld [vmem:[%s2280 + $0x4] sm:$0xf]
        %v2283 = vld [vmem:[%s2280 + $0x8] sm:$0xf]
        %v2284 = vld [vmem:[%s2280 + $0xc] sm:$0xf]
        %v2285 = vld [vmem:[%s2280 + $0x10] sm:$0xf]
        %v2286 = vld [vmem:[%s2280 + $0x14] sm:$0xf]
        %v2287 = vld [vmem:[%s2280 + $0x18] sm:$0xf]
        %v2288 = vld [vmem:[%s2280 + $0x1c] sm:$0xf]
        %v2289 = vld [vmem:[%s2280 + $0x20] sm:$0xf]
        %v2290 = vld [vmem:[%s2280 + $0x24] sm:$0xf]
        %v2291 = vld [vmem:[%s2280 + $0x28] sm:$0xf]
        %v2292 = vld [vmem:[%s2280 + $0x2c] sm:$0xf]
        %v2293 = vld [vmem:[%s2280 + $0x30] sm:$0xf]
        %v2294 = vld [vmem:[%s2280 + $0x34] sm:$0xf]
        %v2295 = vld [vmem:[%s2280 + $0x38] sm:$0xf]
        %v2296 = vld [vmem:[%s2280 + $0x3c] sm:$0xf]
        %v2298 = vunpack.c.l.b16 %v2279
        %v2299 = vpack.c.b16 %v2198, %v2298
        %vm2300 = vcmask 1046528
        %v2301 = vrot.slane %v2299, 1
        %v2302 = vrot.slane %v2201, 1
        %v2303 = vsel %vm2300, %v2301, %v2302
        %v2321 = vunpack.c.l.b16 %v2281
        %v2322 = vunpack.c.l.b16 %v2282
        %v2323 = vunpack.c.l.b16 %v2283
        %v2324 = vunpack.c.l.b16 %v2284
        %v2325 = vunpack.c.l.b16 %v2285
        %v2326 = vunpack.c.l.b16 %v2286
        %v2327 = vunpack.c.l.b16 %v2287
        %v2328 = vunpack.c.l.b16 %v2288
        %v2329 = vunpack.c.l.b16 %v2289
        %v2330 = vunpack.c.l.b16 %v2290
        %v2331 = vunpack.c.l.b16 %v2291
        %v2332 = vunpack.c.l.b16 %v2292
        %v2333 = vunpack.c.l.b16 %v2293
        %v2334 = vunpack.c.l.b16 %v2294
        %v2335 = vunpack.c.l.b16 %v2295
        %v2336 = vunpack.c.l.b16 %v2296
        %v2337 = vpack.c.b16 %v2322, %v2321
        %v2338 = vpack.c.b16 %v2324, %v2323
        %v2339 = vpack.c.b16 %v2326, %v2325
        %v2340 = vpack.c.b16 %v2328, %v2327
        %v2341 = vpack.c.b16 %v2330, %v2329
        %v2342 = vpack.c.b16 %v2332, %v2331
        %v2343 = vpack.c.b16 %v2334, %v2333
        %v2344 = vpack.c.b16 %v2336, %v2335
        %2353 = vmatpush.bf16.msra.mxu0 %v2344
        %2354 = vmatpush.bf16.msra.mxu0 %v2343
        %2355 = vmatpush.bf16.msra.mxu0 %v2342
        %2356 = vmatpush.bf16.msra.mxu0 %v2341
        %2357 = vmatpush.bf16.msra.mxu0 %v2340
        %2358 = vmatpush.bf16.msra.mxu0 %v2339
        %2359 = vmatpush.bf16.msra.mxu0 %v2338
        %2360 = vmatpush.bf16.msra.mxu0 %v2337
        %2361 = vmatmul.bf16.gmra.mxu0 %v2303
        %v2362 = vpop.f32.mrf.mxu0
        %v2363 = vadd.f32 0.0, %v2362
        %v2364 = vpop.f32.mrf.mxu0
        %v2365 = vadd.f32 0.0, %v2364
        %2366 = vdwg.mxu0
        %v2367 = vadd.f32 %v2277, %v2363
        %v2368 = vadd.f32 %v2278, %v2365
        %v2369 = vld [vmem:[%s12] sm:$0x1]
        %v2371 = vperm.slane %v2369, 0
        %v2373 = vadd.f32 %v2367, %v2371
        %v2374 = vadd.f32 %v2368, %v2371
        %v2375 = vpack.c.bf16 %v2373, %v2373
        %v2376 = vpack.c.bf16 %v2374, %v2374
        %2377 = vst [vmem:[#allocation2 + $0x8] sm:$0xf] %v2375
        %2378 = vst [vmem:[#allocation2 + $0xc] sm:$0xf] %v2376
        %v2379 = vld [vmem:[#allocation2 + $0x4] sm:$0xe]
        %v2380 = vld [vmem:[#allocation2 + $0x8] sm:$0xf]
        %v2381 = vld [vmem:[#allocation2 + $0xc] sm:$0x3]
        %v2382 = vld [vmem:[#allocation10] sm:$0xf]
        %v2383 = vld [vmem:[#allocation10 + $0x4] sm:$0xf]
        %v2384 = vld [vmem:[#allocation10 + $0x8] sm:$0xf]
        %v2385 = vld [vmem:[#allocation10 + $0xc] sm:$0xf]
        %v2386 = vld [vmem:[#allocation10 + $0x10] sm:$0xf]
        %v2387 = vld [vmem:[#allocation10 + $0x14] sm:$0xf]
        %v2388 = vld [vmem:[#allocation10 + $0x18] sm:$0xf]
        %v2389 = vld [vmem:[#allocation10 + $0x1c] sm:$0xf]
        %v2390 = vld [vmem:[#allocation10 + $0x20] sm:$0xf]
        %v2391 = vld [vmem:[#allocation10 + $0x24] sm:$0xf]
        %v2392 = vld [vmem:[#allocation10 + $0x28] sm:$0xf]
        %v2393 = vld [vmem:[#allocation10 + $0x2c] sm:$0xf]
        %v2394 = vld [vmem:[#allocation10 + $0x30] sm:$0xf]
        %v2395 = vld [vmem:[#allocation10 + $0x34] sm:$0xf]
        %v2396 = vld [vmem:[#allocation10 + $0x38] sm:$0xf]
        %v2397 = vld [vmem:[#allocation10 + $0x3c] sm:$0xf]
        %v2398 = vld [vmem:[#allocation2 + $0xc] sm:$0xf]
        %s2399 = scalar_lea.vmem [#allocation10], 64
        %v2400 = vld [vmem:[%s2399] sm:$0xf]
        %v2401 = vld [vmem:[%s2399 + $0x4] sm:$0xf]
        %v2402 = vld [vmem:[%s2399 + $0x8] sm:$0xf]
        %v2403 = vld [vmem:[%s2399 + $0xc] sm:$0xf]
        %v2404 = vld [vmem:[%s2399 + $0x10] sm:$0xf]
        %v2405 = vld [vmem:[%s2399 + $0x14] sm:$0xf]
        %v2406 = vld [vmem:[%s2399 + $0x18] sm:$0xf]
        %v2407 = vld [vmem:[%s2399 + $0x1c] sm:$0xf]
        %v2408 = vld [vmem:[%s2399 + $0x20] sm:$0xf]
        %v2409 = vld [vmem:[%s2399 + $0x24] sm:$0xf]
        %v2410 = vld [vmem:[%s2399 + $0x28] sm:$0xf]
        %v2411 = vld [vmem:[%s2399 + $0x2c] sm:$0xf]
        %v2412 = vld [vmem:[%s2399 + $0x30] sm:$0xf]
        %v2413 = vld [vmem:[%s2399 + $0x34] sm:$0xf]
        %v2414 = vld [vmem:[%s2399 + $0x38] sm:$0xf]
        %v2415 = vld [vmem:[%s2399 + $0x3c] sm:$0xf]
        %v2418 = vunpack.c.l.b16 %v2380
        %v2419 = vunpack.c.l.b16 %v2398
        %v2420 = vpack.c.b16 %v2419, %v2418
        %v2438 = vunpack.c.l.b16 %v2400
        %v2439 = vunpack.c.l.b16 %v2401
        %v2440 = vunpack.c.l.b16 %v2402
        %v2441 = vunpack.c.l.b16 %v2403
        %v2442 = vunpack.c.l.b16 %v2404
        %v2443 = vunpack.c.l.b16 %v2405
        %v2444 = vunpack.c.l.b16 %v2406
        %v2445 = vunpack.c.l.b16 %v2407
        %v2446 = vunpack.c.l.b16 %v2408
        %v2447 = vunpack.c.l.b16 %v2409
        %v2448 = vunpack.c.l.b16 %v2410
        %v2449 = vunpack.c.l.b16 %v2411
        %v2450 = vunpack.c.l.b16 %v2412
        %v2451 = vunpack.c.l.b16 %v2413
        %v2452 = vunpack.c.l.b16 %v2414
        %v2453 = vunpack.c.l.b16 %v2415
        %v2454 = vpack.c.b16 %v2439, %v2438
        %v2455 = vpack.c.b16 %v2441, %v2440
        %v2456 = vpack.c.b16 %v2443, %v2442
        %v2457 = vpack.c.b16 %v2445, %v2444
        %v2458 = vpack.c.b16 %v2447, %v2446
        %v2459 = vpack.c.b16 %v2449, %v2448
        %v2460 = vpack.c.b16 %v2451, %v2450
        %v2461 = vpack.c.b16 %v2453, %v2452
        %2470 = vmatpush.bf16.msra.mxu0 %v2461
        %2471 = vmatpush.bf16.msra.mxu0 %v2460
        %2472 = vmatpush.bf16.msra.mxu0 %v2459
        %2473 = vmatpush.bf16.msra.mxu0 %v2458
        %2474 = vmatpush.bf16.msra.mxu0 %v2457
        %2475 = vmatpush.bf16.msra.mxu0 %v2456
        %2476 = vmatpush.bf16.msra.mxu0 %v2455
        %2477 = vmatpush.bf16.msra.mxu0 %v2454
        %2478 = vmatmul.bf16.gmra.mxu0 %v2420
        %v2479 = vpop.f32.mrf.mxu0
        %v2480 = vadd.f32 0.0, %v2479
        %v2481 = vpop.f32.mrf.mxu0
        %v2482 = vadd.f32 0.0, %v2481
        %2483 = vdwg.mxu0
        %v2486 = vunpack.c.l.b16 %v2379
        %v2487 = vunpack.c.l.b16 %v2381
        %v2488 = vpack.c.b16 %v2418, %v2486
        %v2489 = vpack.c.b16 %v2487, %v2487
        %v2491 = vshrl.u32 %v2488, 16
        %v2493 = vrot.slane %v2491, 1
        %v2494 = vshll.u32 %v2488, 16
        %v2496 = vrot.slane %v2494, 2
        %v2497 = vor.u32 %v2493, %v2496
        %v2499 = vshrl.u32 %v2489, 16
        %v2501 = vrot.slane %v2499, 1
        %v2502 = vshll.u32 %v2489, 16
        %v2504 = vrot.slane %v2502, 2
        %v2505 = vor.u32 %v2501, %v2504
        %v2506 = vsel %vm1707, %v2497, %v2505
        %v2524 = vunpack.c.l.b16 %v2382
        %v2525 = vunpack.c.l.b16 %v2383
        %v2526 = vunpack.c.l.b16 %v2384
        %v2527 = vunpack.c.l.b16 %v2385
        %v2528 = vunpack.c.l.b16 %v2386
        %v2529 = vunpack.c.l.b16 %v2387
        %v2530 = vunpack.c.l.b16 %v2388
        %v2531 = vunpack.c.l.b16 %v2389
        %v2532 = vunpack.c.l.b16 %v2390
        %v2533 = vunpack.c.l.b16 %v2391
        %v2534 = vunpack.c.l.b16 %v2392
        %v2535 = vunpack.c.l.b16 %v2393
        %v2536 = vunpack.c.l.b16 %v2394
        %v2537 = vunpack.c.l.b16 %v2395
        %v2538 = vunpack.c.l.b16 %v2396
        %v2539 = vunpack.c.l.b16 %v2397
        %v2540 = vpack.c.b16 %v2525, %v2524
        %v2541 = vpack.c.b16 %v2527, %v2526
        %v2542 = vpack.c.b16 %v2529, %v2528
        %v2543 = vpack.c.b16 %v2531, %v2530
        %v2544 = vpack.c.b16 %v2533, %v2532
        %v2545 = vpack.c.b16 %v2535, %v2534
        %v2546 = vpack.c.b16 %v2537, %v2536
        %v2547 = vpack.c.b16 %v2539, %v2538
        %2556 = vmatpush.bf16.msra.mxu0 %v2547
        %2557 = vmatpush.bf16.msra.mxu0 %v2546
        %2558 = vmatpush.bf16.msra.mxu0 %v2545
        %2559 = vmatpush.bf16.msra.mxu0 %v2544
        %2560 = vmatpush.bf16.msra.mxu0 %v2543
        %2561 = vmatpush.bf16.msra.mxu0 %v2542
        %2562 = vmatpush.bf16.msra.mxu0 %v2541
        %2563 = vmatpush.bf16.msra.mxu0 %v2540
        %2564 = vmatmul.bf16.gmra.mxu0 %v2506
        %v2565 = vpop.f32.mrf.mxu0
        %v2566 = vadd.f32 %v2480, %v2565
        %v2567 = vpop.f32.mrf.mxu0
        %v2568 = vadd.f32 %v2482, %v2567
        %2569 = vdwg.mxu0
        %v2570 = vld [vmem:[#allocation2 + $0x8] sm:$0xc]
        %v2571 = vld [vmem:[#allocation2 + $0xc] sm:$0xf]
        %v2572 = vld [vmem:[#allocation2 + $0x10] sm:$0x7]
        %s2573 = scalar_lea.vmem [#allocation10], 128
        %v2574 = vld [vmem:[%s2573] sm:$0xf]
        %v2575 = vld [vmem:[%s2573 + $0x4] sm:$0xf]
        %v2576 = vld [vmem:[%s2573 + $0x8] sm:$0xf]
        %v2577 = vld [vmem:[%s2573 + $0xc] sm:$0xf]
        %v2578 = vld [vmem:[%s2573 + $0x10] sm:$0xf]
        %v2579 = vld [vmem:[%s2573 + $0x14] sm:$0xf]
        %v2580 = vld [vmem:[%s2573 + $0x18] sm:$0xf]
        %v2581 = vld [vmem:[%s2573 + $0x1c] sm:$0xf]
        %v2582 = vld [vmem:[%s2573 + $0x20] sm:$0xf]
        %v2583 = vld [vmem:[%s2573 + $0x24] sm:$0xf]
        %v2584 = vld [vmem:[%s2573 + $0x28] sm:$0xf]
        %v2585 = vld [vmem:[%s2573 + $0x2c] sm:$0xf]
        %v2586 = vld [vmem:[%s2573 + $0x30] sm:$0xf]
        %v2587 = vld [vmem:[%s2573 + $0x34] sm:$0xf]
        %v2588 = vld [vmem:[%s2573 + $0x38] sm:$0xf]
        %v2589 = vld [vmem:[%s2573 + $0x3c] sm:$0xf]
        %v2593 = vunpack.c.l.b16 %v2570
        %v2594 = vunpack.c.l.b16 %v2571
        %v2595 = vunpack.c.l.b16 %v2572
        %v2596 = vpack.c.b16 %v2594, %v2593
        %v2597 = vpack.c.b16 %v2595, %v2595
        %v2599 = vshrl.u32 %v2596, 16
        %v2601 = vrot.slane %v2599, 2
        %v2602 = vshll.u32 %v2596, 16
        %v2604 = vrot.slane %v2602, 3
        %v2605 = vor.u32 %v2601, %v2604
        %v2607 = vshrl.u32 %v2597, 16
        %v2609 = vrot.slane %v2607, 2
        %v2610 = vshll.u32 %v2597, 16
        %v2612 = vrot.slane %v2610, 3
        %v2613 = vor.u32 %v2609, %v2612
        %v2614 = vsel %vm1598, %v2605, %v2613
        %v2632 = vunpack.c.l.b16 %v2574
        %v2633 = vunpack.c.l.b16 %v2575
        %v2634 = vunpack.c.l.b16 %v2576
        %v2635 = vunpack.c.l.b16 %v2577
        %v2636 = vunpack.c.l.b16 %v2578
        %v2637 = vunpack.c.l.b16 %v2579
        %v2638 = vunpack.c.l.b16 %v2580
        %v2639 = vunpack.c.l.b16 %v2581
        %v2640 = vunpack.c.l.b16 %v2582
        %v2641 = vunpack.c.l.b16 %v2583
        %v2642 = vunpack.c.l.b16 %v2584
        %v2643 = vunpack.c.l.b16 %v2585
        %v2644 = vunpack.c.l.b16 %v2586
        %v2645 = vunpack.c.l.b16 %v2587
        %v2646 = vunpack.c.l.b16 %v2588
        %v2647 = vunpack.c.l.b16 %v2589
        %v2648 = vpack.c.b16 %v2633, %v2632
        %v2649 = vpack.c.b16 %v2635, %v2634
        %v2650 = vpack.c.b16 %v2637, %v2636
        %v2651 = vpack.c.b16 %v2639, %v2638
        %v2652 = vpack.c.b16 %v2641, %v2640
        %v2653 = vpack.c.b16 %v2643, %v2642
        %v2654 = vpack.c.b16 %v2645, %v2644
        %v2655 = vpack.c.b16 %v2647, %v2646
        %2664 = vmatpush.bf16.msra.mxu0 %v2655
        %2665 = vmatpush.bf16.msra.mxu0 %v2654
        %2666 = vmatpush.bf16.msra.mxu0 %v2653
        %2667 = vmatpush.bf16.msra.mxu0 %v2652
        %2668 = vmatpush.bf16.msra.mxu0 %v2651
        %2669 = vmatpush.bf16.msra.mxu0 %v2650
        %2670 = vmatpush.bf16.msra.mxu0 %v2649
        %2671 = vmatpush.bf16.msra.mxu0 %v2648
        %2672 = vmatmul.bf16.gmra.mxu0 %v2614
        %v2673 = vpop.f32.mrf.mxu0
        %v2674 = vadd.f32 0.0, %v2673
        %v2675 = vpop.f32.mrf.mxu0
        %v2676 = vadd.f32 0.0, %v2675
        %2677 = vdwg.mxu0
        %v2678 = vadd.f32 %v2566, %v2674
        %v2679 = vadd.f32 %v2568, %v2676
        %v2680 = vld [vmem:[%s14] sm:$0x1]
        %v2682 = vperm.slane %v2680, 0
        %v2684 = vadd.f32 %v2678, %v2682
        %v2685 = vadd.f32 %v2679, %v2682
        %v2686 = vadd.f32 %v1064, %v2684
        %v2687 = vadd.f32 %v1066, %v2685
        %v2688 = vpack.c.bf16 %v2686, %v2686
        %v2689 = vpack.c.bf16 %v2687, %v2687
        %2690 = vst [vmem:[#allocation2 + $0x8] sm:$0xf] %v2688
        %2691 = vst [vmem:[#allocation2 + $0xc] sm:$0xf] %v2689
        %v2692 = vld [vmem:[#allocation2 + $0x8] sm:$0xf]
        %v2693 = vld [vmem:[#allocation2 + $0xc] sm:$0xf]
        %v2694 = vld [vmem:[#allocation11] sm:$0xf]
        %v2695 = vld [vmem:[#allocation11 + $0x4] sm:$0xf]
        %v2696 = vld [vmem:[#allocation11 + $0x8] sm:$0xf]
        %v2697 = vld [vmem:[#allocation11 + $0xc] sm:$0xf]
        %v2698 = vld [vmem:[#allocation11 + $0x10] sm:$0xf]
        %v2699 = vld [vmem:[#allocation11 + $0x14] sm:$0xf]
        %v2700 = vld [vmem:[#allocation11 + $0x18] sm:$0xf]
        %v2701 = vld [vmem:[#allocation11 + $0x1c] sm:$0xf]
        %v2702 = vld [vmem:[#allocation11 + $0x20] sm:$0xf]
        %v2703 = vld [vmem:[#allocation11 + $0x24] sm:$0xf]
        %v2704 = vld [vmem:[#allocation11 + $0x28] sm:$0xf]
        %v2705 = vld [vmem:[#allocation11 + $0x2c] sm:$0xf]
        %v2706 = vld [vmem:[#allocation11 + $0x30] sm:$0xf]
        %v2707 = vld [vmem:[#allocation11 + $0x34] sm:$0xf]
        %v2708 = vld [vmem:[#allocation11 + $0x38] sm:$0xf]
        %v2709 = vld [vmem:[#allocation11 + $0x3c] sm:$0xf]
        %v2710 = vld [vmem:[%s16] sm:$0x1]
        %v2712 = vperm.slane %v2710, 0
        %v2716 = vunpack.c.l.b16 %v2692
        %v2717 = vunpack.c.l.b16 %v2693
        %v2718 = vpack.c.b16 %v2717, %v2716
        %v2736 = vunpack.c.l.b16 %v2694
        %v2737 = vunpack.c.l.b16 %v2695
        %v2738 = vunpack.c.l.b16 %v2696
        %v2739 = vunpack.c.l.b16 %v2697
        %v2740 = vunpack.c.l.b16 %v2698
        %v2741 = vunpack.c.l.b16 %v2699
        %v2742 = vunpack.c.l.b16 %v2700
        %v2743 = vunpack.c.l.b16 %v2701
        %v2744 = vunpack.c.l.b16 %v2702
        %v2745 = vunpack.c.l.b16 %v2703
        %v2746 = vunpack.c.l.b16 %v2704
        %v2747 = vunpack.c.l.b16 %v2705
        %v2748 = vunpack.c.l.b16 %v2706
        %v2749 = vunpack.c.l.b16 %v2707
        %v2750 = vunpack.c.l.b16 %v2708
        %v2751 = vunpack.c.l.b16 %v2709
        %v2752 = vpack.c.b16 %v2737, %v2736
        %v2753 = vpack.c.b16 %v2739, %v2738
        %v2754 = vpack.c.b16 %v2741, %v2740
        %v2755 = vpack.c.b16 %v2743, %v2742
        %v2756 = vpack.c.b16 %v2745, %v2744
        %v2757 = vpack.c.b16 %v2747, %v2746
        %v2758 = vpack.c.b16 %v2749, %v2748
        %v2759 = vpack.c.b16 %v2751, %v2750
        %2768 = vmatpush.bf16.msra.mxu0 %v2759
        %2769 = vmatpush.bf16.msra.mxu0 %v2758
        %2770 = vmatpush.bf16.msra.mxu0 %v2757
        %2771 = vmatpush.bf16.msra.mxu0 %v2756
        %2772 = vmatpush.bf16.msra.mxu0 %v2755
        %2773 = vmatpush.bf16.msra.mxu0 %v2754
        %2774 = vmatpush.bf16.msra.mxu0 %v2753
        %2775 = vmatpush.bf16.msra.mxu0 %v2752
        %2776 = vmatmul.bf16.gmra.mxu0 %v2718
        %v2777 = vpop.f32.mrf.mxu0
        %v2778 = vadd.f32 %v2712, %v2777
        %v2779 = vpop.f32.mrf.mxu0
        %v2780 = vadd.f32 %v2712, %v2779
        %2781 = vdwg.mxu0
        %v2782 = vpack.c.bf16 %v2778, %v2778
        %v2783 = vpack.c.bf16 %v2780, %v2780
        %2784 = vst [vmem:[#allocation2 + $0x8] sm:$0xf] %v2782
        %2785 = vst [vmem:[#allocation2 + $0xc] sm:$0xf] %v2783
        %v2786 = vld [vmem:[#allocation2 + $0x4] sm:$0xc]
        %v2787 = vld [vmem:[#allocation2 + $0x8] sm:$0xf]
        %v2788 = vld [vmem:[#allocation2 + $0xc] sm:$0x7]
        %v2789 = vld [vmem:[#allocation13] sm:$0xf]
        %v2790 = vld [vmem:[#allocation13 + $0x4] sm:$0xf]
        %v2791 = vld [vmem:[#allocation13 + $0x8] sm:$0xf]
        %v2792 = vld [vmem:[#allocation13 + $0xc] sm:$0xf]
        %v2793 = vld [vmem:[#allocation13 + $0x10] sm:$0xf]
        %v2794 = vld [vmem:[#allocation13 + $0x14] sm:$0xf]
        %v2795 = vld [vmem:[#allocation13 + $0x18] sm:$0xf]
        %v2796 = vld [vmem:[#allocation13 + $0x1c] sm:$0xf]
        %v2797 = vld [vmem:[#allocation13 + $0x20] sm:$0xf]
        %v2798 = vld [vmem:[#allocation13 + $0x24] sm:$0xf]
        %v2799 = vld [vmem:[#allocation13 + $0x28] sm:$0xf]
        %v2800 = vld [vmem:[#allocation13 + $0x2c] sm:$0xf]
        %v2801 = vld [vmem:[#allocation13 + $0x30] sm:$0xf]
        %v2802 = vld [vmem:[#allocation13 + $0x34] sm:$0xf]
        %v2803 = vld [vmem:[#allocation13 + $0x38] sm:$0xf]
        %v2804 = vld [vmem:[#allocation13 + $0x3c] sm:$0xf]
        %v2805 = vld [vmem:[#allocation2 + $0x4] sm:$0x8]
        %s2806 = scalar_lea.vmem [#allocation13], 64
        %v2807 = vld [vmem:[%s2806] sm:$0xf]
        %v2808 = vld [vmem:[%s2806 + $0x4] sm:$0xf]
        %v2809 = vld [vmem:[%s2806 + $0x8] sm:$0xf]
        %v2810 = vld [vmem:[%s2806 + $0xc] sm:$0xf]
        %v2811 = vld [vmem:[%s2806 + $0x10] sm:$0xf]
        %v2812 = vld [vmem:[%s2806 + $0x14] sm:$0xf]
        %v2813 = vld [vmem:[%s2806 + $0x18] sm:$0xf]
        %v2814 = vld [vmem:[%s2806 + $0x1c] sm:$0xf]
        %v2815 = vld [vmem:[%s2806 + $0x20] sm:$0xf]
        %v2816 = vld [vmem:[%s2806 + $0x24] sm:$0xf]
        %v2817 = vld [vmem:[%s2806 + $0x28] sm:$0xf]
        %v2818 = vld [vmem:[%s2806 + $0x2c] sm:$0xf]
        %v2819 = vld [vmem:[%s2806 + $0x30] sm:$0xf]
        %v2820 = vld [vmem:[%s2806 + $0x34] sm:$0xf]
        %v2821 = vld [vmem:[%s2806 + $0x38] sm:$0xf]
        %v2822 = vld [vmem:[%s2806 + $0x3c] sm:$0xf]
        %v2826 = vunpack.c.l.b16 %v2805
        %v2827 = vunpack.c.l.b16 %v2787
        %v2828 = vunpack.c.l.b16 %v2788
        %v2829 = vpack.c.b16 %v2827, %v2826
        %v2830 = vpack.c.b16 %v2828, %v2828
        %v2831 = vrot.slane %v2829, 3
        %v2832 = vrot.slane %v2830, 3
        %v2833 = vsel %vm2024, %v2831, %v2832
        %v2851 = vunpack.c.l.b16 %v2807
        %v2852 = vunpack.c.l.b16 %v2808
        %v2853 = vunpack.c.l.b16 %v2809
        %v2854 = vunpack.c.l.b16 %v2810
        %v2855 = vunpack.c.l.b16 %v2811
        %v2856 = vunpack.c.l.b16 %v2812
        %v2857 = vunpack.c.l.b16 %v2813
        %v2858 = vunpack.c.l.b16 %v2814
        %v2859 = vunpack.c.l.b16 %v2815
        %v2860 = vunpack.c.l.b16 %v2816
        %v2861 = vunpack.c.l.b16 %v2817
        %v2862 = vunpack.c.l.b16 %v2818
        %v2863 = vunpack.c.l.b16 %v2819
        %v2864 = vunpack.c.l.b16 %v2820
        %v2865 = vunpack.c.l.b16 %v2821
        %v2866 = vunpack.c.l.b16 %v2822
        %v2867 = vpack.c.b16 %v2852, %v2851
        %v2868 = vpack.c.b16 %v2854, %v2853
        %v2869 = vpack.c.b16 %v2856, %v2855
        %v2870 = vpack.c.b16 %v2858, %v2857
        %v2871 = vpack.c.b16 %v2860, %v2859
        %v2872 = vpack.c.b16 %v2862, %v2861
        %v2873 = vpack.c.b16 %v2864, %v2863
        %v2874 = vpack.c.b16 %v2866, %v2865
        %2883 = vmatpush.bf16.msra.mxu0 %v2874
        %2884 = vmatpush.bf16.msra.mxu0 %v2873
        %2885 = vmatpush.bf16.msra.mxu0 %v2872
        %2886 = vmatpush.bf16.msra.mxu0 %v2871
        %2887 = vmatpush.bf16.msra.mxu0 %v2870
        %2888 = vmatpush.bf16.msra.mxu0 %v2869
        %2889 = vmatpush.bf16.msra.mxu0 %v2868
        %2890 = vmatpush.bf16.msra.mxu0 %v2867
        %2891 = vmatmul.bf16.gmra.mxu0 %v2833
        %v2892 = vpop.f32.mrf.mxu0
        %v2893 = vadd.f32 0.0, %v2892
        %v2894 = vpop.f32.mrf.mxu0
        %v2895 = vadd.f32 0.0, %v2894
        %2896 = vdwg.mxu0
        %v2898 = vunpack.c.l.b16 %v2786
        %v2899 = vpack.c.b16 %v2827, %v2898
        %v2901 = vshrl.u32 %v2899, 16
        %v2903 = vrot.slane %v2901, 2
        %v2904 = vshll.u32 %v2899, 16
        %v2906 = vrot.slane %v2904, 3
        %v2907 = vor.u32 %v2903, %v2906
        %v2909 = vshrl.u32 %v2830, 16
        %v2911 = vrot.slane %v2909, 2
        %v2912 = vshll.u32 %v2830, 16
        %v2914 = vrot.slane %v2912, 3
        %v2915 = vor.u32 %v2911, %v2914
        %v2916 = vsel %vm1598, %v2907, %v2915
        %v2934 = vunpack.c.l.b16 %v2789
        %v2935 = vunpack.c.l.b16 %v2790
        %v2936 = vunpack.c.l.b16 %v2791
        %v2937 = vunpack.c.l.b16 %v2792
        %v2938 = vunpack.c.l.b16 %v2793
        %v2939 = vunpack.c.l.b16 %v2794
        %v2940 = vunpack.c.l.b16 %v2795
        %v2941 = vunpack.c.l.b16 %v2796
        %v2942 = vunpack.c.l.b16 %v2797
        %v2943 = vunpack.c.l.b16 %v2798
        %v2944 = vunpack.c.l.b16 %v2799
        %v2945 = vunpack.c.l.b16 %v2800
        %v2946 = vunpack.c.l.b16 %v2801
        %v2947 = vunpack.c.l.b16 %v2802
        %v2948 = vunpack.c.l.b16 %v2803
        %v2949 = vunpack.c.l.b16 %v2804
        %v2950 = vpack.c.b16 %v2935, %v2934
        %v2951 = vpack.c.b16 %v2937, %v2936
        %v2952 = vpack.c.b16 %v2939, %v2938
        %v2953 = vpack.c.b16 %v2941, %v2940
        %v2954 = vpack.c.b16 %v2943, %v2942
        %v2955 = vpack.c.b16 %v2945, %v2944
        %v2956 = vpack.c.b16 %v2947, %v2946
        %v2957 = vpack.c.b16 %v2949, %v2948
        %2966 = vmatpush.bf16.msra.mxu0 %v2957
        %2967 = vmatpush.bf16.msra.mxu0 %v2956
        %2968 = vmatpush.bf16.msra.mxu0 %v2955
        %2969 = vmatpush.bf16.msra.mxu0 %v2954
        %2970 = vmatpush.bf16.msra.mxu0 %v2953
        %2971 = vmatpush.bf16.msra.mxu0 %v2952
        %2972 = vmatpush.bf16.msra.mxu0 %v2951
        %2973 = vmatpush.bf16.msra.mxu0 %v2950
        %2974 = vmatmul.bf16.gmra.mxu0 %v2916
        %v2975 = vpop.f32.mrf.mxu0
        %v2976 = vadd.f32 %v2893, %v2975
        %v2977 = vpop.f32.mrf.mxu0
        %v2978 = vadd.f32 %v2895, %v2977
        %2979 = vdwg.mxu0
        %v2980 = vld [vmem:[#allocation2 + $0xc] sm:$0xf]
        %s2981 = scalar_lea.vmem [#allocation13], 128
        %v2982 = vld [vmem:[%s2981] sm:$0xf]
        %v2983 = vld [vmem:[%s2981 + $0x4] sm:$0xf]
        %v2984 = vld [vmem:[%s2981 + $0x8] sm:$0xf]
        %v2985 = vld [vmem:[%s2981 + $0xc] sm:$0xf]
        %v2986 = vld [vmem:[%s2981 + $0x10] sm:$0xf]
        %v2987 = vld [vmem:[%s2981 + $0x14] sm:$0xf]
        %v2988 = vld [vmem:[%s2981 + $0x18] sm:$0xf]
        %v2989 = vld [vmem:[%s2981 + $0x1c] sm:$0xf]
        %v2990 = vld [vmem:[%s2981 + $0x20] sm:$0xf]
        %v2991 = vld [vmem:[%s2981 + $0x24] sm:$0xf]
        %v2992 = vld [vmem:[%s2981 + $0x28] sm:$0xf]
        %v2993 = vld [vmem:[%s2981 + $0x2c] sm:$0xf]
        %v2994 = vld [vmem:[%s2981 + $0x30] sm:$0xf]
        %v2995 = vld [vmem:[%s2981 + $0x34] sm:$0xf]
        %v2996 = vld [vmem:[%s2981 + $0x38] sm:$0xf]
        %v2997 = vld [vmem:[%s2981 + $0x3c] sm:$0xf]
        %v2999 = vunpack.c.l.b16 %v2980
        %v3000 = vpack.c.b16 %v2999, %v2999
        %v3002 = vshrl.u32 %v2829, 16
        %v3004 = vrot.slane %v3002, 3
        %v3005 = vshll.u32 %v2829, 16
        %v3007 = vrot.slane %v3005, 4
        %v3008 = vor.u32 %v3004, %v3007
        %v3010 = vshrl.u32 %v3000, 16
        %v3012 = vrot.slane %v3010, 3
        %v3013 = vshll.u32 %v3000, 16
        %v3015 = vrot.slane %v3013, 4
        %v3016 = vor.u32 %v3012, %v3015
        %v3017 = vsel %vm1290, %v3008, %v3016
        %v3035 = vunpack.c.l.b16 %v2982
        %v3036 = vunpack.c.l.b16 %v2983
        %v3037 = vunpack.c.l.b16 %v2984
        %v3038 = vunpack.c.l.b16 %v2985
        %v3039 = vunpack.c.l.b16 %v2986
        %v3040 = vunpack.c.l.b16 %v2987
        %v3041 = vunpack.c.l.b16 %v2988
        %v3042 = vunpack.c.l.b16 %v2989
        %v3043 = vunpack.c.l.b16 %v2990
        %v3044 = vunpack.c.l.b16 %v2991
        %v3045 = vunpack.c.l.b16 %v2992
        %v3046 = vunpack.c.l.b16 %v2993
        %v3047 = vunpack.c.l.b16 %v2994
        %v3048 = vunpack.c.l.b16 %v2995
        %v3049 = vunpack.c.l.b16 %v2996
        %v3050 = vunpack.c.l.b16 %v2997
        %v3051 = vpack.c.b16 %v3036, %v3035
        %v3052 = vpack.c.b16 %v3038, %v3037
        %v3053 = vpack.c.b16 %v3040, %v3039
        %v3054 = vpack.c.b16 %v3042, %v3041
        %v3055 = vpack.c.b16 %v3044, %v3043
        %v3056 = vpack.c.b16 %v3046, %v3045
        %v3057 = vpack.c.b16 %v3048, %v3047
        %v3058 = vpack.c.b16 %v3050, %v3049
        %3067 = vmatpush.bf16.msra.mxu0 %v3058
        %3068 = vmatpush.bf16.msra.mxu0 %v3057
        %3069 = vmatpush.bf16.msra.mxu0 %v3056
        %3070 = vmatpush.bf16.msra.mxu0 %v3055
        %3071 = vmatpush.bf16.msra.mxu0 %v3054
        %3072 = vmatpush.bf16.msra.mxu0 %v3053
        %3073 = vmatpush.bf16.msra.mxu0 %v3052
        %3074 = vmatpush.bf16.msra.mxu0 %v3051
        %3075 = vmatmul.bf16.gmra.mxu0 %v3017
        %v3076 = vpop.f32.mrf.mxu0
        %v3077 = vadd.f32 0.0, %v3076
        %v3078 = vpop.f32.mrf.mxu0
        %v3079 = vadd.f32 0.0, %v3078
        %3080 = vdwg.mxu0
        %v3081 = vadd.f32 %v2976, %v3077
        %v3082 = vadd.f32 %v2978, %v3079
        %s3083 = scalar_lea.vmem [#allocation13], 192
        %v3084 = vld [vmem:[%s3083] sm:$0xf]
        %v3085 = vld [vmem:[%s3083 + $0x4] sm:$0xf]
        %v3086 = vld [vmem:[%s3083 + $0x8] sm:$0xf]
        %v3087 = vld [vmem:[%s3083 + $0xc] sm:$0xf]
        %v3088 = vld [vmem:[%s3083 + $0x10] sm:$0xf]
        %v3089 = vld [vmem:[%s3083 + $0x14] sm:$0xf]
        %v3090 = vld [vmem:[%s3083 + $0x18] sm:$0xf]
        %v3091 = vld [vmem:[%s3083 + $0x1c] sm:$0xf]
        %v3092 = vld [vmem:[%s3083 + $0x20] sm:$0xf]
        %v3093 = vld [vmem:[%s3083 + $0x24] sm:$0xf]
        %v3094 = vld [vmem:[%s3083 + $0x28] sm:$0xf]
        %v3095 = vld [vmem:[%s3083 + $0x2c] sm:$0xf]
        %v3096 = vld [vmem:[%s3083 + $0x30] sm:$0xf]
        %v3097 = vld [vmem:[%s3083 + $0x34] sm:$0xf]
        %v3098 = vld [vmem:[%s3083 + $0x38] sm:$0xf]
        %v3099 = vld [vmem:[%s3083 + $0x3c] sm:$0xf]
        %v3100 = vpack.c.b16 %v2999, %v2827
        %v3118 = vunpack.c.l.b16 %v3084
        %v3119 = vunpack.c.l.b16 %v3085
        %v3120 = vunpack.c.l.b16 %v3086
        %v3121 = vunpack.c.l.b16 %v3087
        %v3122 = vunpack.c.l.b16 %v3088
        %v3123 = vunpack.c.l.b16 %v3089
        %v3124 = vunpack.c.l.b16 %v3090
        %v3125 = vunpack.c.l.b16 %v3091
        %v3126 = vunpack.c.l.b16 %v3092
        %v3127 = vunpack.c.l.b16 %v3093
        %v3128 = vunpack.c.l.b16 %v3094
        %v3129 = vunpack.c.l.b16 %v3095
        %v3130 = vunpack.c.l.b16 %v3096
        %v3131 = vunpack.c.l.b16 %v3097
        %v3132 = vunpack.c.l.b16 %v3098
        %v3133 = vunpack.c.l.b16 %v3099
        %v3134 = vpack.c.b16 %v3119, %v3118
        %v3135 = vpack.c.b16 %v3121, %v3120
        %v3136 = vpack.c.b16 %v3123, %v3122
        %v3137 = vpack.c.b16 %v3125, %v3124
        %v3138 = vpack.c.b16 %v3127, %v3126
        %v3139 = vpack.c.b16 %v3129, %v3128
        %v3140 = vpack.c.b16 %v3131, %v3130
        %v3141 = vpack.c.b16 %v3133, %v3132
        %3150 = vmatpush.bf16.msra.mxu0 %v3141
        %3151 = vmatpush.bf16.msra.mxu0 %v3140
        %3152 = vmatpush.bf16.msra.mxu0 %v3139
        %3153 = vmatpush.bf16.msra.mxu0 %v3138
        %3154 = vmatpush.bf16.msra.mxu0 %v3137
        %3155 = vmatpush.bf16.msra.mxu0 %v3136
        %3156 = vmatpush.bf16.msra.mxu0 %v3135
        %3157 = vmatpush.bf16.msra.mxu0 %v3134
        %3158 = vmatmul.bf16.gmra.mxu0 %v3100
        %v3159 = vpop.f32.mrf.mxu0
        %v3160 = vadd.f32 0.0, %v3159
        %v3161 = vpop.f32.mrf.mxu0
        %v3162 = vadd.f32 0.0, %v3161
        %3163 = vdwg.mxu0
        %v3164 = vadd.f32 %v3081, %v3160
        %v3165 = vadd.f32 %v3082, %v3162
        %v3166 = vld [vmem:[#allocation2 + $0x8] sm:$0xf]
        %v3167 = vld [vmem:[#allocation2 + $0xc] sm:$0xf]
        %v3168 = vld [vmem:[#allocation2 + $0x10] sm:$0x1]
        %s3169 = scalar_lea.vmem [#allocation13], 256
        %v3170 = vld [vmem:[%s3169] sm:$0xf]
        %v3171 = vld [vmem:[%s3169 + $0x4] sm:$0xf]
        %v3172 = vld [vmem:[%s3169 + $0x8] sm:$0xf]
        %v3173 = vld [vmem:[%s3169 + $0xc] sm:$0xf]
        %v3174 = vld [vmem:[%s3169 + $0x10] sm:$0xf]
        %v3175 = vld [vmem:[%s3169 + $0x14] sm:$0xf]
        %v3176 = vld [vmem:[%s3169 + $0x18] sm:$0xf]
        %v3177 = vld [vmem:[%s3169 + $0x1c] sm:$0xf]
        %v3178 = vld [vmem:[%s3169 + $0x20] sm:$0xf]
        %v3179 = vld [vmem:[%s3169 + $0x24] sm:$0xf]
        %v3180 = vld [vmem:[%s3169 + $0x28] sm:$0xf]
        %v3181 = vld [vmem:[%s3169 + $0x2c] sm:$0xf]
        %v3182 = vld [vmem:[%s3169 + $0x30] sm:$0xf]
        %v3183 = vld [vmem:[%s3169 + $0x34] sm:$0xf]
        %v3184 = vld [vmem:[%s3169 + $0x38] sm:$0xf]
        %v3185 = vld [vmem:[%s3169 + $0x3c] sm:$0xf]
        %v3189 = vunpack.c.l.b16 %v3166
        %v3190 = vunpack.c.l.b16 %v3167
        %v3191 = vunpack.c.l.b16 %v3168
        %v3192 = vpack.c.b16 %v3190, %v3189
        %v3193 = vpack.c.b16 %v3191, %v3191
        %v3195 = vshrl.u32 %v3192, 16
        %v3197 = vshll.u32 %v3192, 16
        %v3199 = vrot.slane %v3197, 1
        %v3200 = vor.u32 %v3195, %v3199
        %v3202 = vshll.u32 %v3193, 16
        %v3204 = vrot.slane %v3202, 1
        %v3205 = vsel %vm1399, %v3200, %v3204
        %v3223 = vunpack.c.l.b16 %v3170
        %v3224 = vunpack.c.l.b16 %v3171
        %v3225 = vunpack.c.l.b16 %v3172
        %v3226 = vunpack.c.l.b16 %v3173
        %v3227 = vunpack.c.l.b16 %v3174
        %v3228 = vunpack.c.l.b16 %v3175
        %v3229 = vunpack.c.l.b16 %v3176
        %v3230 = vunpack.c.l.b16 %v3177
        %v3231 = vunpack.c.l.b16 %v3178
        %v3232 = vunpack.c.l.b16 %v3179
        %v3233 = vunpack.c.l.b16 %v3180
        %v3234 = vunpack.c.l.b16 %v3181
        %v3235 = vunpack.c.l.b16 %v3182
        %v3236 = vunpack.c.l.b16 %v3183
        %v3237 = vunpack.c.l.b16 %v3184
        %v3238 = vunpack.c.l.b16 %v3185
        %v3239 = vpack.c.b16 %v3224, %v3223
        %v3240 = vpack.c.b16 %v3226, %v3225
        %v3241 = vpack.c.b16 %v3228, %v3227
        %v3242 = vpack.c.b16 %v3230, %v3229
        %v3243 = vpack.c.b16 %v3232, %v3231
        %v3244 = vpack.c.b16 %v3234, %v3233
        %v3245 = vpack.c.b16 %v3236, %v3235
        %v3246 = vpack.c.b16 %v3238, %v3237
        %3255 = vmatpush.bf16.msra.mxu0 %v3246
        %3256 = vmatpush.bf16.msra.mxu0 %v3245
        %3257 = vmatpush.bf16.msra.mxu0 %v3244
        %3258 = vmatpush.bf16.msra.mxu0 %v3243
        %3259 = vmatpush.bf16.msra.mxu0 %v3242
        %3260 = vmatpush.bf16.msra.mxu0 %v3241
        %3261 = vmatpush.bf16.msra.mxu0 %v3240
        %3262 = vmatpush.bf16.msra.mxu0 %v3239
        %3263 = vmatmul.bf16.gmra.mxu0 %v3205
        %v3264 = vpop.f32.mrf.mxu0
        %v3265 = vadd.f32 0.0, %v3264
        %v3266 = vpop.f32.mrf.mxu0
        %v3267 = vadd.f32 0.0, %v3266
        %3268 = vdwg.mxu0
        %v3269 = vadd.f32 %v3164, %v3265
        %v3270 = vadd.f32 %v3165, %v3267
        %v3271 = vld [vmem:[#allocation2 + $0x8] sm:$0xe]
        %s3272 = scalar_lea.vmem [#allocation13], 320
        %v3273 = vld [vmem:[%s3272] sm:$0xf]
        %v3274 = vld [vmem:[%s3272 + $0x4] sm:$0xf]
        %v3275 = vld [vmem:[%s3272 + $0x8] sm:$0xf]
        %v3276 = vld [vmem:[%s3272 + $0xc] sm:$0xf]
        %v3277 = vld [vmem:[%s3272 + $0x10] sm:$0xf]
        %v3278 = vld [vmem:[%s3272 + $0x14] sm:$0xf]
        %v3279 = vld [vmem:[%s3272 + $0x18] sm:$0xf]
        %v3280 = vld [vmem:[%s3272 + $0x1c] sm:$0xf]
        %v3281 = vld [vmem:[%s3272 + $0x20] sm:$0xf]
        %v3282 = vld [vmem:[%s3272 + $0x24] sm:$0xf]
        %v3283 = vld [vmem:[%s3272 + $0x28] sm:$0xf]
        %v3284 = vld [vmem:[%s3272 + $0x2c] sm:$0xf]
        %v3285 = vld [vmem:[%s3272 + $0x30] sm:$0xf]
        %v3286 = vld [vmem:[%s3272 + $0x34] sm:$0xf]
        %v3287 = vld [vmem:[%s3272 + $0x38] sm:$0xf]
        %v3288 = vld [vmem:[%s3272 + $0x3c] sm:$0xf]
        %v3290 = vunpack.c.l.b16 %v3271
        %v3291 = vpack.c.b16 %v3190, %v3290
        %v3292 = vrot.slane %v3291, 1
        %v3293 = vrot.slane %v3193, 1
        %v3294 = vsel %vm2300, %v3292, %v3293
        %v3312 = vunpack.c.l.b16 %v3273
        %v3313 = vunpack.c.l.b16 %v3274
        %v3314 = vunpack.c.l.b16 %v3275
        %v3315 = vunpack.c.l.b16 %v3276
        %v3316 = vunpack.c.l.b16 %v3277
        %v3317 = vunpack.c.l.b16 %v3278
        %v3318 = vunpack.c.l.b16 %v3279
        %v3319 = vunpack.c.l.b16 %v3280
        %v3320 = vunpack.c.l.b16 %v3281
        %v3321 = vunpack.c.l.b16 %v3282
        %v3322 = vunpack.c.l.b16 %v3283
        %v3323 = vunpack.c.l.b16 %v3284
        %v3324 = vunpack.c.l.b16 %v3285
        %v3325 = vunpack.c.l.b16 %v3286
        %v3326 = vunpack.c.l.b16 %v3287
        %v3327 = vunpack.c.l.b16 %v3288
        %v3328 = vpack.c.b16 %v3313, %v3312
        %v3329 = vpack.c.b16 %v3315, %v3314
        %v3330 = vpack.c.b16 %v3317, %v3316
        %v3331 = vpack.c.b16 %v3319, %v3318
        %v3332 = vpack.c.b16 %v3321, %v3320
        %v3333 = vpack.c.b16 %v3323, %v3322
        %v3334 = vpack.c.b16 %v3325, %v3324
        %v3335 = vpack.c.b16 %v3327, %v3326
        %3344 = vmatpush.bf16.msra.mxu0 %v3335
        %3345 = vmatpush.bf16.msra.mxu0 %v3334
        %3346 = vmatpush.bf16.msra.mxu0 %v3333
        %3347 = vmatpush.bf16.msra.mxu0 %v3332
        %3348 = vmatpush.bf16.msra.mxu0 %v3331
        %3349 = vmatpush.bf16.msra.mxu0 %v3330
        %3350 = vmatpush.bf16.msra.mxu0 %v3329
        %3351 = vmatpush.bf16.msra.mxu0 %v3328
        %3352 = vmatmul.bf16.gmra.mxu0 %v3294
        %v3353 = vpop.f32.mrf.mxu0
        %v3354 = vadd.f32 0.0, %v3353
        %v3355 = vpop.f32.mrf.mxu0
        %v3356 = vadd.f32 0.0, %v3355
        %3357 = vdwg.mxu0
        %v3358 = vadd.f32 %v3269, %v3354
        %v3359 = vadd.f32 %v3270, %v3356
        %v3360 = vld [vmem:[#allocation2 + $0x10] sm:$0x3]
        %s3361 = scalar_lea.vmem [#allocation13], 384
        %v3362 = vld [vmem:[%s3361] sm:$0xf]
        %v3363 = vld [vmem:[%s3361 + $0x4] sm:$0xf]
        %v3364 = vld [vmem:[%s3361 + $0x8] sm:$0xf]
        %v3365 = vld [vmem:[%s3361 + $0xc] sm:$0xf]
        %v3366 = vld [vmem:[%s3361 + $0x10] sm:$0xf]
        %v3367 = vld [vmem:[%s3361 + $0x14] sm:$0xf]
        %v3368 = vld [vmem:[%s3361 + $0x18] sm:$0xf]
        %v3369 = vld [vmem:[%s3361 + $0x1c] sm:$0xf]
        %v3370 = vld [vmem:[%s3361 + $0x20] sm:$0xf]
        %v3371 = vld [vmem:[%s3361 + $0x24] sm:$0xf]
        %v3372 = vld [vmem:[%s3361 + $0x28] sm:$0xf]
        %v3373 = vld [vmem:[%s3361 + $0x2c] sm:$0xf]
        %v3374 = vld [vmem:[%s3361 + $0x30] sm:$0xf]
        %v3375 = vld [vmem:[%s3361 + $0x34] sm:$0xf]
        %v3376 = vld [vmem:[%s3361 + $0x38] sm:$0xf]
        %v3377 = vld [vmem:[%s3361 + $0x3c] sm:$0xf]
        %v3379 = vunpack.c.l.b16 %v3360
        %v3380 = vpack.c.b16 %v3379, %v3379
        %v3382 = vshrl.u32 %v3291, 16
        %v3384 = vrot.slane %v3382, 1
        %v3385 = vshll.u32 %v3291, 16
        %v3387 = vrot.slane %v3385, 2
        %v3388 = vor.u32 %v3384, %v3387
        %v3390 = vshrl.u32 %v3380, 16
        %v3392 = vrot.slane %v3390, 1
        %v3393 = vshll.u32 %v3380, 16
        %v3395 = vrot.slane %v3393, 2
        %v3396 = vor.u32 %v3392, %v3395
        %v3397 = vsel %vm1707, %v3388, %v3396
        %v3415 = vunpack.c.l.b16 %v3362
        %v3416 = vunpack.c.l.b16 %v3363
        %v3417 = vunpack.c.l.b16 %v3364
        %v3418 = vunpack.c.l.b16 %v3365
        %v3419 = vunpack.c.l.b16 %v3366
        %v3420 = vunpack.c.l.b16 %v3367
        %v3421 = vunpack.c.l.b16 %v3368
        %v3422 = vunpack.c.l.b16 %v3369
        %v3423 = vunpack.c.l.b16 %v3370
        %v3424 = vunpack.c.l.b16 %v3371
        %v3425 = vunpack.c.l.b16 %v3372
        %v3426 = vunpack.c.l.b16 %v3373
        %v3427 = vunpack.c.l.b16 %v3374
        %v3428 = vunpack.c.l.b16 %v3375
        %v3429 = vunpack.c.l.b16 %v3376
        %v3430 = vunpack.c.l.b16 %v3377
        %v3431 = vpack.c.b16 %v3416, %v3415
        %v3432 = vpack.c.b16 %v3418, %v3417
        %v3433 = vpack.c.b16 %v3420, %v3419
        %v3434 = vpack.c.b16 %v3422, %v3421
        %v3435 = vpack.c.b16 %v3424, %v3423
        %v3436 = vpack.c.b16 %v3426, %v3425
        %v3437 = vpack.c.b16 %v3428, %v3427
        %v3438 = vpack.c.b16 %v3430, %v3429
        %3447 = vmatpush.bf16.msra.mxu0 %v3438
        %3448 = vmatpush.bf16.msra.mxu0 %v3437
        %3449 = vmatpush.bf16.msra.mxu0 %v3436
        %3450 = vmatpush.bf16.msra.mxu0 %v3435
        %3451 = vmatpush.bf16.msra.mxu0 %v3434
        %3452 = vmatpush.bf16.msra.mxu0 %v3433
        %3453 = vmatpush.bf16.msra.mxu0 %v3432
        %3454 = vmatpush.bf16.msra.mxu0 %v3431
        %3455 = vmatmul.bf16.gmra.mxu0 %v3397
        %v3456 = vpop.f32.mrf.mxu0
        %v3457 = vadd.f32 0.0, %v3456
        %v3458 = vpop.f32.mrf.mxu0
        %v3459 = vadd.f32 0.0, %v3458
        %3460 = vdwg.mxu0
        %v3461 = vadd.f32 %v3358, %v3457
        %v3462 = vadd.f32 %v3359, %v3459
        %v3463 = vld [vmem:[%s18] sm:$0x1]
        %v3465 = vperm.slane %v3463, 0
        %v3467 = vadd.f32 %v3461, %v3465
        %v3468 = vadd.f32 %v3462, %v3465
        %v3469 = vpack.c.bf16 %v3467, %v3467
        %v3470 = vpack.c.bf16 %v3468, %v3468
        %3471 = vst [vmem:[#allocation2 + $0x8] sm:$0xf] %v3469
        %3472 = vst [vmem:[#allocation2 + $0xc] sm:$0xf] %v3470
        %v3473 = vld [vmem:[#allocation2 + $0x4] sm:$0xf]
        %v3474 = vld [vmem:[#allocation2 + $0x8] sm:$0xf]
        %v3475 = vld [vmem:[#allocation2 + $0xc] sm:$0x1]
        %v3476 = vld [vmem:[#allocation14] sm:$0xf]
        %v3477 = vld [vmem:[#allocation14 + $0x4] sm:$0xf]
        %v3478 = vld [vmem:[#allocation14 + $0x8] sm:$0xf]
        %v3479 = vld [vmem:[#allocation14 + $0xc] sm:$0xf]
        %v3480 = vld [vmem:[#allocation14 + $0x10] sm:$0xf]
        %v3481 = vld [vmem:[#allocation14 + $0x14] sm:$0xf]
        %v3482 = vld [vmem:[#allocation14 + $0x18] sm:$0xf]
        %v3483 = vld [vmem:[#allocation14 + $0x1c] sm:$0xf]
        %v3484 = vld [vmem:[#allocation14 + $0x20] sm:$0xf]
        %v3485 = vld [vmem:[#allocation14 + $0x24] sm:$0xf]
        %v3486 = vld [vmem:[#allocation14 + $0x28] sm:$0xf]
        %v3487 = vld [vmem:[#allocation14 + $0x2c] sm:$0xf]
        %v3488 = vld [vmem:[#allocation14 + $0x30] sm:$0xf]
        %v3489 = vld [vmem:[#allocation14 + $0x34] sm:$0xf]
        %v3490 = vld [vmem:[#allocation14 + $0x38] sm:$0xf]
        %v3491 = vld [vmem:[#allocation14 + $0x3c] sm:$0xf]
        %v3492 = vld [vmem:[#allocation2 + $0xc] sm:$0xf]
        %s3493 = scalar_lea.vmem [#allocation14], 64
        %v3494 = vld [vmem:[%s3493] sm:$0xf]
        %v3495 = vld [vmem:[%s3493 + $0x4] sm:$0xf]
        %v3496 = vld [vmem:[%s3493 + $0x8] sm:$0xf]
        %v3497 = vld [vmem:[%s3493 + $0xc] sm:$0xf]
        %v3498 = vld [vmem:[%s3493 + $0x10] sm:$0xf]
        %v3499 = vld [vmem:[%s3493 + $0x14] sm:$0xf]
        %v3500 = vld [vmem:[%s3493 + $0x18] sm:$0xf]
        %v3501 = vld [vmem:[%s3493 + $0x1c] sm:$0xf]
        %v3502 = vld [vmem:[%s3493 + $0x20] sm:$0xf]
        %v3503 = vld [vmem:[%s3493 + $0x24] sm:$0xf]
        %v3504 = vld [vmem:[%s3493 + $0x28] sm:$0xf]
        %v3505 = vld [vmem:[%s3493 + $0x2c] sm:$0xf]
        %v3506 = vld [vmem:[%s3493 + $0x30] sm:$0xf]
        %v3507 = vld [vmem:[%s3493 + $0x34] sm:$0xf]
        %v3508 = vld [vmem:[%s3493 + $0x38] sm:$0xf]
        %v3509 = vld [vmem:[%s3493 + $0x3c] sm:$0xf]
        %v3512 = vunpack.c.l.b16 %v3474
        %v3513 = vunpack.c.l.b16 %v3492
        %v3514 = vpack.c.b16 %v3513, %v3512
        %v3532 = vunpack.c.l.b16 %v3494
        %v3533 = vunpack.c.l.b16 %v3495
        %v3534 = vunpack.c.l.b16 %v3496
        %v3535 = vunpack.c.l.b16 %v3497
        %v3536 = vunpack.c.l.b16 %v3498
        %v3537 = vunpack.c.l.b16 %v3499
        %v3538 = vunpack.c.l.b16 %v3500
        %v3539 = vunpack.c.l.b16 %v3501
        %v3540 = vunpack.c.l.b16 %v3502
        %v3541 = vunpack.c.l.b16 %v3503
        %v3542 = vunpack.c.l.b16 %v3504
        %v3543 = vunpack.c.l.b16 %v3505
        %v3544 = vunpack.c.l.b16 %v3506
        %v3545 = vunpack.c.l.b16 %v3507
        %v3546 = vunpack.c.l.b16 %v3508
        %v3547 = vunpack.c.l.b16 %v3509
        %v3548 = vpack.c.b16 %v3533, %v3532
        %v3549 = vpack.c.b16 %v3535, %v3534
        %v3550 = vpack.c.b16 %v3537, %v3536
        %v3551 = vpack.c.b16 %v3539, %v3538
        %v3552 = vpack.c.b16 %v3541, %v3540
        %v3553 = vpack.c.b16 %v3543, %v3542
        %v3554 = vpack.c.b16 %v3545, %v3544
        %v3555 = vpack.c.b16 %v3547, %v3546
        %3564 = vmatpush.bf16.msra.mxu0 %v3555
        %3565 = vmatpush.bf16.msra.mxu0 %v3554
        %3566 = vmatpush.bf16.msra.mxu0 %v3553
        %3567 = vmatpush.bf16.msra.mxu0 %v3552
        %3568 = vmatpush.bf16.msra.mxu0 %v3551
        %3569 = vmatpush.bf16.msra.mxu0 %v3550
        %3570 = vmatpush.bf16.msra.mxu0 %v3549
        %3571 = vmatpush.bf16.msra.mxu0 %v3548
        %3572 = vmatmul.bf16.gmra.mxu0 %v3514
        %v3573 = vpop.f32.mrf.mxu0
        %v3574 = vadd.f32 0.0, %v3573
        %v3575 = vpop.f32.mrf.mxu0
        %v3576 = vadd.f32 0.0, %v3575
        %3577 = vdwg.mxu0
        %v3580 = vunpack.c.l.b16 %v3473
        %v3581 = vunpack.c.l.b16 %v3475
        %v3582 = vpack.c.b16 %v3512, %v3580
        %v3583 = vpack.c.b16 %v3581, %v3581
        %v3585 = vshrl.u32 %v3582, 16
        %v3587 = vshll.u32 %v3582, 16
        %v3589 = vrot.slane %v3587, 1
        %v3590 = vor.u32 %v3585, %v3589
        %v3592 = vshll.u32 %v3583, 16
        %v3594 = vrot.slane %v3592, 1
        %v3595 = vsel %vm1399, %v3590, %v3594
        %v3613 = vunpack.c.l.b16 %v3476
        %v3614 = vunpack.c.l.b16 %v3477
        %v3615 = vunpack.c.l.b16 %v3478
        %v3616 = vunpack.c.l.b16 %v3479
        %v3617 = vunpack.c.l.b16 %v3480
        %v3618 = vunpack.c.l.b16 %v3481
        %v3619 = vunpack.c.l.b16 %v3482
        %v3620 = vunpack.c.l.b16 %v3483
        %v3621 = vunpack.c.l.b16 %v3484
        %v3622 = vunpack.c.l.b16 %v3485
        %v3623 = vunpack.c.l.b16 %v3486
        %v3624 = vunpack.c.l.b16 %v3487
        %v3625 = vunpack.c.l.b16 %v3488
        %v3626 = vunpack.c.l.b16 %v3489
        %v3627 = vunpack.c.l.b16 %v3490
        %v3628 = vunpack.c.l.b16 %v3491
        %v3629 = vpack.c.b16 %v3614, %v3613
        %v3630 = vpack.c.b16 %v3616, %v3615
        %v3631 = vpack.c.b16 %v3618, %v3617
        %v3632 = vpack.c.b16 %v3620, %v3619
        %v3633 = vpack.c.b16 %v3622, %v3621
        %v3634 = vpack.c.b16 %v3624, %v3623
        %v3635 = vpack.c.b16 %v3626, %v3625
        %v3636 = vpack.c.b16 %v3628, %v3627
        %3645 = vmatpush.bf16.msra.mxu0 %v3636
        %3646 = vmatpush.bf16.msra.mxu0 %v3635
        %3647 = vmatpush.bf16.msra.mxu0 %v3634
        %3648 = vmatpush.bf16.msra.mxu0 %v3633
        %3649 = vmatpush.bf16.msra.mxu0 %v3632
        %3650 = vmatpush.bf16.msra.mxu0 %v3631
        %3651 = vmatpush.bf16.msra.mxu0 %v3630
        %3652 = vmatpush.bf16.msra.mxu0 %v3629
        %3653 = vmatmul.bf16.gmra.mxu0 %v3595
        %v3654 = vpop.f32.mrf.mxu0
        %v3655 = vadd.f32 %v3574, %v3654
        %v3656 = vpop.f32.mrf.mxu0
        %v3657 = vadd.f32 %v3576, %v3656
        %3658 = vdwg.mxu0
        %v3659 = vld [vmem:[#allocation2 + $0x8] sm:$0x8]
        %v3660 = vld [vmem:[#allocation2 + $0xc] sm:$0xf]
        %v3661 = vld [vmem:[#allocation2 + $0x10] sm:$0xf]
        %s3662 = scalar_lea.vmem [#allocation14], 128
        %v3663 = vld [vmem:[%s3662] sm:$0xf]
        %v3664 = vld [vmem:[%s3662 + $0x4] sm:$0xf]
        %v3665 = vld [vmem:[%s3662 + $0x8] sm:$0xf]
        %v3666 = vld [vmem:[%s3662 + $0xc] sm:$0xf]
        %v3667 = vld [vmem:[%s3662 + $0x10] sm:$0xf]
        %v3668 = vld [vmem:[%s3662 + $0x14] sm:$0xf]
        %v3669 = vld [vmem:[%s3662 + $0x18] sm:$0xf]
        %v3670 = vld [vmem:[%s3662 + $0x1c] sm:$0xf]
        %v3671 = vld [vmem:[%s3662 + $0x20] sm:$0xf]
        %v3672 = vld [vmem:[%s3662 + $0x24] sm:$0xf]
        %v3673 = vld [vmem:[%s3662 + $0x28] sm:$0xf]
        %v3674 = vld [vmem:[%s3662 + $0x2c] sm:$0xf]
        %v3675 = vld [vmem:[%s3662 + $0x30] sm:$0xf]
        %v3676 = vld [vmem:[%s3662 + $0x34] sm:$0xf]
        %v3677 = vld [vmem:[%s3662 + $0x38] sm:$0xf]
        %v3678 = vld [vmem:[%s3662 + $0x3c] sm:$0xf]
        %v3682 = vunpack.c.l.b16 %v3659
        %v3683 = vunpack.c.l.b16 %v3660
        %v3684 = vunpack.c.l.b16 %v3661
        %v3685 = vpack.c.b16 %v3683, %v3682
        %v3686 = vpack.c.b16 %v3684, %v3684
        %v3688 = vshrl.u32 %v3685, 16
        %v3690 = vrot.slane %v3688, 3
        %v3691 = vshll.u32 %v3685, 16
        %v3693 = vrot.slane %v3691, 4
        %v3694 = vor.u32 %v3690, %v3693
        %v3696 = vshrl.u32 %v3686, 16
        %v3698 = vrot.slane %v3696, 3
        %v3699 = vshll.u32 %v3686, 16
        %v3701 = vrot.slane %v3699, 4
        %v3702 = vor.u32 %v3698, %v3701
        %v3703 = vsel %vm1290, %v3694, %v3702
        %v3721 = vunpack.c.l.b16 %v3663
        %v3722 = vunpack.c.l.b16 %v3664
        %v3723 = vunpack.c.l.b16 %v3665
        %v3724 = vunpack.c.l.b16 %v3666
        %v3725 = vunpack.c.l.b16 %v3667
        %v3726 = vunpack.c.l.b16 %v3668
        %v3727 = vunpack.c.l.b16 %v3669
        %v3728 = vunpack.c.l.b16 %v3670
        %v3729 = vunpack.c.l.b16 %v3671
        %v3730 = vunpack.c.l.b16 %v3672
        %v3731 = vunpack.c.l.b16 %v3673
        %v3732 = vunpack.c.l.b16 %v3674
        %v3733 = vunpack.c.l.b16 %v3675
        %v3734 = vunpack.c.l.b16 %v3676
        %v3735 = vunpack.c.l.b16 %v3677
        %v3736 = vunpack.c.l.b16 %v3678
        %v3737 = vpack.c.b16 %v3722, %v3721
        %v3738 = vpack.c.b16 %v3724, %v3723
        %v3739 = vpack.c.b16 %v3726, %v3725
        %v3740 = vpack.c.b16 %v3728, %v3727
        %v3741 = vpack.c.b16 %v3730, %v3729
        %v3742 = vpack.c.b16 %v3732, %v3731
        %v3743 = vpack.c.b16 %v3734, %v3733
        %v3744 = vpack.c.b16 %v3736, %v3735
        %3753 = vmatpush.bf16.msra.mxu0 %v3744
        %3754 = vmatpush.bf16.msra.mxu0 %v3743
        %3755 = vmatpush.bf16.msra.mxu0 %v3742
        %3756 = vmatpush.bf16.msra.mxu0 %v3741
        %3757 = vmatpush.bf16.msra.mxu0 %v3740
        %3758 = vmatpush.bf16.msra.mxu0 %v3739
        %3759 = vmatpush.bf16.msra.mxu0 %v3738
        %3760 = vmatpush.bf16.msra.mxu0 %v3737
        %3761 = vmatmul.bf16.gmra.mxu0 %v3703
        %v3762 = vpop.f32.mrf.mxu0
        %v3763 = vadd.f32 0.0, %v3762
        %v3764 = vpop.f32.mrf.mxu0
        %v3765 = vadd.f32 0.0, %v3764
        %3766 = vdwg.mxu0
        %v3767 = vadd.f32 %v3655, %v3763
        %v3768 = vadd.f32 %v3657, %v3765
        %v3769 = vld [vmem:[%s20] sm:$0x1]
        %v3771 = vperm.slane %v3769, 0
        %v3773 = vadd.f32 %v3767, %v3771
        %v3774 = vadd.f32 %v3768, %v3771
        %v3775 = vpack.c.bf16 %v1022, %v1022
        %v3776 = vpack.c.bf16 %v1024, %v1024
        %3777 = vst [vmem:[#allocation2 + $0x8] sm:$0xf] %v3775
        %3778 = vst [vmem:[#allocation2 + $0xc] sm:$0xf] %v3776
        %v3779 = vld [vmem:[#allocation2 + $0x4] sm:$0x8]
        %v3780 = vld [vmem:[#allocation2 + $0x8] sm:$0xf]
        %v3781 = vld [vmem:[#allocation2 + $0xc] sm:$0xf]
        %v3782 = vld [vmem:[#allocation16] sm:$0xf]
        %v3783 = vld [vmem:[#allocation16 + $0x4] sm:$0xf]
        %v3784 = vld [vmem:[#allocation16 + $0x8] sm:$0xf]
        %v3785 = vld [vmem:[#allocation16 + $0xc] sm:$0xf]
        %v3786 = vld [vmem:[#allocation16 + $0x10] sm:$0xf]
        %v3787 = vld [vmem:[#allocation16 + $0x14] sm:$0xf]
        %v3788 = vld [vmem:[#allocation16 + $0x18] sm:$0xf]
        %v3789 = vld [vmem:[#allocation16 + $0x1c] sm:$0xf]
        %v3790 = vld [vmem:[#allocation16 + $0x20] sm:$0xf]
        %v3791 = vld [vmem:[#allocation16 + $0x24] sm:$0xf]
        %v3792 = vld [vmem:[#allocation16 + $0x28] sm:$0xf]
        %v3793 = vld [vmem:[#allocation16 + $0x2c] sm:$0xf]
        %v3794 = vld [vmem:[#allocation16 + $0x30] sm:$0xf]
        %v3795 = vld [vmem:[#allocation16 + $0x34] sm:$0xf]
        %v3796 = vld [vmem:[#allocation16 + $0x38] sm:$0xf]
        %v3797 = vld [vmem:[#allocation16 + $0x3c] sm:$0xf]
        %s3798 = scalar_lea.vmem [#allocation16], 64
        %v3799 = vld [vmem:[%s3798] sm:$0xf]
        %v3800 = vld [vmem:[%s3798 + $0x4] sm:$0xf]
        %v3801 = vld [vmem:[%s3798 + $0x8] sm:$0xf]
        %v3802 = vld [vmem:[%s3798 + $0xc] sm:$0xf]
        %v3803 = vld [vmem:[%s3798 + $0x10] sm:$0xf]
        %v3804 = vld [vmem:[%s3798 + $0x14] sm:$0xf]
        %v3805 = vld [vmem:[%s3798 + $0x18] sm:$0xf]
        %v3806 = vld [vmem:[%s3798 + $0x1c] sm:$0xf]
        %v3807 = vld [vmem:[%s3798 + $0x20] sm:$0xf]
        %v3808 = vld [vmem:[%s3798 + $0x24] sm:$0xf]
        %v3809 = vld [vmem:[%s3798 + $0x28] sm:$0xf]
        %v3810 = vld [vmem:[%s3798 + $0x2c] sm:$0xf]
        %v3811 = vld [vmem:[%s3798 + $0x30] sm:$0xf]
        %v3812 = vld [vmem:[%s3798 + $0x34] sm:$0xf]
        %v3813 = vld [vmem:[%s3798 + $0x38] sm:$0xf]
        %v3814 = vld [vmem:[%s3798 + $0x3c] sm:$0xf]
        %v3817 = vunpack.c.l.b16 %v3780
        %v3818 = vunpack.c.l.b16 %v3781
        %v3819 = vpack.c.b16 %v3818, %v3817
        %v3837 = vunpack.c.l.b16 %v3799
        %v3838 = vunpack.c.l.b16 %v3800
        %v3839 = vunpack.c.l.b16 %v3801
        %v3840 = vunpack.c.l.b16 %v3802
        %v3841 = vunpack.c.l.b16 %v3803
        %v3842 = vunpack.c.l.b16 %v3804
        %v3843 = vunpack.c.l.b16 %v3805
        %v3844 = vunpack.c.l.b16 %v3806
        %v3845 = vunpack.c.l.b16 %v3807
        %v3846 = vunpack.c.l.b16 %v3808
        %v3847 = vunpack.c.l.b16 %v3809
        %v3848 = vunpack.c.l.b16 %v3810
        %v3849 = vunpack.c.l.b16 %v3811
        %v3850 = vunpack.c.l.b16 %v3812
        %v3851 = vunpack.c.l.b16 %v3813
        %v3852 = vunpack.c.l.b16 %v3814
        %v3853 = vpack.c.b16 %v3838, %v3837
        %v3854 = vpack.c.b16 %v3840, %v3839
        %v3855 = vpack.c.b16 %v3842, %v3841
        %v3856 = vpack.c.b16 %v3844, %v3843
        %v3857 = vpack.c.b16 %v3846, %v3845
        %v3858 = vpack.c.b16 %v3848, %v3847
        %v3859 = vpack.c.b16 %v3850, %v3849
        %v3860 = vpack.c.b16 %v3852, %v3851
        %3869 = vmatpush.bf16.msra.mxu0 %v3860
        %3870 = vmatpush.bf16.msra.mxu0 %v3859
        %3871 = vmatpush.bf16.msra.mxu0 %v3858
        %3872 = vmatpush.bf16.msra.mxu0 %v3857
        %3873 = vmatpush.bf16.msra.mxu0 %v3856
        %3874 = vmatpush.bf16.msra.mxu0 %v3855
        %3875 = vmatpush.bf16.msra.mxu0 %v3854
        %3876 = vmatpush.bf16.msra.mxu0 %v3853
        %3877 = vmatmul.bf16.gmra.mxu0 %v3819
        %v3878 = vpop.f32.mrf.mxu0
        %v3879 = vadd.f32 0.0, %v3878
        %v3880 = vpop.f32.mrf.mxu0
        %v3881 = vadd.f32 0.0, %v3880
        %3882 = vdwg.mxu0
        %v3884 = vunpack.c.l.b16 %v3779
        %v3885 = vpack.c.b16 %v3817, %v3884
        %v3886 = vpack.c.b16 %v3818, %v3818
        %v3888 = vshrl.u32 %v3885, 16
        %v3890 = vrot.slane %v3888, 3
        %v3891 = vshll.u32 %v3885, 16
        %v3893 = vrot.slane %v3891, 4
        %v3894 = vor.u32 %v3890, %v3893
        %v3896 = vshrl.u32 %v3886, 16
        %v3898 = vrot.slane %v3896, 3
        %v3899 = vshll.u32 %v3886, 16
        %v3901 = vrot.slane %v3899, 4
        %v3902 = vor.u32 %v3898, %v3901
        %v3903 = vsel %vm1290, %v3894, %v3902
        %v3921 = vunpack.c.l.b16 %v3782
        %v3922 = vunpack.c.l.b16 %v3783
        %v3923 = vunpack.c.l.b16 %v3784
        %v3924 = vunpack.c.l.b16 %v3785
        %v3925 = vunpack.c.l.b16 %v3786
        %v3926 = vunpack.c.l.b16 %v3787
        %v3927 = vunpack.c.l.b16 %v3788
        %v3928 = vunpack.c.l.b16 %v3789
        %v3929 = vunpack.c.l.b16 %v3790
        %v3930 = vunpack.c.l.b16 %v3791
        %v3931 = vunpack.c.l.b16 %v3792
        %v3932 = vunpack.c.l.b16 %v3793
        %v3933 = vunpack.c.l.b16 %v3794
        %v3934 = vunpack.c.l.b16 %v3795
        %v3935 = vunpack.c.l.b16 %v3796
        %v3936 = vunpack.c.l.b16 %v3797
        %v3937 = vpack.c.b16 %v3922, %v3921
        %v3938 = vpack.c.b16 %v3924, %v3923
        %v3939 = vpack.c.b16 %v3926, %v3925
        %v3940 = vpack.c.b16 %v3928, %v3927
        %v3941 = vpack.c.b16 %v3930, %v3929
        %v3942 = vpack.c.b16 %v3932, %v3931
        %v3943 = vpack.c.b16 %v3934, %v3933
        %v3944 = vpack.c.b16 %v3936, %v3935
        %3953 = vmatpush.bf16.msra.mxu0 %v3944
        %3954 = vmatpush.bf16.msra.mxu0 %v3943
        %3955 = vmatpush.bf16.msra.mxu0 %v3942
        %3956 = vmatpush.bf16.msra.mxu0 %v3941
        %3957 = vmatpush.bf16.msra.mxu0 %v3940
        %3958 = vmatpush.bf16.msra.mxu0 %v3939
        %3959 = vmatpush.bf16.msra.mxu0 %v3938
        %3960 = vmatpush.bf16.msra.mxu0 %v3937
        %3961 = vmatmul.bf16.gmra.mxu0 %v3903
        %v3962 = vpop.f32.mrf.mxu0
        %v3963 = vadd.f32 %v3879, %v3962
        %v3964 = vpop.f32.mrf.mxu0
        %v3965 = vadd.f32 %v3881, %v3964
        %3966 = vdwg.mxu0
        %v3967 = vld [vmem:[#allocation2 + $0x8] sm:$0xf]
        %v3968 = vld [vmem:[#allocation2 + $0xc] sm:$0xf]
        %v3969 = vld [vmem:[#allocation2 + $0x10] sm:$0x1]
        %s3970 = scalar_lea.vmem [#allocation16], 128
        %v3971 = vld [vmem:[%s3970] sm:$0xf]
        %v3972 = vld [vmem:[%s3970 + $0x4] sm:$0xf]
        %v3973 = vld [vmem:[%s3970 + $0x8] sm:$0xf]
        %v3974 = vld [vmem:[%s3970 + $0xc] sm:$0xf]
        %v3975 = vld [vmem:[%s3970 + $0x10] sm:$0xf]
        %v3976 = vld [vmem:[%s3970 + $0x14] sm:$0xf]
        %v3977 = vld [vmem:[%s3970 + $0x18] sm:$0xf]
        %v3978 = vld [vmem:[%s3970 + $0x1c] sm:$0xf]
        %v3979 = vld [vmem:[%s3970 + $0x20] sm:$0xf]
        %v3980 = vld [vmem:[%s3970 + $0x24] sm:$0xf]
        %v3981 = vld [vmem:[%s3970 + $0x28] sm:$0xf]
        %v3982 = vld [vmem:[%s3970 + $0x2c] sm:$0xf]
        %v3983 = vld [vmem:[%s3970 + $0x30] sm:$0xf]
        %v3984 = vld [vmem:[%s3970 + $0x34] sm:$0xf]
        %v3985 = vld [vmem:[%s3970 + $0x38] sm:$0xf]
        %v3986 = vld [vmem:[%s3970 + $0x3c] sm:$0xf]
        %v3990 = vunpack.c.l.b16 %v3967
        %v3991 = vunpack.c.l.b16 %v3968
        %v3992 = vunpack.c.l.b16 %v3969
        %v3993 = vpack.c.b16 %v3991, %v3990
        %v3994 = vpack.c.b16 %v3992, %v3992
        %v3996 = vshrl.u32 %v3993, 16
        %v3998 = vshll.u32 %v3993, 16
        %v4000 = vrot.slane %v3998, 1
        %v4001 = vor.u32 %v3996, %v4000
        %v4003 = vshll.u32 %v3994, 16
        %v4005 = vrot.slane %v4003, 1
        %v4006 = vsel %vm1399, %v4001, %v4005
        %v4024 = vunpack.c.l.b16 %v3971
        %v4025 = vunpack.c.l.b16 %v3972
        %v4026 = vunpack.c.l.b16 %v3973
        %v4027 = vunpack.c.l.b16 %v3974
        %v4028 = vunpack.c.l.b16 %v3975
        %v4029 = vunpack.c.l.b16 %v3976
        %v4030 = vunpack.c.l.b16 %v3977
        %v4031 = vunpack.c.l.b16 %v3978
        %v4032 = vunpack.c.l.b16 %v3979
        %v4033 = vunpack.c.l.b16 %v3980
        %v4034 = vunpack.c.l.b16 %v3981
        %v4035 = vunpack.c.l.b16 %v3982
        %v4036 = vunpack.c.l.b16 %v3983
        %v4037 = vunpack.c.l.b16 %v3984
        %v4038 = vunpack.c.l.b16 %v3985
        %v4039 = vunpack.c.l.b16 %v3986
        %v4040 = vpack.c.b16 %v4025, %v4024
        %v4041 = vpack.c.b16 %v4027, %v4026
        %v4042 = vpack.c.b16 %v4029, %v4028
        %v4043 = vpack.c.b16 %v4031, %v4030
        %v4044 = vpack.c.b16 %v4033, %v4032
        %v4045 = vpack.c.b16 %v4035, %v4034
        %v4046 = vpack.c.b16 %v4037, %v4036
        %v4047 = vpack.c.b16 %v4039, %v4038
        %4056 = vmatpush.bf16.msra.mxu0 %v4047
        %4057 = vmatpush.bf16.msra.mxu0 %v4046
        %4058 = vmatpush.bf16.msra.mxu0 %v4045
        %4059 = vmatpush.bf16.msra.mxu0 %v4044
        %4060 = vmatpush.bf16.msra.mxu0 %v4043
        %4061 = vmatpush.bf16.msra.mxu0 %v4042
        %4062 = vmatpush.bf16.msra.mxu0 %v4041
        %4063 = vmatpush.bf16.msra.mxu0 %v4040
        %4064 = vmatmul.bf16.gmra.mxu0 %v4006
        %v4065 = vpop.f32.mrf.mxu0
        %v4066 = vadd.f32 0.0, %v4065
        %v4067 = vpop.f32.mrf.mxu0
        %v4068 = vadd.f32 0.0, %v4067
        %4069 = vdwg.mxu0
        %v4070 = vadd.f32 %v3963, %v4066
        %v4071 = vadd.f32 %v3965, %v4068
        %v4072 = vpack.c.bf16 %v1794, %v1794
        %v4073 = vpack.c.bf16 %v1795, %v1795
        %4074 = vst [vmem:[#allocation2 + $0x8] sm:$0xf] %v4072
        %4075 = vst [vmem:[#allocation2 + $0xc] sm:$0xf] %v4073
        %v4076 = vld [vmem:[#allocation2 + $0x4] sm:$0x8]
        %v4077 = vld [vmem:[#allocation2 + $0x8] sm:$0xf]
        %v4078 = vld [vmem:[#allocation2 + $0xc] sm:$0xf]
        %s4079 = scalar_lea.vmem [#allocation16], 192
        %v4080 = vld [vmem:[%s4079] sm:$0xf]
        %v4081 = vld [vmem:[%s4079 + $0x4] sm:$0xf]
        %v4082 = vld [vmem:[%s4079 + $0x8] sm:$0xf]
        %v4083 = vld [vmem:[%s4079 + $0xc] sm:$0xf]
        %v4084 = vld [vmem:[%s4079 + $0x10] sm:$0xf]
        %v4085 = vld [vmem:[%s4079 + $0x14] sm:$0xf]
        %v4086 = vld [vmem:[%s4079 + $0x18] sm:$0xf]
        %v4087 = vld [vmem:[%s4079 + $0x1c] sm:$0xf]
        %v4088 = vld [vmem:[%s4079 + $0x20] sm:$0xf]
        %v4089 = vld [vmem:[%s4079 + $0x24] sm:$0xf]
        %v4090 = vld [vmem:[%s4079 + $0x28] sm:$0xf]
        %v4091 = vld [vmem:[%s4079 + $0x2c] sm:$0xf]
        %v4092 = vld [vmem:[%s4079 + $0x30] sm:$0xf]
        %v4093 = vld [vmem:[%s4079 + $0x34] sm:$0xf]
        %v4094 = vld [vmem:[%s4079 + $0x38] sm:$0xf]
        %v4095 = vld [vmem:[%s4079 + $0x3c] sm:$0xf]
        %v4099 = vunpack.c.l.b16 %v4076
        %v4100 = vunpack.c.l.b16 %v4077
        %v4101 = vunpack.c.l.b16 %v4078
        %v4102 = vpack.c.b16 %v4100, %v4099
        %v4103 = vpack.c.b16 %v4101, %v4101
        %v4105 = vshrl.u32 %v4102, 16
        %v4107 = vrot.slane %v4105, 3
        %v4108 = vshll.u32 %v4102, 16
        %v4110 = vrot.slane %v4108, 4
        %v4111 = vor.u32 %v4107, %v4110
        %v4113 = vshrl.u32 %v4103, 16
        %v4115 = vrot.slane %v4113, 3
        %v4116 = vshll.u32 %v4103, 16
        %v4118 = vrot.slane %v4116, 4
        %v4119 = vor.u32 %v4115, %v4118
        %v4120 = vsel %vm1290, %v4111, %v4119
        %v4138 = vunpack.c.l.b16 %v4080
        %v4139 = vunpack.c.l.b16 %v4081
        %v4140 = vunpack.c.l.b16 %v4082
        %v4141 = vunpack.c.l.b16 %v4083
        %v4142 = vunpack.c.l.b16 %v4084
        %v4143 = vunpack.c.l.b16 %v4085
        %v4144 = vunpack.c.l.b16 %v4086
        %v4145 = vunpack.c.l.b16 %v4087
        %v4146 = vunpack.c.l.b16 %v4088
        %v4147 = vunpack.c.l.b16 %v4089
        %v4148 = vunpack.c.l.b16 %v4090
        %v4149 = vunpack.c.l.b16 %v4091
        %v4150 = vunpack.c.l.b16 %v4092
        %v4151 = vunpack.c.l.b16 %v4093
        %v4152 = vunpack.c.l.b16 %v4094
        %v4153 = vunpack.c.l.b16 %v4095
        %v4154 = vpack.c.b16 %v4139, %v4138
        %v4155 = vpack.c.b16 %v4141, %v4140
        %v4156 = vpack.c.b16 %v4143, %v4142
        %v4157 = vpack.c.b16 %v4145, %v4144
        %v4158 = vpack.c.b16 %v4147, %v4146
        %v4159 = vpack.c.b16 %v4149, %v4148
        %v4160 = vpack.c.b16 %v4151, %v4150
        %v4161 = vpack.c.b16 %v4153, %v4152
        %4170 = vmatpush.bf16.msra.mxu0 %v4161
        %4171 = vmatpush.bf16.msra.mxu0 %v4160
        %4172 = vmatpush.bf16.msra.mxu0 %v4159
        %4173 = vmatpush.bf16.msra.mxu0 %v4158
        %4174 = vmatpush.bf16.msra.mxu0 %v4157
        %4175 = vmatpush.bf16.msra.mxu0 %v4156
        %4176 = vmatpush.bf16.msra.mxu0 %v4155
        %4177 = vmatpush.bf16.msra.mxu0 %v4154
        %4178 = vmatmul.bf16.gmra.mxu0 %v4120
        %v4179 = vpop.f32.mrf.mxu0
        %v4180 = vadd.f32 0.0, %v4179
        %v4181 = vpop.f32.mrf.mxu0
        %v4182 = vadd.f32 0.0, %v4181
        %4183 = vdwg.mxu0
        %v4184 = vadd.f32 %v4070, %v4180
        %v4185 = vadd.f32 %v4071, %v4182
        %s4186 = scalar_lea.vmem [#allocation16], 256
        %v4187 = vld [vmem:[%s4186] sm:$0xf]
        %v4188 = vld [vmem:[%s4186 + $0x4] sm:$0xf]
        %v4189 = vld [vmem:[%s4186 + $0x8] sm:$0xf]
        %v4190 = vld [vmem:[%s4186 + $0xc] sm:$0xf]
        %v4191 = vld [vmem:[%s4186 + $0x10] sm:$0xf]
        %v4192 = vld [vmem:[%s4186 + $0x14] sm:$0xf]
        %v4193 = vld [vmem:[%s4186 + $0x18] sm:$0xf]
        %v4194 = vld [vmem:[%s4186 + $0x1c] sm:$0xf]
        %v4195 = vld [vmem:[%s4186 + $0x20] sm:$0xf]
        %v4196 = vld [vmem:[%s4186 + $0x24] sm:$0xf]
        %v4197 = vld [vmem:[%s4186 + $0x28] sm:$0xf]
        %v4198 = vld [vmem:[%s4186 + $0x2c] sm:$0xf]
        %v4199 = vld [vmem:[%s4186 + $0x30] sm:$0xf]
        %v4200 = vld [vmem:[%s4186 + $0x34] sm:$0xf]
        %v4201 = vld [vmem:[%s4186 + $0x38] sm:$0xf]
        %v4202 = vld [vmem:[%s4186 + $0x3c] sm:$0xf]
        %v4203 = vpack.c.b16 %v4101, %v4100
        %v4221 = vunpack.c.l.b16 %v4187
        %v4222 = vunpack.c.l.b16 %v4188
        %v4223 = vunpack.c.l.b16 %v4189
        %v4224 = vunpack.c.l.b16 %v4190
        %v4225 = vunpack.c.l.b16 %v4191
        %v4226 = vunpack.c.l.b16 %v4192
        %v4227 = vunpack.c.l.b16 %v4193
        %v4228 = vunpack.c.l.b16 %v4194
        %v4229 = vunpack.c.l.b16 %v4195
        %v4230 = vunpack.c.l.b16 %v4196
        %v4231 = vunpack.c.l.b16 %v4197
        %v4232 = vunpack.c.l.b16 %v4198
        %v4233 = vunpack.c.l.b16 %v4199
        %v4234 = vunpack.c.l.b16 %v4200
        %v4235 = vunpack.c.l.b16 %v4201
        %v4236 = vunpack.c.l.b16 %v4202
        %v4237 = vpack.c.b16 %v4222, %v4221
        %v4238 = vpack.c.b16 %v4224, %v4223
        %v4239 = vpack.c.b16 %v4226, %v4225
        %v4240 = vpack.c.b16 %v4228, %v4227
        %v4241 = vpack.c.b16 %v4230, %v4229
        %v4242 = vpack.c.b16 %v4232, %v4231
        %v4243 = vpack.c.b16 %v4234, %v4233
        %v4244 = vpack.c.b16 %v4236, %v4235
        %4253 = vmatpush.bf16.msra.mxu0 %v4244
        %4254 = vmatpush.bf16.msra.mxu0 %v4243
        %4255 = vmatpush.bf16.msra.mxu0 %v4242
        %4256 = vmatpush.bf16.msra.mxu0 %v4241
        %4257 = vmatpush.bf16.msra.mxu0 %v4240
        %4258 = vmatpush.bf16.msra.mxu0 %v4239
        %4259 = vmatpush.bf16.msra.mxu0 %v4238
        %4260 = vmatpush.bf16.msra.mxu0 %v4237
        %4261 = vmatmul.bf16.gmra.mxu0 %v4203
        %v4262 = vpop.f32.mrf.mxu0
        %v4263 = vadd.f32 0.0, %v4262
        %v4264 = vpop.f32.mrf.mxu0
        %v4265 = vadd.f32 0.0, %v4264
        %4266 = vdwg.mxu0
        %v4267 = vadd.f32 %v4184, %v4263
        %v4268 = vadd.f32 %v4185, %v4265
        %v4269 = vld [vmem:[#allocation2 + $0x8] sm:$0xf]
        %v4270 = vld [vmem:[#allocation2 + $0xc] sm:$0xf]
        %v4271 = vld [vmem:[#allocation2 + $0x10] sm:$0x1]
        %s4272 = scalar_lea.vmem [#allocation16], 320
        %v4273 = vld [vmem:[%s4272] sm:$0xf]
        %v4274 = vld [vmem:[%s4272 + $0x4] sm:$0xf]
        %v4275 = vld [vmem:[%s4272 + $0x8] sm:$0xf]
        %v4276 = vld [vmem:[%s4272 + $0xc] sm:$0xf]
        %v4277 = vld [vmem:[%s4272 + $0x10] sm:$0xf]
        %v4278 = vld [vmem:[%s4272 + $0x14] sm:$0xf]
        %v4279 = vld [vmem:[%s4272 + $0x18] sm:$0xf]
        %v4280 = vld [vmem:[%s4272 + $0x1c] sm:$0xf]
        %v4281 = vld [vmem:[%s4272 + $0x20] sm:$0xf]
        %v4282 = vld [vmem:[%s4272 + $0x24] sm:$0xf]
        %v4283 = vld [vmem:[%s4272 + $0x28] sm:$0xf]
        %v4284 = vld [vmem:[%s4272 + $0x2c] sm:$0xf]
        %v4285 = vld [vmem:[%s4272 + $0x30] sm:$0xf]
        %v4286 = vld [vmem:[%s4272 + $0x34] sm:$0xf]
        %v4287 = vld [vmem:[%s4272 + $0x38] sm:$0xf]
        %v4288 = vld [vmem:[%s4272 + $0x3c] sm:$0xf]
        %v4292 = vunpack.c.l.b16 %v4269
        %v4293 = vunpack.c.l.b16 %v4270
        %v4294 = vunpack.c.l.b16 %v4271
        %v4295 = vpack.c.b16 %v4293, %v4292
        %v4296 = vpack.c.b16 %v4294, %v4294
        %v4298 = vshrl.u32 %v4295, 16
        %v4300 = vshll.u32 %v4295, 16
        %v4302 = vrot.slane %v4300, 1
        %v4303 = vor.u32 %v4298, %v4302
        %v4305 = vshll.u32 %v4296, 16
        %v4307 = vrot.slane %v4305, 1
        %v4308 = vsel %vm1399, %v4303, %v4307
        %v4326 = vunpack.c.l.b16 %v4273
        %v4327 = vunpack.c.l.b16 %v4274
        %v4328 = vunpack.c.l.b16 %v4275
        %v4329 = vunpack.c.l.b16 %v4276
        %v4330 = vunpack.c.l.b16 %v4277
        %v4331 = vunpack.c.l.b16 %v4278
        %v4332 = vunpack.c.l.b16 %v4279
        %v4333 = vunpack.c.l.b16 %v4280
        %v4334 = vunpack.c.l.b16 %v4281
        %v4335 = vunpack.c.l.b16 %v4282
        %v4336 = vunpack.c.l.b16 %v4283
        %v4337 = vunpack.c.l.b16 %v4284
        %v4338 = vunpack.c.l.b16 %v4285
        %v4339 = vunpack.c.l.b16 %v4286
        %v4340 = vunpack.c.l.b16 %v4287
        %v4341 = vunpack.c.l.b16 %v4288
        %v4342 = vpack.c.b16 %v4327, %v4326
        %v4343 = vpack.c.b16 %v4329, %v4328
        %v4344 = vpack.c.b16 %v4331, %v4330
        %v4345 = vpack.c.b16 %v4333, %v4332
        %v4346 = vpack.c.b16 %v4335, %v4334
        %v4347 = vpack.c.b16 %v4337, %v4336
        %v4348 = vpack.c.b16 %v4339, %v4338
        %v4349 = vpack.c.b16 %v4341, %v4340
        %4358 = vmatpush.bf16.msra.mxu0 %v4349
        %4359 = vmatpush.bf16.msra.mxu0 %v4348
        %4360 = vmatpush.bf16.msra.mxu0 %v4347
        %4361 = vmatpush.bf16.msra.mxu0 %v4346
        %4362 = vmatpush.bf16.msra.mxu0 %v4345
        %4363 = vmatpush.bf16.msra.mxu0 %v4344
        %4364 = vmatpush.bf16.msra.mxu0 %v4343
        %4365 = vmatpush.bf16.msra.mxu0 %v4342
        %4366 = vmatmul.bf16.gmra.mxu0 %v4308
        %v4367 = vpop.f32.mrf.mxu0
        %v4368 = vadd.f32 0.0, %v4367
        %v4369 = vpop.f32.mrf.mxu0
        %v4370 = vadd.f32 0.0, %v4369
        %4371 = vdwg.mxu0
        %v4372 = vadd.f32 %v4267, %v4368
        %v4373 = vadd.f32 %v4268, %v4370
        %v4374 = vpack.c.bf16 %v2684, %v2684
        %v4375 = vpack.c.bf16 %v2685, %v2685
        %4376 = vst [vmem:[#allocation2 + $0x8] sm:$0xf] %v4374
        %4377 = vst [vmem:[#allocation2 + $0xc] sm:$0xf] %v4375
        %v4378 = vld [vmem:[#allocation2 + $0x4] sm:$0x8]
        %v4379 = vld [vmem:[#allocation2 + $0x8] sm:$0xf]
        %v4380 = vld [vmem:[#allocation2 + $0xc] sm:$0xf]
        %s4381 = scalar_lea.vmem [#allocation16], 384
        %v4382 = vld [vmem:[%s4381] sm:$0xf]
        %v4383 = vld [vmem:[%s4381 + $0x4] sm:$0xf]
        %v4384 = vld [vmem:[%s4381 + $0x8] sm:$0xf]
        %v4385 = vld [vmem:[%s4381 + $0xc] sm:$0xf]
        %v4386 = vld [vmem:[%s4381 + $0x10] sm:$0xf]
        %v4387 = vld [vmem:[%s4381 + $0x14] sm:$0xf]
        %v4388 = vld [vmem:[%s4381 + $0x18] sm:$0xf]
        %v4389 = vld [vmem:[%s4381 + $0x1c] sm:$0xf]
        %v4390 = vld [vmem:[%s4381 + $0x20] sm:$0xf]
        %v4391 = vld [vmem:[%s4381 + $0x24] sm:$0xf]
        %v4392 = vld [vmem:[%s4381 + $0x28] sm:$0xf]
        %v4393 = vld [vmem:[%s4381 + $0x2c] sm:$0xf]
        %v4394 = vld [vmem:[%s4381 + $0x30] sm:$0xf]
        %v4395 = vld [vmem:[%s4381 + $0x34] sm:$0xf]
        %v4396 = vld [vmem:[%s4381 + $0x38] sm:$0xf]
        %v4397 = vld [vmem:[%s4381 + $0x3c] sm:$0xf]
        %v4401 = vunpack.c.l.b16 %v4378
        %v4402 = vunpack.c.l.b16 %v4379
        %v4403 = vunpack.c.l.b16 %v4380
        %v4404 = vpack.c.b16 %v4402, %v4401
        %v4405 = vpack.c.b16 %v4403, %v4403
        %v4407 = vshrl.u32 %v4404, 16
        %v4409 = vrot.slane %v4407, 3
        %v4410 = vshll.u32 %v4404, 16
        %v4412 = vrot.slane %v4410, 4
        %v4413 = vor.u32 %v4409, %v4412
        %v4415 = vshrl.u32 %v4405, 16
        %v4417 = vrot.slane %v4415, 3
        %v4418 = vshll.u32 %v4405, 16
        %v4420 = vrot.slane %v4418, 4
        %v4421 = vor.u32 %v4417, %v4420
        %v4422 = vsel %vm1290, %v4413, %v4421
        %v4440 = vunpack.c.l.b16 %v4382
        %v4441 = vunpack.c.l.b16 %v4383
        %v4442 = vunpack.c.l.b16 %v4384
        %v4443 = vunpack.c.l.b16 %v4385
        %v4444 = vunpack.c.l.b16 %v4386
        %v4445 = vunpack.c.l.b16 %v4387
        %v4446 = vunpack.c.l.b16 %v4388
        %v4447 = vunpack.c.l.b16 %v4389
        %v4448 = vunpack.c.l.b16 %v4390
        %v4449 = vunpack.c.l.b16 %v4391
        %v4450 = vunpack.c.l.b16 %v4392
        %v4451 = vunpack.c.l.b16 %v4393
        %v4452 = vunpack.c.l.b16 %v4394
        %v4453 = vunpack.c.l.b16 %v4395
        %v4454 = vunpack.c.l.b16 %v4396
        %v4455 = vunpack.c.l.b16 %v4397
        %v4456 = vpack.c.b16 %v4441, %v4440
        %v4457 = vpack.c.b16 %v4443, %v4442
        %v4458 = vpack.c.b16 %v4445, %v4444
        %v4459 = vpack.c.b16 %v4447, %v4446
        %v4460 = vpack.c.b16 %v4449, %v4448
        %v4461 = vpack.c.b16 %v4451, %v4450
        %v4462 = vpack.c.b16 %v4453, %v4452
        %v4463 = vpack.c.b16 %v4455, %v4454
        %4472 = vmatpush.bf16.msra.mxu0 %v4463
        %4473 = vmatpush.bf16.msra.mxu0 %v4462
        %4474 = vmatpush.bf16.msra.mxu0 %v4461
        %4475 = vmatpush.bf16.msra.mxu0 %v4460
        %4476 = vmatpush.bf16.msra.mxu0 %v4459
        %4477 = vmatpush.bf16.msra.mxu0 %v4458
        %4478 = vmatpush.bf16.msra.mxu0 %v4457
        %4479 = vmatpush.bf16.msra.mxu0 %v4456
        %4480 = vmatmul.bf16.gmra.mxu0 %v4422
        %v4481 = vpop.f32.mrf.mxu0
        %v4482 = vadd.f32 0.0, %v4481
        %v4483 = vpop.f32.mrf.mxu0
        %v4484 = vadd.f32 0.0, %v4483
        %4485 = vdwg.mxu0
        %v4486 = vadd.f32 %v4372, %v4482
        %v4487 = vadd.f32 %v4373, %v4484
        %s4488 = scalar_lea.vmem [#allocation16], 448
        %v4489 = vld [vmem:[%s4488] sm:$0xf]
        %v4490 = vld [vmem:[%s4488 + $0x4] sm:$0xf]
        %v4491 = vld [vmem:[%s4488 + $0x8] sm:$0xf]
        %v4492 = vld [vmem:[%s4488 + $0xc] sm:$0xf]
        %v4493 = vld [vmem:[%s4488 + $0x10] sm:$0xf]
        %v4494 = vld [vmem:[%s4488 + $0x14] sm:$0xf]
        %v4495 = vld [vmem:[%s4488 + $0x18] sm:$0xf]
        %v4496 = vld [vmem:[%s4488 + $0x1c] sm:$0xf]
        %v4497 = vld [vmem:[%s4488 + $0x20] sm:$0xf]
        %v4498 = vld [vmem:[%s4488 + $0x24] sm:$0xf]
        %v4499 = vld [vmem:[%s4488 + $0x28] sm:$0xf]
        %v4500 = vld [vmem:[%s4488 + $0x2c] sm:$0xf]
        %v4501 = vld [vmem:[%s4488 + $0x30] sm:$0xf]
        %v4502 = vld [vmem:[%s4488 + $0x34] sm:$0xf]
        %v4503 = vld [vmem:[%s4488 + $0x38] sm:$0xf]
        %v4504 = vld [vmem:[%s4488 + $0x3c] sm:$0xf]
        %v4505 = vpack.c.b16 %v4403, %v4402
        %v4523 = vunpack.c.l.b16 %v4489
        %v4524 = vunpack.c.l.b16 %v4490
        %v4525 = vunpack.c.l.b16 %v4491
        %v4526 = vunpack.c.l.b16 %v4492
        %v4527 = vunpack.c.l.b16 %v4493
        %v4528 = vunpack.c.l.b16 %v4494
        %v4529 = vunpack.c.l.b16 %v4495
        %v4530 = vunpack.c.l.b16 %v4496
        %v4531 = vunpack.c.l.b16 %v4497
        %v4532 = vunpack.c.l.b16 %v4498
        %v4533 = vunpack.c.l.b16 %v4499
        %v4534 = vunpack.c.l.b16 %v4500
        %v4535 = vunpack.c.l.b16 %v4501
        %v4536 = vunpack.c.l.b16 %v4502
        %v4537 = vunpack.c.l.b16 %v4503
        %v4538 = vunpack.c.l.b16 %v4504
        %v4539 = vpack.c.b16 %v4524, %v4523
        %v4540 = vpack.c.b16 %v4526, %v4525
        %v4541 = vpack.c.b16 %v4528, %v4527
        %v4542 = vpack.c.b16 %v4530, %v4529
        %v4543 = vpack.c.b16 %v4532, %v4531
        %v4544 = vpack.c.b16 %v4534, %v4533
        %v4545 = vpack.c.b16 %v4536, %v4535
        %v4546 = vpack.c.b16 %v4538, %v4537
        %4555 = vmatpush.bf16.msra.mxu0 %v4546
        %4556 = vmatpush.bf16.msra.mxu0 %v4545
        %4557 = vmatpush.bf16.msra.mxu0 %v4544
        %4558 = vmatpush.bf16.msra.mxu0 %v4543
        %4559 = vmatpush.bf16.msra.mxu0 %v4542
        %4560 = vmatpush.bf16.msra.mxu0 %v4541
        %4561 = vmatpush.bf16.msra.mxu0 %v4540
        %4562 = vmatpush.bf16.msra.mxu0 %v4539
        %4563 = vmatmul.bf16.gmra.mxu0 %v4505
        %v4564 = vpop.f32.mrf.mxu0
        %v4565 = vadd.f32 0.0, %v4564
        %v4566 = vpop.f32.mrf.mxu0
        %v4567 = vadd.f32 0.0, %v4566
        %4568 = vdwg.mxu0
        %v4569 = vadd.f32 %v4486, %v4565
        %v4570 = vadd.f32 %v4487, %v4567
        %v4571 = vld [vmem:[#allocation2 + $0x8] sm:$0xf]
        %v4572 = vld [vmem:[#allocation2 + $0xc] sm:$0xf]
        %v4573 = vld [vmem:[#allocation2 + $0x10] sm:$0x1]
        %s4574 = scalar_lea.vmem [#allocation16], 512
        %v4575 = vld [vmem:[%s4574] sm:$0xf]
        %v4576 = vld [vmem:[%s4574 + $0x4] sm:$0xf]
        %v4577 = vld [vmem:[%s4574 + $0x8] sm:$0xf]
        %v4578 = vld [vmem:[%s4574 + $0xc] sm:$0xf]
        %v4579 = vld [vmem:[%s4574 + $0x10] sm:$0xf]
        %v4580 = vld [vmem:[%s4574 + $0x14] sm:$0xf]
        %v4581 = vld [vmem:[%s4574 + $0x18] sm:$0xf]
        %v4582 = vld [vmem:[%s4574 + $0x1c] sm:$0xf]
        %v4583 = vld [vmem:[%s4574 + $0x20] sm:$0xf]
        %v4584 = vld [vmem:[%s4574 + $0x24] sm:$0xf]
        %v4585 = vld [vmem:[%s4574 + $0x28] sm:$0xf]
        %v4586 = vld [vmem:[%s4574 + $0x2c] sm:$0xf]
        %v4587 = vld [vmem:[%s4574 + $0x30] sm:$0xf]
        %v4588 = vld [vmem:[%s4574 + $0x34] sm:$0xf]
        %v4589 = vld [vmem:[%s4574 + $0x38] sm:$0xf]
        %v4590 = vld [vmem:[%s4574 + $0x3c] sm:$0xf]
        %v4594 = vunpack.c.l.b16 %v4571
        %v4595 = vunpack.c.l.b16 %v4572
        %v4596 = vunpack.c.l.b16 %v4573
        %v4597 = vpack.c.b16 %v4595, %v4594
        %v4598 = vpack.c.b16 %v4596, %v4596
        %v4600 = vshrl.u32 %v4597, 16
        %v4602 = vshll.u32 %v4597, 16
        %v4604 = vrot.slane %v4602, 1
        %v4605 = vor.u32 %v4600, %v4604
        %v4607 = vshll.u32 %v4598, 16
        %v4609 = vrot.slane %v4607, 1
        %v4610 = vsel %vm1399, %v4605, %v4609
        %v4628 = vunpack.c.l.b16 %v4575
        %v4629 = vunpack.c.l.b16 %v4576
        %v4630 = vunpack.c.l.b16 %v4577
        %v4631 = vunpack.c.l.b16 %v4578
        %v4632 = vunpack.c.l.b16 %v4579
        %v4633 = vunpack.c.l.b16 %v4580
        %v4634 = vunpack.c.l.b16 %v4581
        %v4635 = vunpack.c.l.b16 %v4582
        %v4636 = vunpack.c.l.b16 %v4583
        %v4637 = vunpack.c.l.b16 %v4584
        %v4638 = vunpack.c.l.b16 %v4585
        %v4639 = vunpack.c.l.b16 %v4586
        %v4640 = vunpack.c.l.b16 %v4587
        %v4641 = vunpack.c.l.b16 %v4588
        %v4642 = vunpack.c.l.b16 %v4589
        %v4643 = vunpack.c.l.b16 %v4590
        %v4644 = vpack.c.b16 %v4629, %v4628
        %v4645 = vpack.c.b16 %v4631, %v4630
        %v4646 = vpack.c.b16 %v4633, %v4632
        %v4647 = vpack.c.b16 %v4635, %v4634
        %v4648 = vpack.c.b16 %v4637, %v4636
        %v4649 = vpack.c.b16 %v4639, %v4638
        %v4650 = vpack.c.b16 %v4641, %v4640
        %v4651 = vpack.c.b16 %v4643, %v4642
        %4660 = vmatpush.bf16.msra.mxu0 %v4651
        %4661 = vmatpush.bf16.msra.mxu0 %v4650
        %4662 = vmatpush.bf16.msra.mxu0 %v4649
        %4663 = vmatpush.bf16.msra.mxu0 %v4648
        %4664 = vmatpush.bf16.msra.mxu0 %v4647
        %4665 = vmatpush.bf16.msra.mxu0 %v4646
        %4666 = vmatpush.bf16.msra.mxu0 %v4645
        %4667 = vmatpush.bf16.msra.mxu0 %v4644
        %4668 = vmatmul.bf16.gmra.mxu0 %v4610
        %v4669 = vpop.f32.mrf.mxu0
        %v4670 = vadd.f32 0.0, %v4669
        %v4671 = vpop.f32.mrf.mxu0
        %v4672 = vadd.f32 0.0, %v4671
        %4673 = vdwg.mxu0
        %v4674 = vadd.f32 %v4569, %v4670
        %v4675 = vadd.f32 %v4570, %v4672
        %v4676 = vpack.c.bf16 %v3773, %v3773
        %v4677 = vpack.c.bf16 %v3774, %v3774
        %4678 = vst [vmem:[#allocation2 + $0x8] sm:$0xf] %v4676
        %4679 = vst [vmem:[#allocation2 + $0xc] sm:$0xf] %v4677
        %v4680 = vld [vmem:[#allocation2 + $0x4] sm:$0x8]
        %v4681 = vld [vmem:[#allocation2 + $0x8] sm:$0xf]
        %v4682 = vld [vmem:[#allocation2 + $0xc] sm:$0xf]
        %s4683 = scalar_lea.vmem [#allocation16], 576
        %v4684 = vld [vmem:[%s4683] sm:$0xf]
        %v4685 = vld [vmem:[%s4683 + $0x4] sm:$0xf]
        %v4686 = vld [vmem:[%s4683 + $0x8] sm:$0xf]
        %v4687 = vld [vmem:[%s4683 + $0xc] sm:$0xf]
        %v4688 = vld [vmem:[%s4683 + $0x10] sm:$0xf]
        %v4689 = vld [vmem:[%s4683 + $0x14] sm:$0xf]
        %v4690 = vld [vmem:[%s4683 + $0x18] sm:$0xf]
        %v4691 = vld [vmem:[%s4683 + $0x1c] sm:$0xf]
        %v4692 = vld [vmem:[%s4683 + $0x20] sm:$0xf]
        %v4693 = vld [vmem:[%s4683 + $0x24] sm:$0xf]
        %v4694 = vld [vmem:[%s4683 + $0x28] sm:$0xf]
        %v4695 = vld [vmem:[%s4683 + $0x2c] sm:$0xf]
        %v4696 = vld [vmem:[%s4683 + $0x30] sm:$0xf]
        %v4697 = vld [vmem:[%s4683 + $0x34] sm:$0xf]
        %v4698 = vld [vmem:[%s4683 + $0x38] sm:$0xf]
        %v4699 = vld [vmem:[%s4683 + $0x3c] sm:$0xf]
        %v4703 = vunpack.c.l.b16 %v4680
        %v4704 = vunpack.c.l.b16 %v4681
        %v4705 = vunpack.c.l.b16 %v4682
        %v4706 = vpack.c.b16 %v4704, %v4703
        %v4707 = vpack.c.b16 %v4705, %v4705
        %v4709 = vshrl.u32 %v4706, 16
        %v4711 = vrot.slane %v4709, 3
        %v4712 = vshll.u32 %v4706, 16
        %v4714 = vrot.slane %v4712, 4
        %v4715 = vor.u32 %v4711, %v4714
        %v4717 = vshrl.u32 %v4707, 16
        %v4719 = vrot.slane %v4717, 3
        %v4720 = vshll.u32 %v4707, 16
        %v4722 = vrot.slane %v4720, 4
        %v4723 = vor.u32 %v4719, %v4722
        %v4724 = vsel %vm1290, %v4715, %v4723
        %v4742 = vunpack.c.l.b16 %v4684
        %v4743 = vunpack.c.l.b16 %v4685
        %v4744 = vunpack.c.l.b16 %v4686
        %v4745 = vunpack.c.l.b16 %v4687
        %v4746 = vunpack.c.l.b16 %v4688
        %v4747 = vunpack.c.l.b16 %v4689
        %v4748 = vunpack.c.l.b16 %v4690
        %v4749 = vunpack.c.l.b16 %v4691
        %v4750 = vunpack.c.l.b16 %v4692
        %v4751 = vunpack.c.l.b16 %v4693
        %v4752 = vunpack.c.l.b16 %v4694
        %v4753 = vunpack.c.l.b16 %v4695
        %v4754 = vunpack.c.l.b16 %v4696
        %v4755 = vunpack.c.l.b16 %v4697
        %v4756 = vunpack.c.l.b16 %v4698
        %v4757 = vunpack.c.l.b16 %v4699
        %v4758 = vpack.c.b16 %v4743, %v4742
        %v4759 = vpack.c.b16 %v4745, %v4744
        %v4760 = vpack.c.b16 %v4747, %v4746
        %v4761 = vpack.c.b16 %v4749, %v4748
        %v4762 = vpack.c.b16 %v4751, %v4750
        %v4763 = vpack.c.b16 %v4753, %v4752
        %v4764 = vpack.c.b16 %v4755, %v4754
        %v4765 = vpack.c.b16 %v4757, %v4756
        %4774 = vmatpush.bf16.msra.mxu0 %v4765
        %4775 = vmatpush.bf16.msra.mxu0 %v4764
        %4776 = vmatpush.bf16.msra.mxu0 %v4763
        %4777 = vmatpush.bf16.msra.mxu0 %v4762
        %4778 = vmatpush.bf16.msra.mxu0 %v4761
        %4779 = vmatpush.bf16.msra.mxu0 %v4760
        %4780 = vmatpush.bf16.msra.mxu0 %v4759
        %4781 = vmatpush.bf16.msra.mxu0 %v4758
        %4782 = vmatmul.bf16.gmra.mxu0 %v4724
        %v4783 = vpop.f32.mrf.mxu0
        %v4784 = vadd.f32 0.0, %v4783
        %v4785 = vpop.f32.mrf.mxu0
        %v4786 = vadd.f32 0.0, %v4785
        %4787 = vdwg.mxu0
        %v4788 = vadd.f32 %v4674, %v4784
        %v4789 = vadd.f32 %v4675, %v4786
        %s4790 = scalar_lea.vmem [#allocation16], 640
        %v4791 = vld [vmem:[%s4790] sm:$0xf]
        %v4792 = vld [vmem:[%s4790 + $0x4] sm:$0xf]
        %v4793 = vld [vmem:[%s4790 + $0x8] sm:$0xf]
        %v4794 = vld [vmem:[%s4790 + $0xc] sm:$0xf]
        %v4795 = vld [vmem:[%s4790 + $0x10] sm:$0xf]
        %v4796 = vld [vmem:[%s4790 + $0x14] sm:$0xf]
        %v4797 = vld [vmem:[%s4790 + $0x18] sm:$0xf]
        %v4798 = vld [vmem:[%s4790 + $0x1c] sm:$0xf]
        %v4799 = vld [vmem:[%s4790 + $0x20] sm:$0xf]
        %v4800 = vld [vmem:[%s4790 + $0x24] sm:$0xf]
        %v4801 = vld [vmem:[%s4790 + $0x28] sm:$0xf]
        %v4802 = vld [vmem:[%s4790 + $0x2c] sm:$0xf]
        %v4803 = vld [vmem:[%s4790 + $0x30] sm:$0xf]
        %v4804 = vld [vmem:[%s4790 + $0x34] sm:$0xf]
        %v4805 = vld [vmem:[%s4790 + $0x38] sm:$0xf]
        %v4806 = vld [vmem:[%s4790 + $0x3c] sm:$0xf]
        %v4807 = vpack.c.b16 %v4705, %v4704
        %v4825 = vunpack.c.l.b16 %v4791
        %v4826 = vunpack.c.l.b16 %v4792
        %v4827 = vunpack.c.l.b16 %v4793
        %v4828 = vunpack.c.l.b16 %v4794
        %v4829 = vunpack.c.l.b16 %v4795
        %v4830 = vunpack.c.l.b16 %v4796
        %v4831 = vunpack.c.l.b16 %v4797
        %v4832 = vunpack.c.l.b16 %v4798
        %v4833 = vunpack.c.l.b16 %v4799
        %v4834 = vunpack.c.l.b16 %v4800
        %v4835 = vunpack.c.l.b16 %v4801
        %v4836 = vunpack.c.l.b16 %v4802
        %v4837 = vunpack.c.l.b16 %v4803
        %v4838 = vunpack.c.l.b16 %v4804
        %v4839 = vunpack.c.l.b16 %v4805
        %v4840 = vunpack.c.l.b16 %v4806
        %v4841 = vpack.c.b16 %v4826, %v4825
        %v4842 = vpack.c.b16 %v4828, %v4827
        %v4843 = vpack.c.b16 %v4830, %v4829
        %v4844 = vpack.c.b16 %v4832, %v4831
        %v4845 = vpack.c.b16 %v4834, %v4833
        %v4846 = vpack.c.b16 %v4836, %v4835
        %v4847 = vpack.c.b16 %v4838, %v4837
        %v4848 = vpack.c.b16 %v4840, %v4839
        %4857 = vmatpush.bf16.msra.mxu0 %v4848
        %4858 = vmatpush.bf16.msra.mxu0 %v4847
        %4859 = vmatpush.bf16.msra.mxu0 %v4846
        %4860 = vmatpush.bf16.msra.mxu0 %v4845
        %4861 = vmatpush.bf16.msra.mxu0 %v4844
        %4862 = vmatpush.bf16.msra.mxu0 %v4843
        %4863 = vmatpush.bf16.msra.mxu0 %v4842
        %4864 = vmatpush.bf16.msra.mxu0 %v4841
        %4865 = vmatmul.bf16.gmra.mxu0 %v4807
        %v4866 = vpop.f32.mrf.mxu0
        %v4867 = vadd.f32 0.0, %v4866
        %v4868 = vpop.f32.mrf.mxu0
        %v4869 = vadd.f32 0.0, %v4868
        %4870 = vdwg.mxu0
        %v4871 = vadd.f32 %v4788, %v4867
        %v4872 = vadd.f32 %v4789, %v4869
        %v4873 = vld [vmem:[#allocation2 + $0x8] sm:$0xf]
        %v4874 = vld [vmem:[#allocation2 + $0xc] sm:$0xf]
        %v4875 = vld [vmem:[#allocation2 + $0x10] sm:$0x1]
        %s4876 = scalar_lea.vmem [#allocation16], 704
        %v4877 = vld [vmem:[%s4876] sm:$0xf]
        %v4878 = vld [vmem:[%s4876 + $0x4] sm:$0xf]
        %v4879 = vld [vmem:[%s4876 + $0x8] sm:$0xf]
        %v4880 = vld [vmem:[%s4876 + $0xc] sm:$0xf]
        %v4881 = vld [vmem:[%s4876 + $0x10] sm:$0xf]
        %v4882 = vld [vmem:[%s4876 + $0x14] sm:$0xf]
        %v4883 = vld [vmem:[%s4876 + $0x18] sm:$0xf]
        %v4884 = vld [vmem:[%s4876 + $0x1c] sm:$0xf]
        %v4885 = vld [vmem:[%s4876 + $0x20] sm:$0xf]
        %v4886 = vld [vmem:[%s4876 + $0x24] sm:$0xf]
        %v4887 = vld [vmem:[%s4876 + $0x28] sm:$0xf]
        %v4888 = vld [vmem:[%s4876 + $0x2c] sm:$0xf]
        %v4889 = vld [vmem:[%s4876 + $0x30] sm:$0xf]
        %v4890 = vld [vmem:[%s4876 + $0x34] sm:$0xf]
        %v4891 = vld [vmem:[%s4876 + $0x38] sm:$0xf]
        %v4892 = vld [vmem:[%s4876 + $0x3c] sm:$0xf]
        %v4896 = vunpack.c.l.b16 %v4873
        %v4897 = vunpack.c.l.b16 %v4874
        %v4898 = vunpack.c.l.b16 %v4875
        %v4899 = vpack.c.b16 %v4897, %v4896
        %v4900 = vpack.c.b16 %v4898, %v4898
        %v4902 = vshrl.u32 %v4899, 16
        %v4904 = vshll.u32 %v4899, 16
        %v4906 = vrot.slane %v4904, 1
        %v4907 = vor.u32 %v4902, %v4906
        %v4909 = vshll.u32 %v4900, 16
        %v4911 = vrot.slane %v4909, 1
        %v4912 = vsel %vm1399, %v4907, %v4911
        %v4930 = vunpack.c.l.b16 %v4877
        %v4931 = vunpack.c.l.b16 %v4878
        %v4932 = vunpack.c.l.b16 %v4879
        %v4933 = vunpack.c.l.b16 %v4880
        %v4934 = vunpack.c.l.b16 %v4881
        %v4935 = vunpack.c.l.b16 %v4882
        %v4936 = vunpack.c.l.b16 %v4883
        %v4937 = vunpack.c.l.b16 %v4884
        %v4938 = vunpack.c.l.b16 %v4885
        %v4939 = vunpack.c.l.b16 %v4886
        %v4940 = vunpack.c.l.b16 %v4887
        %v4941 = vunpack.c.l.b16 %v4888
        %v4942 = vunpack.c.l.b16 %v4889
        %v4943 = vunpack.c.l.b16 %v4890
        %v4944 = vunpack.c.l.b16 %v4891
        %v4945 = vunpack.c.l.b16 %v4892
        %v4946 = vpack.c.b16 %v4931, %v4930
        %v4947 = vpack.c.b16 %v4933, %v4932
        %v4948 = vpack.c.b16 %v4935, %v4934
        %v4949 = vpack.c.b16 %v4937, %v4936
        %v4950 = vpack.c.b16 %v4939, %v4938
        %v4951 = vpack.c.b16 %v4941, %v4940
        %v4952 = vpack.c.b16 %v4943, %v4942
        %v4953 = vpack.c.b16 %v4945, %v4944
        %4962 = vmatpush.bf16.msra.mxu0 %v4953
        %4963 = vmatpush.bf16.msra.mxu0 %v4952
        %4964 = vmatpush.bf16.msra.mxu0 %v4951
        %4965 = vmatpush.bf16.msra.mxu0 %v4950
        %4966 = vmatpush.bf16.msra.mxu0 %v4949
        %4967 = vmatpush.bf16.msra.mxu0 %v4948
        %4968 = vmatpush.bf16.msra.mxu0 %v4947
        %4969 = vmatpush.bf16.msra.mxu0 %v4946
        %4970 = vmatmul.bf16.gmra.mxu0 %v4912
        %v4971 = vpop.f32.mrf.mxu0
        %v4972 = vadd.f32 0.0, %v4971
        %v4973 = vpop.f32.mrf.mxu0
        %v4974 = vadd.f32 0.0, %v4973
        %4975 = vdwg.mxu0
        %v4976 = vadd.f32 %v4871, %v4972
        %v4977 = vadd.f32 %v4872, %v4974
        %v4978 = vld [vmem:[%s22] sm:$0x1]
        %v4980 = vperm.slane %v4978, 0
        %v4982 = vadd.f32 %v4976, %v4980
        %v4983 = vadd.f32 %v4977, %v4980
        %v4984 = vadd.f32 %v4982, %v1078
        %v4985 = vadd.f32 %v4983, %v1080
        %v4986 = vmax.f32 %v4984, 0.0
        %v4987 = vmax.f32 %v4985, 0.0
        %4988 = vst [vmem:[%s859] sm:$0xff] %v4986
        %4989 = vst [vmem:[%s859 + $0x8] sm:$0xff] %v4987
        %p4990 = scmp.lt.s32.totalorder %s39, 1
        %s4991 = scalar_select %p4990, %s39, 1
        %s4992 = smul.addr %s4991, 2
        %s4993 = smul.addr %s4992, 8
        %s4994 = scalar_lea.vmem %s23, %s4993
        // Predicated region
        $region149: #{raspm_forward.1} parent=111 // pred_check
          %p4995 = pneg %p545
        $region150: #{raspm_forward.1} parent=111 // pred_check_branch
          %4997 = sbr.rel (%p4995) target = $region152
        $region151: #{raspm_forward.1} parent=111 // pred_region
          _
        $region152: #{raspm_forward.1} parent=111 // pred_fallthru
          _
      $region112: #{raspm_forward.1} parent=5 // pred_fallthru
        _
      %p4998 = scmp.le.s32.totalorder 2, %s34
      // Predicated region
      $region153: #{raspm_forward.1} parent=5 // pred_check
        %p4999 = pneg %p4998
      $region154: #{raspm_forward.1} parent=5 // pred_check_branch
        %5001 = sbr.rel (%p4999) target = $region156
      $region155: #{raspm_forward.1} parent=5 // pred_region
        %s5002 = ssub.s32 %s34, 2
        // Predicated region
        $region157: #{raspm_forward.1} parent=155 // pred_check
          %p5003 = pneg %p551
        $region158: #{raspm_forward.1} parent=155 // pred_check_branch
          %5005 = sbr.rel (%p5003) target = $region160
        $region159: #{raspm_forward.1} parent=155 // pred_region
          %p5006 = scmp.lt.s32.totalorder %s40, 1
          %s5007 = scalar_select %p5006, %s40, 1
          %s5008 = smul.addr %s5007, 2
          %s5009 = smul.addr %s5008, 8
          %s5010 = scalar_lea.vmem %s23, %s5009
        $region160: #{raspm_forward.1} parent=155 // pred_fallthru
          _
      $region156: #{raspm_forward.1} parent=5 // pred_fallthru
        _
    $region6: #{raspm_forward.1} parent=1 // loop_footer
      %s38 = sadd.s32 1, %s34
    $region7: #{raspm_forward.1} parent=1 // loop_footer_branch
      %33 = sbr.rel target = $region3
    $region8: #{raspm_forward.1} parent=1 // loop_exit
      _
    %5011 = vsyncpa [#allocation4], 1
    %s5012 = scalar_lea.sflag [#allocation4], 1
    %5013 = vsyncpa %s5012, 1
    %5014 = vsyncpa [#allocation6], 1
    %5015 = vsyncpa [#allocation9], 1
    %5016 = vsyncpa [#allocation12], 1
    %5017 = vsyncpa [#allocation15], 1

</llo_original>
